<compile_context>
chip_gen: v7x
topology: tpu7x:2x2x1
jax: 0.10.0
libtpu: 0.0.40
codegen_flags: <defaults>
</compile_context>

<pallas_src>
import functools
import math

import jax
import jax.numpy as jnp
from jax.experimental import pallas as pl
from jax.experimental.pallas import tpu as pltpu


# TODO(synk): conv_proj_{q,k,v} ('dw_bn' / 'avg' methods) are not implemented; the
# default method='linear' makes them None, which is the configuration implemented here.
# attn_drop / proj_drop are nn.Dropout(0.0) -> identity in this configuration.


def _attention_kernel(num_heads, head_dim, dim_out, seq_len, chunk_b, n_chunks, store_attn,
                      x_ref, mask_ref, sig_ref, blkneg_ref, tile_ref, extract_ref,
                      wqkv_ref, wpT_ref, bp_ref, out_ref, *rest):
    """One grid step handles b_blk = chunk_b * n_chunks batch elements.

    Row layout is (batch*T, features) everywhere:
      x_ref      : (b_blk*T, dim_in)
      mask_ref   : (b_blk*T, H*T)       mask2[b*T+t, h*T+s] = src_mask[b, h, t, s]
      sig_ref    : (1, H)               sigmoid(gating)
      blkneg_ref : (R, R)               0 on the block diagonal, -1e30 off it (R = chunk_b*T)
      tile_ref   : (T, R)               [eye(T) eye(T) ...]  (lane-tiling selection matrix)
      extract_ref: (R, T)               tile_ref.T           (block-diag extraction matrix)
      wqkv_ref   : (dim_in, 3*dim_out)  pre-transposed, attention scale folded into q cols
      wpT_ref    : (dim_out, dim_out)   pre-transposed
      bp_ref     : (1, dim_out)
      out_ref    : (b_blk*T, dim_out)
      rest       : ([attn_ref (b_blk*T, H*T)], qkv_scratch, ctx_scratch)
    """
    if store_attn:
        attn_ref, qkv_scr, ctx_scr = rest
    else:
        attn_ref = None
        qkv_scr, ctx_scr = rest

    T = seq_len
    R = chunk_b * T

    # 1) Fused QKV projection for the whole block: one (M, dim_in) @ (dim_in, 3*dim_out).
    qkv_scr[...] = jnp.dot(x_ref[...], wqkv_ref[...],
                           preferred_element_type=jnp.float32)

    # 2) Block-diagonal batched attention: each chunk packs chunk_b batch elements into
    #    R = chunk_b*T rows so every matmul and softmax is lane-dense.
    @pl.loop(0, n_chunks)
    def _chunk(ci):
        r0 = pl.multiple_of(ci * R, R)
        for h in range(num_heads):                       # static unroll; H is small
            q0 = h * head_dim
            k0 = dim_out + h * head_dim
            v0 = 2 * dim_out + h * head_dim
            q = qkv_scr[pl.ds(r0, R), q0:q0 + head_dim]  # (R, d), scale already folded
            k = qkv_scr[pl.ds(r0, R), k0:k0 + head_dim]  # (R, d)
            v = qkv_scr[pl.ds(r0, R), v0:v0 + head_dim]  # (R, d)

            # Scores for all chunk_b batch elements at once; off-block entries get -1e30
            # so exp() underflows to exactly zero.
            s = jnp.einsum('td,sd->ts', q, k,
                           preferred_element_type=jnp.float32) + blkneg_ref[...]
            s = s - jnp.max(s, axis=-1, keepdims=True)
            e = jnp.exp(s)
            a = e * pl.reciprocal(jnp.sum(e, axis=-1, keepdims=True), approx=True)

            # softmax(src_mask) in the same block-diagonal layout: lane-tile the (R, T)
            # mask rows to (R, R) with one tiny exact (HIGHEST-precision 0/1) MXU matmul.
            mrows = mask_ref[pl.ds(r0, R), h * T:(h + 1) * T].astype(jnp.float32)
            mt = jnp.dot(mrows, tile_ref[...],
                         precision=jax.lax.Precision.HIGHEST,
                         preferred_element_type=jnp.float32) + blkneg_ref[...]
            mt = mt - jnp.max(mt, axis=-1, keepdims=True)
            em = jnp.exp(mt)
            am = em * pl.reciprocal(jnp.sum(em, axis=-1, keepdims=True), approx=True)

            # gated mix + renormalisation (row sums are ~1 -> approx reciprocal is benign)
            g = sig_ref[:, h:h + 1].astype(jnp.float32)  # (1, 1), broadcasts
            a = (1.0 - g) * a + g * am
            a = a * pl.reciprocal(jnp.sum(a, axis=-1, keepdims=True), approx=True)

            if store_attn:
                # Pull the diagonal blocks back to (R, T) with one MXU push; off-block
                # entries of `a` are exactly zero, so this is an exact selection.
                a_c = jnp.dot(a, extract_ref[...],
                              precision=jax.lax.Precision.HIGHEST,
                              preferred_element_type=jnp.float32)
                attn_ref[pl.ds(r0, R), h * T:(h + 1) * T] = a_c.astype(attn_ref.dtype)

            # Per-head context written at its lane offset (no concatenate).
            ctx_scr[pl.ds(r0, R), h * head_dim:(h + 1) * head_dim] = jnp.dot(
                a, v, preferred_element_type=jnp.float32)

    # 3) Output projection for the whole block: one (M, dim_out) @ (dim_out, dim_out).
    y = jnp.dot(ctx_scr[...], wpT_ref[...],
                preferred_element_type=jnp.float32) + bp_ref[...]
    out_ref[...] = y.astype(out_ref.dtype)


def _pad_lanes(n):
    return ((n + 127) // 128) * 128


def _choose_blocking(B, T, H, dim_in, dim_out, in_bytes, return_attn,
                     vmem_budget_bytes=18 << 20, row_target=128):
    """Pick (chunk_b, b_block, num_blocks).

    chunk_b*T ~ 128 rows keeps the per-chunk softmax/matmuls lane-dense without growing
    the off-block waste; b_block is as large as the VMEM budget allows (few, fat grid
    steps); on v7x the batch is split into >=2 parallel steps for the two TensorCores.
    """
    chunk_b = max(1, min(B, max(1, row_target // T)))
    step = chunk_b
    if (step * T) % 8 != 0:                        # BlockSpec row dim must be a multiple of 8
        step *= 8 // math.gcd(step * T, 8)

    per_elem = (
        T * _pad_lanes(dim_in) * in_bytes * 2          # x block (double buffered)
        + T * _pad_lanes(H * T) * in_bytes * 2         # mask block
        + T * _pad_lanes(dim_out) * 4 * 2              # out block
        + (T * _pad_lanes(H * T) * 4 * 2 if return_attn else 0)   # attn block
        + T * _pad_lanes(3 * dim_out) * 4              # qkv scratch
        + T * _pad_lanes(dim_out) * 4                  # ctx scratch
    )
    max_b = max(step, (vmem_budget_bytes // per_elem) // step * step)
    b_ceil = -(-B // step) * step
    b_block = min(max_b, b_ceil)
    num_blocks = -(-b_ceil // b_block)

    try:
        kind = jax.devices()[0].device_kind.lower()
    except Exception:
        kind = ""
    if "v7" in kind and num_blocks == 1 and b_block >= 2 * step:
        b_block = -(-b_ceil // (2 * step)) * step      # feed both TensorCores
        num_blocks = -(-b_ceil // b_block)
    return chunk_b, b_block, num_blocks


def attention_forward(x, src_mask, params, num_heads, *, return_attn=True,
                      input_dtype=None, b_block=None):
    """params = dict(wq, wk, wv, wp, bp, gating). Returns (out, attn-or-None)."""
    B, T, dim_in = x.shape
    out_dtype = x.dtype
    wq, wk, wv = params["wq"], params["wk"], params["wv"]
    wp, bp, gating = params["wp"], params["bp"], params["gating"]
    dim_out = wq.shape[0]
    head_dim = dim_out // num_heads
    scale = dim_out ** (-0.5)          # matches the module: dim_out**-0.5 (not head_dim**-0.5)

    if input_dtype is None:
        input_dtype = x.dtype
    in_bytes = jnp.dtype(input_dtype).itemsize

    # Fused, pre-transposed projection weights; attention scale folded into the q columns.
    wqkv = jnp.concatenate([wq.T * scale, wk.T, wv.T], axis=1).astype(input_dtype)
    wpT = wp.T.astype(jnp.float32)
    bp2 = bp.reshape(1, dim_out).astype(jnp.float32)
    sig_g = jax.nn.sigmoid(gating.astype(jnp.float32)).reshape(1, num_heads)

    if b_block is None:
        chunk_b, blk_b, num_blocks = _choose_blocking(
            B, T, num_heads, dim_in, dim_out, in_bytes, return_attn)
    else:
        chunk_b = max(1, min(b_block, B, max(1, 128 // max(T, 1))))
        blk_b = -(-b_block // chunk_b) * chunk_b
        num_blocks = -(-B // blk_b)
        while num_blocks > 1 and (blk_b * T) % 8 != 0:
            blk_b += chunk_b
            num_blocks = -(-B // blk_b)

    B_pad = num_blocks * blk_b
    M_blk = blk_b * T
    R = chunk_b * T
    n_chunks = blk_b // chunk_b

    # Lane-dense 2-D row layouts.  x/out reshapes are free; the mask gets one wrapper-side
    # transpose ('(b h) l t -> (b l) (h t)') so the kernel reads contiguous (R, T) slabs.
    x2 = x.reshape(B * T, dim_in).astype(input_dtype)
    mask2 = (src_mask.reshape(B, num_heads, T, T)
             .transpose(0, 2, 1, 3)
             .reshape(B * T, num_heads * T)
             .astype(input_dtype))
    if B_pad != B:
        pad_rows = (B_pad - B) * T
        x2 = jnp.pad(x2, ((0, pad_rows), (0, 0)))
        mask2 = jnp.pad(mask2, ((0, pad_rows), (0, 0)))

    # Small constant matrices for the block-diagonal formulation.
    rows = jnp.arange(R) // T
    blkneg = jnp.where(rows[:, None] == rows[None, :], 0.0, -1e30).astype(jnp.float32)
    tile_m = jnp.tile(jnp.eye(T, dtype=jnp.float32), (1, chunk_b))     # (T, R)
    extract_m = jnp.transpose(tile_m)                                  # (R, T)

    kernel = functools.partial(_attention_kernel, num_heads, head_dim, dim_out, T,
                               chunk_b, n_chunks, return_attn)

    out_shape = [jax.ShapeDtypeStruct((B_pad * T, dim_out), out_dtype)]
    out_specs = [pl.BlockSpec((M_blk, dim_out), lambda b: (b, 0))]
    if return_attn:
        out_shape.append(jax.ShapeDtypeStruct((B_pad * T, num_heads * T), jnp.float32))
        out_specs.append(pl.BlockSpec((M_blk, num_heads * T), lambda b: (b, 0)))

    results = pl.pallas_call(
        kernel,
        out_shape=tuple(out_shape),
        grid_spec=pltpu.PrefetchScalarGridSpec(
            num_scalar_prefetch=0,
            grid=(num_blocks,),
            in_specs=[
                pl.BlockSpec((M_blk, dim_in), lambda b: (b, 0)),            # x
                pl.BlockSpec((M_blk, num_heads * T), lambda b: (b, 0)),     # mask
                pl.BlockSpec((1, num_heads), lambda b: (0, 0)),             # sigmoid(gating)
                pl.BlockSpec((R, R), lambda b: (0, 0)),                     # block-diag -inf
                pl.BlockSpec((T, R), lambda b: (0, 0)),                     # tiling matrix
                pl.BlockSpec((R, T), lambda b: (0, 0)),                     # extraction matrix
                pl.BlockSpec((dim_in, 3 * dim_out), lambda b: (0, 0)),      # fused qkv weight
                pl.BlockSpec((dim_out, dim_out), lambda b: (0, 0)),         # proj weight
                pl.BlockSpec((1, dim_out), lambda b: (0, 0)),               # proj bias
            ],
            out_specs=tuple(out_specs),
            scratch_shapes=[
                pltpu.VMEM((M_blk, 3 * dim_out), jnp.float32),              # qkv scratch
                pltpu.VMEM((M_blk, dim_out), jnp.float32),                  # ctx scratch
            ],
        ),
        compiler_params=pltpu.CompilerParams(
            dimension_semantics=("parallel",),
            vmem_limit_bytes=40 * 1024 * 1024,
        ),
    )(x2, mask2, sig_g, blkneg, tile_m, extract_m, wqkv, wpT, bp2)

    out = results[0][:B * T].reshape(B, T, dim_out)
    if not return_attn:
        return out, None
    attn = (results[1][:B * T]
            .reshape(B, T, num_heads, T)
            .transpose(0, 2, 1, 3))                 # (B, H, T, T)
    return out, attn


def attention_reference(x, src_mask, params, num_heads):
    """Pure-JAX reference mirroring the PyTorch forward exactly."""
    B, T, _ = x.shape
    wq, wk, wv = params["wq"], params["wk"], params["wv"]
    wp, bp, gating = params["wp"], params["bp"], params["gating"]
    dim_out = wq.shape[0]
    d = dim_out // num_heads

    def to_heads(z):   # 'b t (h d) -> b h t d'
        return z.reshape(B, T, num_heads, d).transpose(0, 2, 1, 3)

    q = to_heads(x @ wq.T)
    k = to_heads(x @ wk.T)
    v = to_heads(x @ wv.T)
    s = jnp.einsum("bhlk,bhtk->bhlt", q, k) * dim_out ** (-0.5)
    a = jax.nn.softmax(s, axis=-1)
    g = jax.nn.sigmoid(gating).reshape(1, num_heads, 1, 1)
    m = src_mask.reshape(B, num_heads, T, T)
    a = (1.0 - g) * a + g * jax.nn.softmax(m, axis=-1)
    a = a / a.sum(axis=-1, keepdims=True)
    o = jnp.einsum("bhlt,bhtv->bhlv", a, v)
    o = o.transpose(0, 2, 1, 3).reshape(B, T, dim_out)   # 'b h t d -> b t (h d)'
    o = o @ wp.T + bp
    return o, a


if __name__ == "__main__":
    def make_inputs(B, T, dim_in, dim_out, H, seed=0):
        key = jax.random.PRNGKey(seed)
        kx, km, k1, k2, k3, k4, k5 = jax.random.split(key, 7)
        x = jax.random.normal(kx, (B, T, dim_in), dtype=jnp.float32)
        src_mask = jax.random.normal(km, (B * H, T, T), dtype=jnp.float32)
        params = {
            "wq": 0.1 * jax.random.normal(k1, (dim_out, dim_in), dtype=jnp.float32),
            "wk": 0.1 * jax.random.normal(k2, (dim_out, dim_in), dtype=jnp.float32),
            "wv": 0.1 * jax.random.normal(k3, (dim_out, dim_in), dtype=jnp.float32),
            "wp": 0.1 * jax.random.normal(k4, (dim_out, dim_out), dtype=jnp.float32),
            "bp": 0.01 * jax.random.normal(k5, (dim_out,), dtype=jnp.float32),
            # init_gating = ones(H)*2 with the first H//2 entries set to -2
            "gating": jnp.where(jnp.arange(H) < H // 2, -2.0, 2.0).astype(jnp.float32),
        }
        return x, src_mask, params

    # --- small config straight from the module defaults --------------------------------
    B, T, dim_in, dim_out, H = 2, 8, 32, 32, 4
    x, src_mask, params = make_inputs(B, T, dim_in, dim_out, H)
    ref_out, ref_attn = attention_reference(x, src_mask, params, H)

    out, attn = attention_forward(x, src_mask, params, H)
    jax.block_until_ready((out, attn))
    assert out.shape == (B, T, dim_out) and attn.shape == (B, H, T, T)
    assert jnp.allclose(out, ref_out, rtol=1e-3, atol=1e-3)
    assert jnp.allclose(attn, ref_attn, rtol=1e-3, atol=1e-3)

    # --- larger batch: exercises 128-row block-diag chunks, the chunk loop and padding --
    B2 = 40
    xb, maskb, paramsb = make_inputs(B2, T, dim_in, dim_out, H, seed=1)
    ref_out2, ref_attn2 = attention_reference(xb, maskb, paramsb, H)
    out2, attn2 = attention_forward(xb, maskb, paramsb, H)
    jax.block_until_ready((out2, attn2))
    assert out2.shape == (B2, T, dim_out) and attn2.shape == (B2, H, T, T)
    assert jnp.allclose(out2, ref_out2, rtol=2e-3, atol=2e-3)
    assert jnp.allclose(attn2, ref_attn2, rtol=2e-3, atol=2e-3)

    # --- production-style call: no attention-map writeback ------------------------------
    out3, attn3 = attention_forward(xb, maskb, paramsb, H, return_attn=False)
    jax.block_until_ready(out3)
    assert attn3 is None
    assert jnp.allclose(out3, ref_out2, rtol=2e-3, atol=2e-3)

    # --- bf16 inputs (halved HBM/VMEM traffic), checked at a looser tolerance -----------
    out4, attn4 = attention_forward(xb, maskb, paramsb, H, input_dtype=jnp.bfloat16)
    jax.block_until_ready((out4, attn4))
    assert jnp.allclose(out4, ref_out2, rtol=5e-2, atol=5e-2)
    assert jnp.allclose(attn4, ref_attn2, rtol=5e-2, atol=5e-2)

    print("KERNEL_OK")
</pallas_src>

<mosaic_0001>
module attributes {stable_mosaic.version = 11 : i64} {
  func.func @_attention_kernel(%arg0: i32, %arg1: memref<16x32xf32, #tpu.memory_space<vmem>>, %arg2: memref<16x32xf32, #tpu.memory_space<vmem>>, %arg3: memref<1x4xf32, #tpu.memory_space<vmem>>, %arg4: memref<16x16xf32, #tpu.memory_space<vmem>>, %arg5: memref<8x16xf32, #tpu.memory_space<vmem>>, %arg6: memref<16x8xf32, #tpu.memory_space<vmem>>, %arg7: memref<32x96xf32, #tpu.memory_space<vmem>>, %arg8: memref<32x32xf32, #tpu.memory_space<vmem>>, %arg9: memref<1x32xf32, #tpu.memory_space<vmem>>, %arg10: memref<16x32xf32, #tpu.memory_space<vmem>>, %arg11: memref<16x32xf32, #tpu.memory_space<vmem>>, %arg12: memref<16x96xf32, #tpu.memory_space<vmem>>, %arg13: memref<16x32xf32, #tpu.memory_space<vmem>>) attributes {dimension_semantics = [#tpu.dimension_semantics<parallel>], iteration_bounds = array<i64: 1>, scalar_prefetch = 0 : i64, scratch_operands = 2 : i64, tpu.core_type = #tpu.core_type<tc>, window_params = [{transform_indices = @transform_0, window_bounds = array<i64: 16, 32>}, {transform_indices = @transform_1, window_bounds = array<i64: 16, 32>}, {pipeline_mode = #tpu.pipeline_mode<synchronous>, transform_indices = @transform_2, window_bounds = array<i64: 1, 4>}, {pipeline_mode = #tpu.pipeline_mode<synchronous>, transform_indices = @transform_3, window_bounds = array<i64: 16, 16>}, {pipeline_mode = #tpu.pipeline_mode<synchronous>, transform_indices = @transform_4, window_bounds = array<i64: 8, 16>}, {pipeline_mode = #tpu.pipeline_mode<synchronous>, transform_indices = @transform_5, window_bounds = array<i64: 16, 8>}, {pipeline_mode = #tpu.pipeline_mode<synchronous>, transform_indices = @transform_6, window_bounds = array<i64: 32, 96>}, {pipeline_mode = #tpu.pipeline_mode<synchronous>, transform_indices = @transform_7, window_bounds = array<i64: 32, 32>}, {pipeline_mode = #tpu.pipeline_mode<synchronous>, transform_indices = @transform_8, window_bounds = array<i64: 1, 32>}, {transform_indices = @transform_9, window_bounds = array<i64: 16, 32>}, {transform_indices = @transform_10, window_bounds = array<i64: 16, 32>}]} {
    %c0 = arith.constant 0 : index
    %c0_0 = arith.constant 0 : index
    %0 = vector.load %arg1[%c0, %c0_0] : memref<16x32xf32, #tpu.memory_space<vmem>>, vector<16x32xf32>
    %c0_1 = arith.constant 0 : index
    %c0_2 = arith.constant 0 : index
    %1 = vector.load %arg7[%c0_1, %c0_2] : memref<32x96xf32, #tpu.memory_space<vmem>>, vector<32x96xf32>
    %cst = arith.constant dense<0.000000e+00> : vector<16x96xf32>
    %2 = tpu.matmul %0, %1, %cst {dimension_numbers = #tpu.dot_dimension_numbers<[1], [0], [0], [1], [0, 0, 1, 1], [], []>} : vector<16x32xf32>, vector<32x96xf32>, vector<16x96xf32> -> vector<16x96xf32>
    %c0_3 = arith.constant 0 : index
    %c0_4 = arith.constant 0 : index
    %3 = vector.load %arg12[%c0_3, %c0_4] : memref<16x96xf32, #tpu.memory_space<vmem>>, vector<16x96xf32>
    tpu.vector_store %arg12[%c0_3, %c0_4], %2 {strides = array<i32>} : memref<16x96xf32, #tpu.memory_space<vmem>>, vector<16x96xf32>,
    %c0_i32 = arith.constant 0 : i32
    %c1_i32 = arith.constant 1 : i32
    %4 = arith.muli %c0_i32, %c1_i32 : i32
    %c0_i32_5 = arith.constant 0 : i32
    %5 = arith.addi %c0_i32_5, %4 : i32
    %c16_i32 = arith.constant 16 : i32
    %6 = arith.muli %5, %c16_i32 : i32
    %7 = tpu.assume_multiple %6, 16 : i32
    %8 = arith.index_cast %7 : i32 to index
    %c0_6 = arith.constant 0 : index
    %9 = vector.load %arg12[%8, %c0_6] : memref<16x96xf32, #tpu.memory_space<vmem>>, vector<16x8xf32>
    %10 = arith.index_cast %7 : i32 to index
    %c32 = arith.constant 32 : index
    %11 = vector.load %arg12[%10, %c32] : memref<16x96xf32, #tpu.memory_space<vmem>>, vector<16x8xf32>
    %12 = arith.index_cast %7 : i32 to index
    %c64 = arith.constant 64 : index
    %13 = vector.load %arg12[%12, %c64] : memref<16x96xf32, #tpu.memory_space<vmem>>, vector<16x8xf32>
    "tpu.trace_start"() <{level = 10 : i32, message = "td,sd->ts"}> : () -> ()
    %cst_7 = arith.constant dense<0.000000e+00> : vector<16x16xf32>
    %14 = tpu.matmul %9, %11, %cst_7 {dimension_numbers = #tpu.dot_dimension_numbers<[1], [1], [0], [0], [0, 0, 1, 0], [], []>} : vector<16x8xf32>, vector<16x8xf32>, vector<16x16xf32> -> vector<16x16xf32>
    "tpu.trace_stop"() : () -> ()
    %c0_8 = arith.constant 0 : index
    %c0_9 = arith.constant 0 : index
    %15 = vector.load %arg4[%c0_8, %c0_9] : memref<16x16xf32, #tpu.memory_space<vmem>>, vector<16x16xf32>
    %16 = arith.addf %14, %15 : vector<16x16xf32>
    %cst_10 = arith.constant dense<0xFF800000> : vector<16xf32>
    %17 = vector.multi_reduction <maximumf>, %16, %cst_10 [1] : vector<16x16xf32> to vector<16xf32>
    %18 = vector.shape_cast %17 : vector<16xf32> to vector<16x1xf32>
    %19 = vector.broadcast %18 : vector<16x1xf32> to vector<16x16xf32>
    %20 = arith.subf %16, %19 : vector<16x16xf32>
    %21 = math.exp %20 : vector<16x16xf32>
    %cst_11 = arith.constant dense<0.000000e+00> : vector<16xf32>
    %22 = vector.multi_reduction <add>, %21, %cst_11 [1] : vector<16x16xf32> to vector<16xf32>
    %23 = vector.shape_cast %22 : vector<16xf32> to vector<16x1xf32>
    %24 = tpu.reciprocal %23 {approx = true} : vector<16x1xf32> -> vector<16x1xf32>
    %25 = vector.broadcast %24 : vector<16x1xf32> to vector<16x16xf32>
    %26 = arith.mulf %21, %25 : vector<16x16xf32>
    %27 = arith.index_cast %7 : i32 to index
    %c0_12 = arith.constant 0 : index
    %28 = vector.load %arg2[%27, %c0_12] : memref<16x32xf32, #tpu.memory_space<vmem>>, vector<16x8xf32>
    %c0_13 = arith.constant 0 : index
    %c0_14 = arith.constant 0 : index
    %29 = vector.load %arg5[%c0_13, %c0_14] : memref<8x16xf32, #tpu.memory_space<vmem>>, vector<8x16xf32>
    %cst_15 = arith.constant dense<0.000000e+00> : vector<16x16xf32>
    %30 = tpu.matmul %28, %29, %cst_15 {dimension_numbers = #tpu.dot_dimension_numbers<[1], [0], [0], [1], [0, 0, 1, 1], [], []>, precision = #tpu.contract_precision<fp32>} : vector<16x8xf32>, vector<8x16xf32>, vector<16x16xf32> -> vector<16x16xf32>
    %c0_16 = arith.constant 0 : index
    %c0_17 = arith.constant 0 : index
    %31 = vector.load %arg4[%c0_16, %c0_17] : memref<16x16xf32, #tpu.memory_space<vmem>>, vector<16x16xf32>
    %32 = arith.addf %30, %31 : vector<16x16xf32>
    %cst_18 = arith.constant dense<0xFF800000> : vector<16xf32>
    %33 = vector.multi_reduction <maximumf>, %32, %cst_18 [1] : vector<16x16xf32> to vector<16xf32>
    %34 = vector.shape_cast %33 : vector<16xf32> to vector<16x1xf32>
    %35 = vector.broadcast %34 : vector<16x1xf32> to vector<16x16xf32>
    %36 = arith.subf %32, %35 : vector<16x16xf32>
    %37 = math.exp %36 : vector<16x16xf32>
    %cst_19 = arith.constant dense<0.000000e+00> : vector<16xf32>
    %38 = vector.multi_reduction <add>, %37, %cst_19 [1] : vector<16x16xf32> to vector<16xf32>
    %39 = vector.shape_cast %38 : vector<16xf32> to vector<16x1xf32>
    %40 = tpu.reciprocal %39 {approx = true} : vector<16x1xf32> -> vector<16x1xf32>
    %41 = vector.broadcast %40 : vector<16x1xf32> to vector<16x16xf32>
    %42 = arith.mulf %37, %41 : vector<16x16xf32>
    %c0_20 = arith.constant 0 : index
    %c0_21 = arith.constant 0 : index
    %43 = vector.load %arg3[%c0_20, %c0_21] : memref<1x4xf32, #tpu.memory_space<vmem>>, vector<1x1xf32>
    %cst_22 = arith.constant 1.000000e+00 : f32
    %44 = vector.broadcast %cst_22 : f32 to vector<1x1xf32>
    %45 = arith.subf %44, %43 : vector<1x1xf32>
    %46 = vector.broadcast %45 : vector<1x1xf32> to vector<16x16xf32>
    %47 = arith.mulf %46, %26 : vector<16x16xf32>
    %48 = vector.broadcast %43 : vector<1x1xf32> to vector<16x16xf32>
    %49 = arith.mulf %48, %42 : vector<16x16xf32>
    %50 = arith.addf %47, %49 : vector<16x16xf32>
    %cst_23 = arith.constant dense<0.000000e+00> : vector<16xf32>
    %51 = vector.multi_reduction <add>, %50, %cst_23 [1] : vector<16x16xf32> to vector<16xf32>
    %52 = vector.shape_cast %51 : vector<16xf32> to vector<16x1xf32>
    %53 = tpu.reciprocal %52 {approx = true} : vector<16x1xf32> -> vector<16x1xf32>
    %54 = vector.broadcast %53 : vector<16x1xf32> to vector<16x16xf32>
    %55 = arith.mulf %50, %54 : vector<16x16xf32>
    %c0_24 = arith.constant 0 : index
    %c0_25 = arith.constant 0 : index
    %56 = vector.load %arg6[%c0_24, %c0_25] : memref<16x8xf32, #tpu.memory_space<vmem>>, vector<16x8xf32>
    %cst_26 = arith.constant dense<0.000000e+00> : vector<16x8xf32>
    %57 = tpu.matmul %55, %56, %cst_26 {dimension_numbers = #tpu.dot_dimension_numbers<[1], [0], [0], [1], [0, 0, 1, 1], [], []>, precision = #tpu.contract_precision<fp32>} : vector<16x16xf32>, vector<16x8xf32>, vector<16x8xf32> -> vector<16x8xf32>
    %58 = arith.index_cast %7 : i32 to index
    %c0_27 = arith.constant 0 : index
    %59 = vector.load %arg11[%58, %c0_27] : memref<16x32xf32, #tpu.memory_space<vmem>>, vector<16x8xf32>
    tpu.vector_store %arg11[%58, %c0_27], %57 {strides = array<i32>} : memref<16x32xf32, #tpu.memory_space<vmem>>, vector<16x8xf32>,
    %cst_28 = arith.constant dense<0.000000e+00> : vector<16x8xf32>
    %60 = tpu.matmul %55, %13, %cst_28 {dimension_numbers = #tpu.dot_dimension_numbers<[1], [0], [0], [1], [0, 0, 1, 1], [], []>} : vector<16x16xf32>, vector<16x8xf32>, vector<16x8xf32> -> vector<16x8xf32>
    %61 = arith.index_cast %7 : i32 to index
    %c0_29 = arith.constant 0 : index
    %62 = vector.load %arg13[%61, %c0_29] : memref<16x32xf32, #tpu.memory_space<vmem>>, vector<16x8xf32>
    tpu.vector_store %arg13[%61, %c0_29], %60 {strides = array<i32>} : memref<16x32xf32, #tpu.memory_space<vmem>>, vector<16x8xf32>,
    %63 = arith.index_cast %7 : i32 to index
    %c8 = arith.constant 8 : index
    %64 = vector.load %arg12[%63, %c8] : memref<16x96xf32, #tpu.memory_space<vmem>>, vector<16x8xf32>
    %65 = arith.index_cast %7 : i32 to index
    %c40 = arith.constant 40 : index
    %66 = vector.load %arg12[%65, %c40] : memref<16x96xf32, #tpu.memory_space<vmem>>, vector<16x8xf32>
    %67 = arith.index_cast %7 : i32 to index
    %c72 = arith.constant 72 : index
    %68 = vector.load %arg12[%67, %c72] : memref<16x96xf32, #tpu.memory_space<vmem>>, vector<16x8xf32>
    "tpu.trace_start"() <{level = 10 : i32, message = "td,sd->ts"}> : () -> ()
    %cst_30 = arith.constant dense<0.000000e+00> : vector<16x16xf32>
    %69 = tpu.matmul %64, %66, %cst_30 {dimension_numbers = #tpu.dot_dimension_numbers<[1], [1], [0], [0], [0, 0, 1, 0], [], []>} : vector<16x8xf32>, vector<16x8xf32>, vector<16x16xf32> -> vector<16x16xf32>
    "tpu.trace_stop"() : () -> ()
    %c0_31 = arith.constant 0 : index
    %c0_32 = arith.constant 0 : index
    %70 = vector.load %arg4[%c0_31, %c0_32] : memref<16x16xf32, #tpu.memory_space<vmem>>, vector<16x16xf32>
    %71 = arith.addf %69, %70 : vector<16x16xf32>
    %cst_33 = arith.constant dense<0xFF800000> : vector<16xf32>
    %72 = vector.multi_reduction <maximumf>, %71, %cst_33 [1] : vector<16x16xf32> to vector<16xf32>
    %73 = vector.shape_cast %72 : vector<16xf32> to vector<16x1xf32>
    %74 = vector.broadcast %73 : vector<16x1xf32> to vector<16x16xf32>
    %75 = arith.subf %71, %74 : vector<16x16xf32>
    %76 = math.exp %75 : vector<16x16xf32>
    %cst_34 = arith.constant dense<0.000000e+00> : vector<16xf32>
    %77 = vector.multi_reduction <add>, %76, %cst_34 [1] : vector<16x16xf32> to vector<16xf32>
    %78 = vector.shape_cast %77 : vector<16xf32> to vector<16x1xf32>
    %79 = tpu.reciprocal %78 {approx = true} : vector<16x1xf32> -> vector<16x1xf32>
    %80 = vector.broadcast %79 : vector<16x1xf32> to vector<16x16xf32>
    %81 = arith.mulf %76, %80 : vector<16x16xf32>
    %82 = arith.index_cast %7 : i32 to index
    %c8_35 = arith.constant 8 : index
    %83 = vector.load %arg2[%82, %c8_35] : memref<16x32xf32, #tpu.memory_space<vmem>>, vector<16x8xf32>
    %c0_36 = arith.constant 0 : index
    %c0_37 = arith.constant 0 : index
    %84 = vector.load %arg5[%c0_36, %c0_37] : memref<8x16xf32, #tpu.memory_space<vmem>>, vector<8x16xf32>
    %cst_38 = arith.constant dense<0.000000e+00> : vector<16x16xf32>
    %85 = tpu.matmul %83, %84, %cst_38 {dimension_numbers = #tpu.dot_dimension_numbers<[1], [0], [0], [1], [0, 0, 1, 1], [], []>, precision = #tpu.contract_precision<fp32>} : vector<16x8xf32>, vector<8x16xf32>, vector<16x16xf32> -> vector<16x16xf32>
    %c0_39 = arith.constant 0 : index
    %c0_40 = arith.constant 0 : index
    %86 = vector.load %arg4[%c0_39, %c0_40] : memref<16x16xf32, #tpu.memory_space<vmem>>, vector<16x16xf32>
    %87 = arith.addf %85, %86 : vector<16x16xf32>
    %cst_41 = arith.constant dense<0xFF800000> : vector<16xf32>
    %88 = vector.multi_reduction <maximumf>, %87, %cst_41 [1] : vector<16x16xf32> to vector<16xf32>
    %89 = vector.shape_cast %88 : vector<16xf32> to vector<16x1xf32>
    %90 = vector.broadcast %89 : vector<16x1xf32> to vector<16x16xf32>
    %91 = arith.subf %87, %90 : vector<16x16xf32>
    %92 = math.exp %91 : vector<16x16xf32>
    %cst_42 = arith.constant dense<0.000000e+00> : vector<16xf32>
    %93 = vector.multi_reduction <add>, %92, %cst_42 [1] : vector<16x16xf32> to vector<16xf32>
    %94 = vector.shape_cast %93 : vector<16xf32> to vector<16x1xf32>
    %95 = tpu.reciprocal %94 {approx = true} : vector<16x1xf32> -> vector<16x1xf32>
    %96 = vector.broadcast %95 : vector<16x1xf32> to vector<16x16xf32>
    %97 = arith.mulf %92, %96 : vector<16x16xf32>
    %c0_43 = arith.constant 0 : index
    %c1 = arith.constant 1 : index
    %98 = vector.load %arg3[%c0_43, %c1] : memref<1x4xf32, #tpu.memory_space<vmem>>, vector<1x1xf32>
    %cst_44 = arith.constant 1.000000e+00 : f32
    %99 = vector.broadcast %cst_44 : f32 to vector<1x1xf32>
    %100 = arith.subf %99, %98 : vector<1x1xf32>
    %101 = vector.broadcast %100 : vector<1x1xf32> to vector<16x16xf32>
    %102 = arith.mulf %101, %81 : vector<16x16xf32>
    %103 = vector.broadcast %98 : vector<1x1xf32> to vector<16x16xf32>
    %104 = arith.mulf %103, %97 : vector<16x16xf32>
    %105 = arith.addf %102, %104 : vector<16x16xf32>
    %cst_45 = arith.constant dense<0.000000e+00> : vector<16xf32>
    %106 = vector.multi_reduction <add>, %105, %cst_45 [1] : vector<16x16xf32> to vector<16xf32>
    %107 = vector.shape_cast %106 : vector<16xf32> to vector<16x1xf32>
    %108 = tpu.reciprocal %107 {approx = true} : vector<16x1xf32> -> vector<16x1xf32>
    %109 = vector.broadcast %108 : vector<16x1xf32> to vector<16x16xf32>
    %110 = arith.mulf %105, %109 : vector<16x16xf32>
    %c0_46 = arith.constant 0 : index
    %c0_47 = arith.constant 0 : index
    %111 = vector.load %arg6[%c0_46, %c0_47] : memref<16x8xf32, #tpu.memory_space<vmem>>, vector<16x8xf32>
    %cst_48 = arith.constant dense<0.000000e+00> : vector<16x8xf32>
    %112 = tpu.matmul %110, %111, %cst_48 {dimension_numbers = #tpu.dot_dimension_numbers<[1], [0], [0], [1], [0, 0, 1, 1], [], []>, precision = #tpu.contract_precision<fp32>} : vector<16x16xf32>, vector<16x8xf32>, vector<16x8xf32> -> vector<16x8xf32>
    %113 = arith.index_cast %7 : i32 to index
    %c8_49 = arith.constant 8 : index
    %114 = vector.load %arg11[%113, %c8_49] : memref<16x32xf32, #tpu.memory_space<vmem>>, vector<16x8xf32>
    tpu.vector_store %arg11[%113, %c8_49], %112 {strides = array<i32>} : memref<16x32xf32, #tpu.memory_space<vmem>>, vector<16x8xf32>,
    %cst_50 = arith.constant dense<0.000000e+00> : vector<16x8xf32>
    %115 = tpu.matmul %110, %68, %cst_50 {dimension_numbers = #tpu.dot_dimension_numbers<[1], [0], [0], [1], [0, 0, 1, 1], [], []>} : vector<16x16xf32>, vector<16x8xf32>, vector<16x8xf32> -> vector<16x8xf32>
    %116 = arith.index_cast %7 : i32 to index
    %c8_51 = arith.constant 8 : index
    %117 = vector.load %arg13[%116, %c8_51] : memref<16x32xf32, #tpu.memory_space<vmem>>, vector<16x8xf32>
    tpu.vector_store %arg13[%116, %c8_51], %115 {strides = array<i32>} : memref<16x32xf32, #tpu.memory_space<vmem>>, vector<16x8xf32>,
    %118 = arith.index_cast %7 : i32 to index
    %c16 = arith.constant 16 : index
    %119 = vector.load %arg12[%118, %c16] : memref<16x96xf32, #tpu.memory_space<vmem>>, vector<16x8xf32>
    %120 = arith.index_cast %7 : i32 to index
    %c48 = arith.constant 48 : index
    %121 = vector.load %arg12[%120, %c48] : memref<16x96xf32, #tpu.memory_space<vmem>>, vector<16x8xf32>
    %122 = arith.index_cast %7 : i32 to index
    %c80 = arith.constant 80 : index
    %123 = vector.load %arg12[%122, %c80] : memref<16x96xf32, #tpu.memory_space<vmem>>, vector<16x8xf32>
    "tpu.trace_start"() <{level = 10 : i32, message = "td,sd->ts"}> : () -> ()
    %cst_52 = arith.constant dense<0.000000e+00> : vector<16x16xf32>
    %124 = tpu.matmul %119, %121, %cst_52 {dimension_numbers = #tpu.dot_dimension_numbers<[1], [1], [0], [0], [0, 0, 1, 0], [], []>} : vector<16x8xf32>, vector<16x8xf32>, vector<16x16xf32> -> vector<16x16xf32>
    "tpu.trace_stop"() : () -> ()
    %c0_53 = arith.constant 0 : index
    %c0_54 = arith.constant 0 : index
    %125 = vector.load %arg4[%c0_53, %c0_54] : memref<16x16xf32, #tpu.memory_space<vmem>>, vector<16x16xf32>
    %126 = arith.addf %124, %125 : vector<16x16xf32>
    %cst_55 = arith.constant dense<0xFF800000> : vector<16xf32>
    %127 = vector.multi_reduction <maximumf>, %126, %cst_55 [1] : vector<16x16xf32> to vector<16xf32>
    %128 = vector.shape_cast %127 : vector<16xf32> to vector<16x1xf32>
    %129 = vector.broadcast %128 : vector<16x1xf32> to vector<16x16xf32>
    %130 = arith.subf %126, %129 : vector<16x16xf32>
    %131 = math.exp %130 : vector<16x16xf32>
    %cst_56 = arith.constant dense<0.000000e+00> : vector<16xf32>
    %132 = vector.multi_reduction <add>, %131, %cst_56 [1] : vector<16x16xf32> to vector<16xf32>
    %133 = vector.shape_cast %132 : vector<16xf32> to vector<16x1xf32>
    %134 = tpu.reciprocal %133 {approx = true} : vector<16x1xf32> -> vector<16x1xf32>
    %135 = vector.broadcast %134 : vector<16x1xf32> to vector<16x16xf32>
    %136 = arith.mulf %131, %135 : vector<16x16xf32>
    %137 = arith.index_cast %7 : i32 to index
    %c16_57 = arith.constant 16 : index
    %138 = vector.load %arg2[%137, %c16_57] : memref<16x32xf32, #tpu.memory_space<vmem>>, vector<16x8xf32>
    %c0_58 = arith.constant 0 : index
    %c0_59 = arith.constant 0 : index
    %139 = vector.load %arg5[%c0_58, %c0_59] : memref<8x16xf32, #tpu.memory_space<vmem>>, vector<8x16xf32>
    %cst_60 = arith.constant dense<0.000000e+00> : vector<16x16xf32>
    %140 = tpu.matmul %138, %139, %cst_60 {dimension_numbers = #tpu.dot_dimension_numbers<[1], [0], [0], [1], [0, 0, 1, 1], [], []>, precision = #tpu.contract_precision<fp32>} : vector<16x8xf32>, vector<8x16xf32>, vector<16x16xf32> -> vector<16x16xf32>
    %c0_61 = arith.constant 0 : index
    %c0_62 = arith.constant 0 : index
    %141 = vector.load %arg4[%c0_61, %c0_62] : memref<16x16xf32, #tpu.memory_space<vmem>>, vector<16x16xf32>
    %142 = arith.addf %140, %141 : vector<16x16xf32>
    %cst_63 = arith.constant dense<0xFF800000> : vector<16xf32>
    %143 = vector.multi_reduction <maximumf>, %142, %cst_63 [1] : vector<16x16xf32> to vector<16xf32>
    %144 = vector.shape_cast %143 : vector<16xf32> to vector<16x1xf32>
    %145 = vector.broadcast %144 : vector<16x1xf32> to vector<16x16xf32>
    %146 = arith.subf %142, %145 : vector<16x16xf32>
    %147 = math.exp %146 : vector<16x16xf32>
    %cst_64 = arith.constant dense<0.000000e+00> : vector<16xf32>
    %148 = vector.multi_reduction <add>, %147, %cst_64 [1] : vector<16x16xf32> to vector<16xf32>
    %149 = vector.shape_cast %148 : vector<16xf32> to vector<16x1xf32>
    %150 = tpu.reciprocal %149 {approx = true} : vector<16x1xf32> -> vector<16x1xf32>
    %151 = vector.broadcast %150 : vector<16x1xf32> to vector<16x16xf32>
    %152 = arith.mulf %147, %151 : vector<16x16xf32>
    %c0_65 = arith.constant 0 : index
    %c2 = arith.constant 2 : index
    %153 = vector.load %arg3[%c0_65, %c2] : memref<1x4xf32, #tpu.memory_space<vmem>>, vector<1x1xf32>
    %cst_66 = arith.constant 1.000000e+00 : f32
    %154 = vector.broadcast %cst_66 : f32 to vector<1x1xf32>
    %155 = arith.subf %154, %153 : vector<1x1xf32>
    %156 = vector.broadcast %155 : vector<1x1xf32> to vector<16x16xf32>
    %157 = arith.mulf %156, %136 : vector<16x16xf32>
    %158 = vector.broadcast %153 : vector<1x1xf32> to vector<16x16xf32>
    %159 = arith.mulf %158, %152 : vector<16x16xf32>
    %160 = arith.addf %157, %159 : vector<16x16xf32>
    %cst_67 = arith.constant dense<0.000000e+00> : vector<16xf32>
    %161 = vector.multi_reduction <add>, %160, %cst_67 [1] : vector<16x16xf32> to vector<16xf32>
    %162 = vector.shape_cast %161 : vector<16xf32> to vector<16x1xf32>
    %163 = tpu.reciprocal %162 {approx = true} : vector<16x1xf32> -> vector<16x1xf32>
    %164 = vector.broadcast %163 : vector<16x1xf32> to vector<16x16xf32>
    %165 = arith.mulf %160, %164 : vector<16x16xf32>
    %c0_68 = arith.constant 0 : index
    %c0_69 = arith.constant 0 : index
    %166 = vector.load %arg6[%c0_68, %c0_69] : memref<16x8xf32, #tpu.memory_space<vmem>>, vector<16x8xf32>
    %cst_70 = arith.constant dense<0.000000e+00> : vector<16x8xf32>
    %167 = tpu.matmul %165, %166, %cst_70 {dimension_numbers = #tpu.dot_dimension_numbers<[1], [0], [0], [1], [0, 0, 1, 1], [], []>, precision = #tpu.contract_precision<fp32>} : vector<16x16xf32>, vector<16x8xf32>, vector<16x8xf32> -> vector<16x8xf32>
    %168 = arith.index_cast %7 : i32 to index
    %c16_71 = arith.constant 16 : index
    %169 = vector.load %arg11[%168, %c16_71] : memref<16x32xf32, #tpu.memory_space<vmem>>, vector<16x8xf32>
    tpu.vector_store %arg11[%168, %c16_71], %167 {strides = array<i32>} : memref<16x32xf32, #tpu.memory_space<vmem>>, vector<16x8xf32>,
    %cst_72 = arith.constant dense<0.000000e+00> : vector<16x8xf32>
    %170 = tpu.matmul %165, %123, %cst_72 {dimension_numbers = #tpu.dot_dimension_numbers<[1], [0], [0], [1], [0, 0, 1, 1], [], []>} : vector<16x16xf32>, vector<16x8xf32>, vector<16x8xf32> -> vector<16x8xf32>
    %171 = arith.index_cast %7 : i32 to index
    %c16_73 = arith.constant 16 : index
    %172 = vector.load %arg13[%171, %c16_73] : memref<16x32xf32, #tpu.memory_space<vmem>>, vector<16x8xf32>
    tpu.vector_store %arg13[%171, %c16_73], %170 {strides = array<i32>} : memref<16x32xf32, #tpu.memory_space<vmem>>, vector<16x8xf32>,
    %173 = arith.index_cast %7 : i32 to index
    %c24 = arith.constant 24 : index
    %174 = vector.load %arg12[%173, %c24] : memref<16x96xf32, #tpu.memory_space<vmem>>, vector<16x8xf32>
    %175 = arith.index_cast %7 : i32 to index
    %c56 = arith.constant 56 : index
    %176 = vector.load %arg12[%175, %c56] : memref<16x96xf32, #tpu.memory_space<vmem>>, vector<16x8xf32>
    %177 = arith.index_cast %7 : i32 to index
    %c88 = arith.constant 88 : index
    %178 = vector.load %arg12[%177, %c88] : memref<16x96xf32, #tpu.memory_space<vmem>>, vector<16x8xf32>
    "tpu.trace_start"() <{level = 10 : i32, message = "td,sd->ts"}> : () -> ()
    %cst_74 = arith.constant dense<0.000000e+00> : vector<16x16xf32>
    %179 = tpu.matmul %174, %176, %cst_74 {dimension_numbers = #tpu.dot_dimension_numbers<[1], [1], [0], [0], [0, 0, 1, 0], [], []>} : vector<16x8xf32>, vector<16x8xf32>, vector<16x16xf32> -> vector<16x16xf32>
    "tpu.trace_stop"() : () -> ()
    %c0_75 = arith.constant 0 : index
    %c0_76 = arith.constant 0 : index
    %180 = vector.load %arg4[%c0_75, %c0_76] : memref<16x16xf32, #tpu.memory_space<vmem>>, vector<16x16xf32>
    %181 = arith.addf %179, %180 : vector<16x16xf32>
    %cst_77 = arith.constant dense<0xFF800000> : vector<16xf32>
    %182 = vector.multi_reduction <maximumf>, %181, %cst_77 [1] : vector<16x16xf32> to vector<16xf32>
    %183 = vector.shape_cast %182 : vector<16xf32> to vector<16x1xf32>
    %184 = vector.broadcast %183 : vector<16x1xf32> to vector<16x16xf32>
    %185 = arith.subf %181, %184 : vector<16x16xf32>
    %186 = math.exp %185 : vector<16x16xf32>
    %cst_78 = arith.constant dense<0.000000e+00> : vector<16xf32>
    %187 = vector.multi_reduction <add>, %186, %cst_78 [1] : vector<16x16xf32> to vector<16xf32>
    %188 = vector.shape_cast %187 : vector<16xf32> to vector<16x1xf32>
    %189 = tpu.reciprocal %188 {approx = true} : vector<16x1xf32> -> vector<16x1xf32>
    %190 = vector.broadcast %189 : vector<16x1xf32> to vector<16x16xf32>
    %191 = arith.mulf %186, %190 : vector<16x16xf32>
    %192 = arith.index_cast %7 : i32 to index
    %c24_79 = arith.constant 24 : index
    %193 = vector.load %arg2[%192, %c24_79] : memref<16x32xf32, #tpu.memory_space<vmem>>, vector<16x8xf32>
    %c0_80 = arith.constant 0 : index
    %c0_81 = arith.constant 0 : index
    %194 = vector.load %arg5[%c0_80, %c0_81] : memref<8x16xf32, #tpu.memory_space<vmem>>, vector<8x16xf32>
    %cst_82 = arith.constant dense<0.000000e+00> : vector<16x16xf32>
    %195 = tpu.matmul %193, %194, %cst_82 {dimension_numbers = #tpu.dot_dimension_numbers<[1], [0], [0], [1], [0, 0, 1, 1], [], []>, precision = #tpu.contract_precision<fp32>} : vector<16x8xf32>, vector<8x16xf32>, vector<16x16xf32> -> vector<16x16xf32>
    %c0_83 = arith.constant 0 : index
    %c0_84 = arith.constant 0 : index
    %196 = vector.load %arg4[%c0_83, %c0_84] : memref<16x16xf32, #tpu.memory_space<vmem>>, vector<16x16xf32>
    %197 = arith.addf %195, %196 : vector<16x16xf32>
    %cst_85 = arith.constant dense<0xFF800000> : vector<16xf32>
    %198 = vector.multi_reduction <maximumf>, %197, %cst_85 [1] : vector<16x16xf32> to vector<16xf32>
    %199 = vector.shape_cast %198 : vector<16xf32> to vector<16x1xf32>
    %200 = vector.broadcast %199 : vector<16x1xf32> to vector<16x16xf32>
    %201 = arith.subf %197, %200 : vector<16x16xf32>
    %202 = math.exp %201 : vector<16x16xf32>
    %cst_86 = arith.constant dense<0.000000e+00> : vector<16xf32>
    %203 = vector.multi_reduction <add>, %202, %cst_86 [1] : vector<16x16xf32> to vector<16xf32>
    %204 = vector.shape_cast %203 : vector<16xf32> to vector<16x1xf32>
    %205 = tpu.reciprocal %204 {approx = true} : vector<16x1xf32> -> vector<16x1xf32>
    %206 = vector.broadcast %205 : vector<16x1xf32> to vector<16x16xf32>
    %207 = arith.mulf %202, %206 : vector<16x16xf32>
    %c0_87 = arith.constant 0 : index
    %c3 = arith.constant 3 : index
    %208 = vector.load %arg3[%c0_87, %c3] : memref<1x4xf32, #tpu.memory_space<vmem>>, vector<1x1xf32>
    %cst_88 = arith.constant 1.000000e+00 : f32
    %209 = vector.broadcast %cst_88 : f32 to vector<1x1xf32>
    %210 = arith.subf %209, %208 : vector<1x1xf32>
    %211 = vector.broadcast %210 : vector<1x1xf32> to vector<16x16xf32>
    %212 = arith.mulf %211, %191 : vector<16x16xf32>
    %213 = vector.broadcast %208 : vector<1x1xf32> to vector<16x16xf32>
    %214 = arith.mulf %213, %207 : vector<16x16xf32>
    %215 = arith.addf %212, %214 : vector<16x16xf32>
    %cst_89 = arith.constant dense<0.000000e+00> : vector<16xf32>
    %216 = vector.multi_reduction <add>, %215, %cst_89 [1] : vector<16x16xf32> to vector<16xf32>
    %217 = vector.shape_cast %216 : vector<16xf32> to vector<16x1xf32>
    %218 = tpu.reciprocal %217 {approx = true} : vector<16x1xf32> -> vector<16x1xf32>
    %219 = vector.broadcast %218 : vector<16x1xf32> to vector<16x16xf32>
    %220 = arith.mulf %215, %219 : vector<16x16xf32>
    %c0_90 = arith.constant 0 : index
    %c0_91 = arith.constant 0 : index
    %221 = vector.load %arg6[%c0_90, %c0_91] : memref<16x8xf32, #tpu.memory_space<vmem>>, vector<16x8xf32>
    %cst_92 = arith.constant dense<0.000000e+00> : vector<16x8xf32>
    %222 = tpu.matmul %220, %221, %cst_92 {dimension_numbers = #tpu.dot_dimension_numbers<[1], [0], [0], [1], [0, 0, 1, 1], [], []>, precision = #tpu.contract_precision<fp32>} : vector<16x16xf32>, vector<16x8xf32>, vector<16x8xf32> -> vector<16x8xf32>
    %223 = arith.index_cast %7 : i32 to index
    %c24_93 = arith.constant 24 : index
    %224 = vector.load %arg11[%223, %c24_93] : memref<16x32xf32, #tpu.memory_space<vmem>>, vector<16x8xf32>
    tpu.vector_store %arg11[%223, %c24_93], %222 {strides = array<i32>} : memref<16x32xf32, #tpu.memory_space<vmem>>, vector<16x8xf32>,
    %cst_94 = arith.constant dense<0.000000e+00> : vector<16x8xf32>
    %225 = tpu.matmul %220, %178, %cst_94 {dimension_numbers = #tpu.dot_dimension_numbers<[1], [0], [0], [1], [0, 0, 1, 1], [], []>} : vector<16x16xf32>, vector<16x8xf32>, vector<16x8xf32> -> vector<16x8xf32>
    %226 = arith.index_cast %7 : i32 to index
    %c24_95 = arith.constant 24 : index
    %227 = vector.load %arg13[%226, %c24_95] : memref<16x32xf32, #tpu.memory_space<vmem>>, vector<16x8xf32>
    tpu.vector_store %arg13[%226, %c24_95], %225 {strides = array<i32>} : memref<16x32xf32, #tpu.memory_space<vmem>>, vector<16x8xf32>,
    %c1_i32_96 = arith.constant 1 : i32
    %c0_97 = arith.constant 0 : index
    %c0_98 = arith.constant 0 : index
    %228 = vector.load %arg13[%c0_97, %c0_98] : memref<16x32xf32, #tpu.memory_space<vmem>>, vector<16x32xf32>
    %c0_99 = arith.constant 0 : index
    %c0_100 = arith.constant 0 : index
    %229 = vector.load %arg8[%c0_99, %c0_100] : memref<32x32xf32, #tpu.memory_space<vmem>>, vector<32x32xf32>
    %cst_101 = arith.constant dense<0.000000e+00> : vector<16x32xf32>
    %230 = tpu.matmul %228, %229, %cst_101 {dimension_numbers = #tpu.dot_dimension_numbers<[1], [0], [0], [1], [0, 0, 1, 1], [], []>} : vector<16x32xf32>, vector<32x32xf32>, vector<16x32xf32> -> vector<16x32xf32>
    %c0_102 = arith.constant 0 : index
    %c0_103 = arith.constant 0 : index
    %231 = vector.load %arg9[%c0_102, %c0_103] : memref<1x32xf32, #tpu.memory_space<vmem>>, vector<1x32xf32>
    %232 = vector.broadcast %231 : vector<1x32xf32> to vector<16x32xf32>
    %233 = arith.addf %230, %232 : vector<16x32xf32>
    %c0_104 = arith.constant 0 : index
    %c0_105 = arith.constant 0 : index
    %234 = vector.load %arg10[%c0_104, %c0_105] : memref<16x32xf32, #tpu.memory_space<vmem>>, vector<16x32xf32>
    tpu.vector_store %arg10[%c0_104, %c0_105], %233 {strides = array<i32>} : memref<16x32xf32, #tpu.memory_space<vmem>>, vector<16x32xf32>,
    return
  }
  func.func @transform_0(%arg0: i32) -> (i32, i32) {
    %c0_i32 = arith.constant 0 : i32
    %c0_i32_0 = arith.constant 0 : i32
    return %arg0, %c0_i32 : i32, i32
  }
  func.func @transform_1(%arg0: i32) -> (i32, i32) {
    %c0_i32 = arith.constant 0 : i32
    %c0_i32_0 = arith.constant 0 : i32
    return %arg0, %c0_i32 : i32, i32
  }
  func.func @transform_2(%arg0: i32) -> (i32, i32) {
    %c0_i32 = arith.constant 0 : i32
    %c0_i32_0 = arith.constant 0 : i32
    %c0_i32_1 = arith.constant 0 : i32
    return %c0_i32, %c0_i32_0 : i32, i32
  }
  func.func @transform_3(%arg0: i32) -> (i32, i32) {
    %c0_i32 = arith.constant 0 : i32
    %c0_i32_0 = arith.constant 0 : i32
    %c0_i32_1 = arith.constant 0 : i32
    return %c0_i32, %c0_i32_0 : i32, i32
  }
  func.func @transform_4(%arg0: i32) -> (i32, i32) {
    %c0_i32 = arith.constant 0 : i32
    %c0_i32_0 = arith.constant 0 : i32
    %c0_i32_1 = arith.constant 0 : i32
    return %c0_i32, %c0_i32_0 : i32, i32
  }
  func.func @transform_5(%arg0: i32) -> (i32, i32) {
    %c0_i32 = arith.constant 0 : i32
    %c0_i32_0 = arith.constant 0 : i32
    %c0_i32_1 = arith.constant 0 : i32
    return %c0_i32, %c0_i32_0 : i32, i32
  }
  func.func @transform_6(%arg0: i32) -> (i32, i32) {
    %c0_i32 = arith.constant 0 : i32
    %c0_i32_0 = arith.constant 0 : i32
    %c0_i32_1 = arith.constant 0 : i32
    return %c0_i32, %c0_i32_0 : i32, i32
  }
  func.func @transform_7(%arg0: i32) -> (i32, i32) {
    %c0_i32 = arith.constant 0 : i32
    %c0_i32_0 = arith.constant 0 : i32
    %c0_i32_1 = arith.constant 0 : i32
    return %c0_i32, %c0_i32_0 : i32, i32
  }
  func.func @transform_8(%arg0: i32) -> (i32, i32) {
    %c0_i32 = arith.constant 0 : i32
    %c0_i32_0 = arith.constant 0 : i32
    %c0_i32_1 = arith.constant 0 : i32
    return %c0_i32, %c0_i32_0 : i32, i32
  }
  func.func @transform_9(%arg0: i32) -> (i32, i32) {
    %c0_i32 = arith.constant 0 : i32
    %c0_i32_0 = arith.constant 0 : i32
    return %arg0, %c0_i32 : i32, i32
  }
  func.func @transform_10(%arg0: i32) -> (i32, i32) {
    %c0_i32 = arith.constant 0 : i32
    %c0_i32_0 = arith.constant 0 : i32
    return %arg0, %c0_i32 : i32, i32
  }
}

</mosaic_0001>

<llo_original>
// kernel: tpu_custom_call.1
$region0: #{tpu_custom_call.1}
  #allocation0 [shape = 'u32[]', space=smem, size = 0x4, offset = 0x4, fixed_abs, tag = 'smem constant byte address 0x4 - core index']
  #allocation1 [shape = 'u32[144,128]{1,0:T(1,128)}', space=vmem, size = 0x12000, scoped, tag = 'internal scratch']
  #allocation2 [shape = 'f32[16,96]{1,0:T(8,128)}', space=vmem, size = 0x2000, scoped, tag = 'scratch operand']
  #allocation3 [shape = 'f32[16,32]{1,0:T(8,128)}', space=vmem, size = 0x2000, scoped, tag = 'scratch operand']
  %s0 = inlined_call_operand.hbm [shape: f32[16,32], index: 0, kind: input, shape index: {}]
  %s1 = inlined_call_operand.hbm [shape: f32[16,32], index: 1, kind: input, shape index: {}]
  %s2 = inlined_call_operand.vmem [shape: f32[1,4], index: 2, kind: input, shape index: {}]
  %s3 = inlined_call_operand.hbm [shape: f32[16,16], index: 3, kind: input, shape index: {}]
  %s4 = inlined_call_operand.vmem [shape: f32[8,16], index: 4, kind: input, shape index: {}]
  %s5 = inlined_call_operand.vmem [shape: f32[16,8], index: 5, kind: input, shape index: {}]
  %s6 = inlined_call_operand.vmem [shape: f32[32,96], index: 6, kind: input, shape index: {}]
  %s7 = inlined_call_operand.hbm [shape: f32[32,32], index: 7, kind: input, shape index: {}]
  %s8 = inlined_call_operand.vmem [shape: f32[1,32], index: 8, kind: input, shape index: {}]
  %s9 = inlined_call_operand.hbm [shape: f32[16,32], index: 9, kind: output, shape index: {0}]
  %s10 = inlined_call_operand.hbm [shape: f32[16,32], index: 10, kind: output, shape index: {1}]
  %11 = xla_tuple %s9, %s10
  %s12 = sld [smem:[#allocation0]]
  $region70: #{tpu_custom_call.1} parent=0
    _
  %s14 = ssub.s32 1, %s12
  %s15 = scalar_select 0, %s14, %s12
  $region1: #{tpu_custom_call.1} parent=0
    #allocation4 [shape = 'u8[8192]{0}', space=vmem, size = 0x2000, scoped, tag = 'input window, operand 0, single buffered']
    #allocation5 [shape = 's32[1]{0}', space=sflag, size = 0x4, scoped, tag = 'scoped memory for tpu_custom_call.1']
    #allocation6 [shape = 's32[1]{0}', space=sflag, size = 0x4, scoped, tag = 'scoped memory for tpu_custom_call.1']
    #allocation7 [shape = 'u8[8192]{0}', space=vmem, size = 0x2000, scoped, tag = 'input window, operand 1, single buffered']
    #allocation8 [shape = 's32[1]{0}', space=sflag, size = 0x4, scoped, tag = 'scoped memory for tpu_custom_call.1']
    #allocation9 [shape = 'u8[8192]{0}', space=vmem, size = 0x2000, scoped, tag = 'input window, operand 3, single buffered']
    #allocation10 [shape = 'u8[16384]{0}', space=vmem, size = 0x4000, scoped, tag = 'input window, operand 7, single buffered']
    #allocation11 [shape = 's32[1]{0}', space=sflag, size = 0x4, scoped, tag = 'scoped memory for tpu_custom_call.1']
    #allocation12 [shape = 'u8[8192]{0}', space=vmem, size = 0x2000, scoped, tag = 'output window, operand 0, single buffered']
    #allocation13 [shape = 'u8[8192]{0}', space=vmem, size = 0x2000, scoped, tag = 'output window, operand 1, single buffered']
    #allocation14 [shape = 's32[1]{0}', space=sflag, size = 0x4, scoped, tag = 'scoped memory for tpu_custom_call.1']
    %16 = vsyncpa [#allocation5], 0
    %17 = vsyncpa [#allocation8], 0
    %18 = vsyncpa [#allocation11], 0
    %19 = vsyncpa [#allocation6], 0
    %20 = vsyncpa [#allocation14], 0
    // Predicated region
    $region2: #{tpu_custom_call.1} parent=1 // pred_check
      _
    $region3: #{tpu_custom_call.1} parent=1 // pred_check_branch
      %22 = sbr.rel (0) target = $region5
    $region4: #{tpu_custom_call.1} parent=1 // pred_region
      %s24 = ssub.s32 256, 256
      %25 = vsyncadd [#allocation5], %s24
      %s26 = sshll.u32 [#allocation4], 4
      %s27 = int_to_ptr.vmem [resolvable:$true] %s26
      %32 = dma.hbm_to_vmem [thread:$0]  %s0, 256, %s27, [#allocation5], 128, 128, 8
    $region5: #{tpu_custom_call.1} parent=1 // pred_fallthru
      _
    // Predicated region
    $region6: #{tpu_custom_call.1} parent=1 // pred_check
      _
    $region7: #{tpu_custom_call.1} parent=1 // pred_check_branch
      %34 = sbr.rel (0) target = $region9
    $region8: #{tpu_custom_call.1} parent=1 // pred_region
      %s36 = ssub.s32 256, 256
      %37 = vsyncadd [#allocation8], %s36
      %s38 = sshll.u32 [#allocation7], 4
      %s39 = int_to_ptr.vmem [resolvable:$true] %s38
      %44 = dma.hbm_to_vmem [thread:$0]  %s1, 256, %s39, [#allocation8], 128, 128, 8
    $region9: #{tpu_custom_call.1} parent=1 // pred_fallthru
      _
    // Predicated region
    $region10: #{tpu_custom_call.1} parent=1 // pred_check
      _
    $region11: #{tpu_custom_call.1} parent=1 // pred_check_branch
      %46 = sbr.rel (0) target = $region13
    $region12: #{tpu_custom_call.1} parent=1 // pred_region
      _
    $region13: #{tpu_custom_call.1} parent=1 // pred_fallthru
      _
    // Predicated region
    $region14: #{tpu_custom_call.1} parent=1 // pred_check
      _
    $region15: #{tpu_custom_call.1} parent=1 // pred_check_branch
      %48 = sbr.rel (0) target = $region17
    $region16: #{tpu_custom_call.1} parent=1 // pred_region
      %s50 = ssub.s32 256, 256
      %51 = vsyncadd [#allocation8], %s50
      %s52 = sshll.u32 [#allocation9], 4
      %s53 = int_to_ptr.vmem [resolvable:$true] %s52
      %58 = dma.hbm_to_vmem [thread:$0]  %s3, 256, %s53, [#allocation8], 128, 128, 8
    $region17: #{tpu_custom_call.1} parent=1 // pred_fallthru
      _
    // Predicated region
    $region18: #{tpu_custom_call.1} parent=1 // pred_check
      _
    $region19: #{tpu_custom_call.1} parent=1 // pred_check_branch
      %60 = sbr.rel (0) target = $region21
    $region20: #{tpu_custom_call.1} parent=1 // pred_region
      _
    $region21: #{tpu_custom_call.1} parent=1 // pred_fallthru
      _
    // Predicated region
    $region22: #{tpu_custom_call.1} parent=1 // pred_check
      _
    $region23: #{tpu_custom_call.1} parent=1 // pred_check_branch
      %62 = sbr.rel (0) target = $region25
    $region24: #{tpu_custom_call.1} parent=1 // pred_region
      _
    $region25: #{tpu_custom_call.1} parent=1 // pred_fallthru
      _
    // Predicated region
    $region26: #{tpu_custom_call.1} parent=1 // pred_check
      _
    $region27: #{tpu_custom_call.1} parent=1 // pred_check_branch
      %64 = sbr.rel (0) target = $region29
    $region28: #{tpu_custom_call.1} parent=1 // pred_region
      _
    $region29: #{tpu_custom_call.1} parent=1 // pred_fallthru
      _
    // Predicated region
    $region30: #{tpu_custom_call.1} parent=1 // pred_check
      _
    $region31: #{tpu_custom_call.1} parent=1 // pred_check_branch
      %66 = sbr.rel (0) target = $region33
    $region32: #{tpu_custom_call.1} parent=1 // pred_region
      %s68 = ssub.s32 512, 512
      %69 = vsyncadd [#allocation11], %s68
      %s70 = sshll.u32 [#allocation10], 4
      %s71 = int_to_ptr.vmem [resolvable:$true] %s70
      %76 = dma.hbm_to_vmem [thread:$0]  %s7, 512, %s71, [#allocation11], 128, 128, 8
    $region33: #{tpu_custom_call.1} parent=1 // pred_fallthru
      _
    // Predicated region
    $region34: #{tpu_custom_call.1} parent=1 // pred_check
      _
    $region35: #{tpu_custom_call.1} parent=1 // pred_check_branch
      %78 = sbr.rel (0) target = $region37
    $region36: #{tpu_custom_call.1} parent=1 // pred_region
      _
    $region37: #{tpu_custom_call.1} parent=1 // pred_fallthru
      _
    // Predicated region
    $region38: #{tpu_custom_call.1} parent=1 // pred_check
      _
    $region39: #{tpu_custom_call.1} parent=1 // pred_check_branch
      %80 = sbr.rel (0) target = $region41
    $region40: #{tpu_custom_call.1} parent=1 // pred_region
      %81 = dma.done [#allocation5], 256
    $region41: #{tpu_custom_call.1} parent=1 // pred_fallthru
      _
    // Predicated region
    $region42: #{tpu_custom_call.1} parent=1 // pred_check
      _
    $region43: #{tpu_custom_call.1} parent=1 // pred_check_branch
      %83 = sbr.rel (0) target = $region45
    $region44: #{tpu_custom_call.1} parent=1 // pred_region
      %84 = dma.done [#allocation8], 256
    $region45: #{tpu_custom_call.1} parent=1 // pred_fallthru
      _
    // Predicated region
    $region46: #{tpu_custom_call.1} parent=1 // pred_check
      _
    $region47: #{tpu_custom_call.1} parent=1 // pred_check_branch
      %86 = sbr.rel (0) target = $region49
    $region48: #{tpu_custom_call.1} parent=1 // pred_region
      %87 = dma.done [#allocation8], 256
    $region49: #{tpu_custom_call.1} parent=1 // pred_fallthru
      _
    // Predicated region
    $region50: #{tpu_custom_call.1} parent=1 // pred_check
      _
    $region51: #{tpu_custom_call.1} parent=1 // pred_check_branch
      %89 = sbr.rel (0) target = $region53
    $region52: #{tpu_custom_call.1} parent=1 // pred_region
      %90 = dma.done [#allocation11], 512
    $region53: #{tpu_custom_call.1} parent=1 // pred_fallthru
      _
    %v91 = vld [vmem:[#allocation4] sm:$0xff]
    %v92 = vld [vmem:[#allocation4 + $0x8] sm:$0xff]
    %v93 = vld [vmem:[%s6] sm:$0xff]
    %v94 = vld [vmem:[%s6 + $0x8] sm:$0xff]
    %v95 = vld [vmem:[%s6 + $0x10] sm:$0xff]
    %v96 = vld [vmem:[%s6 + $0x18] sm:$0xff]
    %vm97 = vcmask 261120
    %v99 = vsel %vm97, %v91, 0
    %v102 = vsel %vm97, %v92, 0
    %104 = vmatprep.subr.mxu0 0.0
    %105 = vmatpush1.msra.mxu0 %v93
    %106 = vmatprep.subr.mxu0 0.0
    %107 = vmatpush1.msra.mxu0 %v94
    %108 = vmatprep.subr.mxu0 0.0
    %109 = vmatpush1.msra.mxu0 %v95
    %110 = vmatprep.subr.mxu0 0.0
    %111 = vmatpush1.msra.mxu0 %v96
    %112 = vmatprep.subr.mxu0 0.0
    %113 = vmatpush1.msra.mxu0 0.0
    %114 = vmatprep.subr.mxu0 0.0
    %115 = vmatpush1.msra.mxu0 0.0
    %116 = vmatprep.subr.mxu0 0.0
    %117 = vmatpush1.msra.mxu0 0.0
    %118 = vmatprep.subr.mxu0 0.0
    %119 = vmatpush1.msra.mxu0 0.0
    %120 = vmatprep.subr.mxu0 0.0
    %121 = vmatpush1.msra.mxu0 0.0
    %122 = vmatprep.subr.mxu0 0.0
    %123 = vmatpush1.msra.mxu0 0.0
    %124 = vmatprep.subr.mxu0 0.0
    %125 = vmatpush1.msra.mxu0 0.0
    %126 = vmatprep.subr.mxu0 0.0
    %127 = vmatpush1.msra.mxu0 0.0
    %128 = vmatprep.subr.mxu0 0.0
    %129 = vmatpush1.msra.mxu0 0.0
    %130 = vmatprep.subr.mxu0 0.0
    %131 = vmatpush1.msra.mxu0 0.0
    %132 = vmatprep.subr.mxu0 0.0
    %133 = vmatpush1.msra.mxu0 0.0
    %134 = vmatprep.subr.mxu0 0.0
    %135 = vmatpush1.msra.mxu0 0.0
    %136 = vmatprep.subr.mxu0 0.0
    %137 = vmatpush1.msra.mxu0 0.0
    %138 = vmatprep.subr.mxu0 0.0
    %139 = vmatpush1.msra.mxu0 0.0
    %140 = vmatprep.subr.mxu0 0.0
    %141 = vmatpush1.msra.mxu0 0.0
    %142 = vmatprep.subr.mxu0 0.0
    %143 = vmatpush1.msra.mxu0 0.0
    %144 = vmatprep.subr.mxu0 0.0
    %145 = vmatpush1.msra.mxu0 0.0
    %146 = vmatprep.subr.mxu0 0.0
    %147 = vmatpush1.msra.mxu0 0.0
    %148 = vmatprep.subr.mxu0 0.0
    %149 = vmatpush1.msra.mxu0 0.0
    %150 = vmatprep.subr.mxu0 0.0
    %151 = vmatpush1.msra.mxu0 0.0
    %152 = vmatprep.subr.mxu0 0.0
    %153 = vmatpush1.msra.mxu0 0.0
    %154 = vmatprep.subr.mxu0 0.0
    %155 = vmatpush1.msra.mxu0 0.0
    %156 = vmatprep.subr.mxu0 0.0
    %157 = vmatpush1.msra.mxu0 0.0
    %158 = vmatprep.subr.mxu0 0.0
    %159 = vmatpush1.msra.mxu0 0.0
    %160 = vmatprep.subr.mxu0 0.0
    %161 = vmatpush1.msra.mxu0 0.0
    %162 = vmatprep.subr.mxu0 0.0
    %163 = vmatpush1.msra.mxu0 0.0
    %164 = vmatprep.subr.mxu0 0.0
    %165 = vmatpush1.msra.mxu0 0.0
    %166 = vmatprep.subr.mxu0 0.0
    %167 = vmatpush1.msra.mxu0 0.0
    %168 = vmatprep.mubr.f32.mxu0 0.0
    %169 = vmatmul.mubr.f32.gmra.mrb[0].mxu0 %v99
    %v170 = vpop.f32.mrb[0].mxu0
    %v171 = vadd.f32 0.0, %v170
    %v172 = vpop.f32.mrb[0].mxu0
    %173 = vmatprep.mubr.f32.mxu0 0.0
    %174 = vmatmul.mubr.f32.gmra.mrb[0].mxu0 %v102
    %v175 = vpop.f32.mrb[0].mxu0
    %v176 = vadd.f32 0.0, %v175
    %v177 = vpop.f32.mrb[0].mxu0
    %178 = vdwg.mxu0
    %vm179 = vcmask 785408
    %180 = vst.msk [vmem:[#allocation2] sm:$0xff] %vm179, %v171
    %181 = vst.msk [vmem:[#allocation2 + $0x8] sm:$0xff] %vm179, %v176
    %v182 = vld [vmem:[#allocation2] sm:$0xff]
    %v183 = vld [vmem:[#allocation2 + $0x8] sm:$0xff]
    %v184 = vld [vmem:[#allocation9] sm:$0xff]
    %v185 = vld [vmem:[#allocation9 + $0x8] sm:$0xff]
    %188 = vrot.lane.b32.xlu0 %v182, 96
    %v189 = vpop.permute.xlu0 %188
    %190 = vrot.lane.b32.xlu0 %v183, 96
    %v191 = vpop.permute.xlu0 %190
    %vm192 = vcmask 64512
    %v193 = vsel %vm192, %v182, 0
    %v195 = vsel %vm192, %v183, 0
    %v197 = vsel %vm192, %v189, 0
    %v199 = vsel %vm192, %v191, 0
    %201 = vmatprep.subr.mxu0 0.0
    %202 = vmatpush1.xpose.msra.mxu0 %v197
    %203 = vmatprep.subr.mxu0 0.0
    %204 = vmatpush1.xpose.msra.mxu0 %v199
    %205 = vmatprep.subr.mxu0 0.0
    %206 = vmatpush1.xpose.msra.mxu0 0.0
    %207 = vmatprep.subr.mxu0 0.0
    %208 = vmatpush1.xpose.msra.mxu0 0.0
    %209 = vmatprep.subr.mxu0 0.0
    %210 = vmatpush1.xpose.msra.mxu0 0.0
    %211 = vmatprep.subr.mxu0 0.0
    %212 = vmatpush1.xpose.msra.mxu0 0.0
    %213 = vmatprep.subr.mxu0 0.0
    %214 = vmatpush1.xpose.msra.mxu0 0.0
    %215 = vmatprep.subr.mxu0 0.0
    %216 = vmatpush1.xpose.msra.mxu0 0.0
    %217 = vmatprep.subr.mxu0 0.0
    %218 = vmatpush1.xpose.msra.mxu0 0.0
    %219 = vmatprep.subr.mxu0 0.0
    %220 = vmatpush1.xpose.msra.mxu0 0.0
    %221 = vmatprep.subr.mxu0 0.0
    %222 = vmatpush1.xpose.msra.mxu0 0.0
    %223 = vmatprep.subr.mxu0 0.0
    %224 = vmatpush1.xpose.msra.mxu0 0.0
    %225 = vmatprep.subr.mxu0 0.0
    %226 = vmatpush1.xpose.msra.mxu0 0.0
    %227 = vmatprep.subr.mxu0 0.0
    %228 = vmatpush1.xpose.msra.mxu0 0.0
    %229 = vmatprep.subr.mxu0 0.0
    %230 = vmatpush1.xpose.msra.mxu0 0.0
    %231 = vmatprep.subr.mxu0 0.0
    %232 = vmatpush1.xpose.msra.mxu0 0.0
    %233 = vmatprep.subr.mxu0 0.0
    %234 = vmatpush1.xpose.msra.mxu0 0.0
    %235 = vmatprep.subr.mxu0 0.0
    %236 = vmatpush1.xpose.msra.mxu0 0.0
    %237 = vmatprep.subr.mxu0 0.0
    %238 = vmatpush1.xpose.msra.mxu0 0.0
    %239 = vmatprep.subr.mxu0 0.0
    %240 = vmatpush1.xpose.msra.mxu0 0.0
    %241 = vmatprep.subr.mxu0 0.0
    %242 = vmatpush1.xpose.msra.mxu0 0.0
    %243 = vmatprep.subr.mxu0 0.0
    %244 = vmatpush1.xpose.msra.mxu0 0.0
    %245 = vmatprep.subr.mxu0 0.0
    %246 = vmatpush1.xpose.msra.mxu0 0.0
    %247 = vmatprep.subr.mxu0 0.0
    %248 = vmatpush1.xpose.msra.mxu0 0.0
    %249 = vmatprep.subr.mxu0 0.0
    %250 = vmatpush1.xpose.msra.mxu0 0.0
    %251 = vmatprep.subr.mxu0 0.0
    %252 = vmatpush1.xpose.msra.mxu0 0.0
    %253 = vmatprep.subr.mxu0 0.0
    %254 = vmatpush1.xpose.msra.mxu0 0.0
    %255 = vmatprep.subr.mxu0 0.0
    %256 = vmatpush1.xpose.msra.mxu0 0.0
    %257 = vmatprep.subr.mxu0 0.0
    %258 = vmatpush1.xpose.msra.mxu0 0.0
    %259 = vmatprep.subr.mxu0 0.0
    %260 = vmatpush1.xpose.msra.mxu0 0.0
    %261 = vmatprep.subr.mxu0 0.0
    %262 = vmatpush1.xpose.msra.mxu0 0.0
    %263 = vmatprep.subr.mxu0 0.0
    %264 = vmatpush1.xpose.msra.mxu0 0.0
    %265 = vmatprep.mubr.f32.mxu0 0.0
    %266 = vmatmul.mubr.f32.gmra.mrb[0].mxu0 %v193
    %v267 = vpop.f32.mrb[0].mxu0
    %v268 = vadd.f32 %v184, %v267
    %v269 = vpop.f32.mrb[0].mxu0
    %270 = vmatprep.mubr.f32.mxu0 0.0
    %271 = vmatmul.mubr.f32.gmra.mrb[0].mxu0 %v195
    %v272 = vpop.f32.mrb[0].mxu0
    %v273 = vadd.f32 %v185, %v272
    %v274 = vpop.f32.mrb[0].mxu0
    %275 = vdwg.mxu0
    %vm276 = vcmask 130048
    %v277 = vsel %vm276, %v268, -inf
    %278 = vmax.xlane.f32.xlu0 %v277
    %v279 = vpop.xlane.xlu0 %278
    %v280 = vsel %vm276, %v273, -inf
    %281 = vmax.xlane.f32.xlu0 %v280
    %v282 = vpop.xlane.xlu0 %281
    %v283 = vsub.f32 %v268, %v279
    %v284 = vsub.f32 %v273, %v282
    %v285 = vmul.f32 %v283, 1.442695
    %v286 = vpow.pop %v285
    %v287 = vmul.f32 %v284, 1.442695
    %v288 = vpow.pop %v287
    %v289 = vsel %vm276, %v286, 0.0
    %290 = vadd.xlane.f32.xlu0 %v289
    %v291 = vpop.xlane.xlu0 %290
    %v292 = vsel %vm276, %v288, 0.0
    %293 = vadd.xlane.f32.xlu0 %v292
    %v294 = vpop.xlane.xlu0 %293
    %v295 = vrcp.pop %v291
    %v296 = vrcp.pop %v294
    %v297 = vmul.f32 %v286, %v295
    %v298 = vmul.f32 %v288, %v296
    %v299 = vld [vmem:[#allocation7] sm:$0xff]
    %v300 = vld [vmem:[#allocation7 + $0x8] sm:$0xff]
    %v301 = vld [vmem:[%s4] sm:$0xff]
    %v303 = vsel %vm192, %v299, 0
    %v306 = vsel %vm192, %v300, 0
    %308 = vmatprep.subr.mxu0 0.0
    %v309 = vand.u32 %v301, 4294901760
    %310 = vmatpush1.msra.mxu0 %v309
    %311 = vmatprep.subr.mxu0 0.0
    %312 = vmatpush1.msra.mxu0 0.0
    %313 = vmatprep.subr.mxu0 0.0
    %314 = vmatpush1.msra.mxu0 0.0
    %315 = vmatprep.subr.mxu0 0.0
    %316 = vmatpush1.msra.mxu0 0.0
    %317 = vmatprep.subr.mxu0 0.0
    %318 = vmatpush1.msra.mxu0 0.0
    %319 = vmatprep.subr.mxu0 0.0
    %320 = vmatpush1.msra.mxu0 0.0
    %321 = vmatprep.subr.mxu0 0.0
    %322 = vmatpush1.msra.mxu0 0.0
    %323 = vmatprep.subr.mxu0 0.0
    %324 = vmatpush1.msra.mxu0 0.0
    %325 = vmatprep.subr.mxu0 0.0
    %326 = vmatpush1.msra.mxu0 0.0
    %327 = vmatprep.subr.mxu0 0.0
    %328 = vmatpush1.msra.mxu0 0.0
    %329 = vmatprep.subr.mxu0 0.0
    %330 = vmatpush1.msra.mxu0 0.0
    %331 = vmatprep.subr.mxu0 0.0
    %332 = vmatpush1.msra.mxu0 0.0
    %333 = vmatprep.subr.mxu0 0.0
    %334 = vmatpush1.msra.mxu0 0.0
    %335 = vmatprep.subr.mxu0 0.0
    %336 = vmatpush1.msra.mxu0 0.0
    %337 = vmatprep.subr.mxu0 0.0
    %338 = vmatpush1.msra.mxu0 0.0
    %339 = vmatprep.subr.mxu0 0.0
    %340 = vmatpush1.msra.mxu0 0.0
    %341 = vmatprep.subr.mxu0 0.0
    %342 = vmatpush1.msra.mxu0 0.0
    %343 = vmatprep.subr.mxu0 0.0
    %344 = vmatpush1.msra.mxu0 0.0
    %345 = vmatprep.subr.mxu0 0.0
    %346 = vmatpush1.msra.mxu0 0.0
    %347 = vmatprep.subr.mxu0 0.0
    %348 = vmatpush1.msra.mxu0 0.0
    %349 = vmatprep.subr.mxu0 0.0
    %350 = vmatpush1.msra.mxu0 0.0
    %351 = vmatprep.subr.mxu0 0.0
    %352 = vmatpush1.msra.mxu0 0.0
    %353 = vmatprep.subr.mxu0 0.0
    %354 = vmatpush1.msra.mxu0 0.0
    %355 = vmatprep.subr.mxu0 0.0
    %356 = vmatpush1.msra.mxu0 0.0
    %357 = vmatprep.subr.mxu0 0.0
    %358 = vmatpush1.msra.mxu0 0.0
    %359 = vmatprep.subr.mxu0 0.0
    %360 = vmatpush1.msra.mxu0 0.0
    %361 = vmatprep.subr.mxu0 0.0
    %362 = vmatpush1.msra.mxu0 0.0
    %363 = vmatprep.subr.mxu0 0.0
    %364 = vmatpush1.msra.mxu0 0.0
    %365 = vmatprep.subr.mxu0 0.0
    %366 = vmatpush1.msra.mxu0 0.0
    %367 = vmatprep.subr.mxu0 0.0
    %368 = vmatpush1.msra.mxu0 0.0
    %369 = vmatprep.subr.mxu0 0.0
    %370 = vmatpush1.msra.mxu0 0.0
    %371 = vmatprep.subr.mxu0 0.0
    %372 = vmatpush1.msra.mxu0 0.0
    %373 = vmatprep.mubr.f32.mxu0 0.0
    %v374 = vand.u32 %v303, 4294901760
    %v375 = vsub.f32 %v303, %v374
    %v376 = vand.u32 %v375, 4294901760
    %v377 = vsub.f32 %v375, %v376
    %v378 = vand.u32 %v377, 4294901760
    %379 = vmatmul.mubr.f32.gmra.mrb[0].mxu0 %v378
    %v380 = vpop.f32.mrb[0].mxu0
    %v381 = vadd.f32 %v184, %v380
    %v382 = vpop.f32.mrb[0].mxu0
    %383 = vmatprep.mubr.f32.mxu0 0.0
    %v384 = vand.u32 %v306, 4294901760
    %v385 = vsub.f32 %v306, %v384
    %v386 = vand.u32 %v385, 4294901760
    %v387 = vsub.f32 %v385, %v386
    %v388 = vand.u32 %v387, 4294901760
    %389 = vmatmul.mubr.f32.gmra.mrb[0].mxu0 %v388
    %v390 = vpop.f32.mrb[0].mxu0
    %v391 = vadd.f32 %v185, %v390
    %v392 = vpop.f32.mrb[0].mxu0
    %393 = vdwg.mxu0
    %394 = vmatprep.subr.mxu0 0.0
    %v395 = vand.u32 %v301, 4294901760
    %v396 = vsub.f32 %v301, %v395
    %v397 = vand.u32 %v396, 4294901760
    %v398 = vsub.f32 %v396, %v397
    %v399 = vand.u32 %v398, 4294901760
    %400 = vmatpush1.msra.mxu0 %v399
    %401 = vmatprep.subr.mxu0 0.0
    %402 = vmatpush1.msra.mxu0 0.0
    %403 = vmatprep.subr.mxu0 0.0
    %404 = vmatpush1.msra.mxu0 0.0
    %405 = vmatprep.subr.mxu0 0.0
    %406 = vmatpush1.msra.mxu0 0.0
    %407 = vmatprep.subr.mxu0 0.0
    %408 = vmatpush1.msra.mxu0 0.0
    %409 = vmatprep.subr.mxu0 0.0
    %410 = vmatpush1.msra.mxu0 0.0
    %411 = vmatprep.subr.mxu0 0.0
    %412 = vmatpush1.msra.mxu0 0.0
    %413 = vmatprep.subr.mxu0 0.0
    %414 = vmatpush1.msra.mxu0 0.0
    %415 = vmatprep.subr.mxu0 0.0
    %416 = vmatpush1.msra.mxu0 0.0
    %417 = vmatprep.subr.mxu0 0.0
    %418 = vmatpush1.msra.mxu0 0.0
    %419 = vmatprep.subr.mxu0 0.0
    %420 = vmatpush1.msra.mxu0 0.0
    %421 = vmatprep.subr.mxu0 0.0
    %422 = vmatpush1.msra.mxu0 0.0
    %423 = vmatprep.subr.mxu0 0.0
    %424 = vmatpush1.msra.mxu0 0.0
    %425 = vmatprep.subr.mxu0 0.0
    %426 = vmatpush1.msra.mxu0 0.0
    %427 = vmatprep.subr.mxu0 0.0
    %428 = vmatpush1.msra.mxu0 0.0
    %429 = vmatprep.subr.mxu0 0.0
    %430 = vmatpush1.msra.mxu0 0.0
    %431 = vmatprep.subr.mxu0 0.0
    %432 = vmatpush1.msra.mxu0 0.0
    %433 = vmatprep.subr.mxu0 0.0
    %434 = vmatpush1.msra.mxu0 0.0
    %435 = vmatprep.subr.mxu0 0.0
    %436 = vmatpush1.msra.mxu0 0.0
    %437 = vmatprep.subr.mxu0 0.0
    %438 = vmatpush1.msra.mxu0 0.0
    %439 = vmatprep.subr.mxu0 0.0
    %440 = vmatpush1.msra.mxu0 0.0
    %441 = vmatprep.subr.mxu0 0.0
    %442 = vmatpush1.msra.mxu0 0.0
    %443 = vmatprep.subr.mxu0 0.0
    %444 = vmatpush1.msra.mxu0 0.0
    %445 = vmatprep.subr.mxu0 0.0
    %446 = vmatpush1.msra.mxu0 0.0
    %447 = vmatprep.subr.mxu0 0.0
    %448 = vmatpush1.msra.mxu0 0.0
    %449 = vmatprep.subr.mxu0 0.0
    %450 = vmatpush1.msra.mxu0 0.0
    %451 = vmatprep.subr.mxu0 0.0
    %452 = vmatpush1.msra.mxu0 0.0
    %453 = vmatprep.subr.mxu0 0.0
    %454 = vmatpush1.msra.mxu0 0.0
    %455 = vmatprep.subr.mxu0 0.0
    %456 = vmatpush1.msra.mxu0 0.0
    %457 = vmatprep.subr.mxu0 0.0
    %458 = vmatpush1.msra.mxu0 0.0
    %459 = vmatprep.subr.mxu0 0.0
    %460 = vmatpush1.msra.mxu0 0.0
    %461 = vmatprep.subr.mxu0 0.0
    %462 = vmatpush1.msra.mxu0 0.0
    %463 = vmatprep.mubr.f32.mxu0 0.0
    %v464 = vand.u32 %v303, 4294901760
    %465 = vmatmul.mubr.f32.gmra.mrb[0].mxu0 %v464
    %v466 = vpop.f32.mrb[0].mxu0
    %v467 = vadd.f32 %v381, %v466
    %v468 = vpop.f32.mrb[0].mxu0
    %469 = vmatprep.mubr.f32.mxu0 0.0
    %v470 = vand.u32 %v306, 4294901760
    %471 = vmatmul.mubr.f32.gmra.mrb[0].mxu0 %v470
    %v472 = vpop.f32.mrb[0].mxu0
    %v473 = vadd.f32 %v391, %v472
    %v474 = vpop.f32.mrb[0].mxu0
    %475 = vdwg.mxu0
    %476 = vmatprep.subr.mxu0 0.0
    %v477 = vand.u32 %v301, 4294901760
    %v478 = vsub.f32 %v301, %v477
    %479 = vmatpush1.msra.mxu0 %v478
    %480 = vmatprep.subr.mxu0 0.0
    %481 = vmatpush1.msra.mxu0 0.0
    %482 = vmatprep.subr.mxu0 0.0
    %483 = vmatpush1.msra.mxu0 0.0
    %484 = vmatprep.subr.mxu0 0.0
    %485 = vmatpush1.msra.mxu0 0.0
    %486 = vmatprep.subr.mxu0 0.0
    %487 = vmatpush1.msra.mxu0 0.0
    %488 = vmatprep.subr.mxu0 0.0
    %489 = vmatpush1.msra.mxu0 0.0
    %490 = vmatprep.subr.mxu0 0.0
    %491 = vmatpush1.msra.mxu0 0.0
    %492 = vmatprep.subr.mxu0 0.0
    %493 = vmatpush1.msra.mxu0 0.0
    %494 = vmatprep.subr.mxu0 0.0
    %495 = vmatpush1.msra.mxu0 0.0
    %496 = vmatprep.subr.mxu0 0.0
    %497 = vmatpush1.msra.mxu0 0.0
    %498 = vmatprep.subr.mxu0 0.0
    %499 = vmatpush1.msra.mxu0 0.0
    %500 = vmatprep.subr.mxu0 0.0
    %501 = vmatpush1.msra.mxu0 0.0
    %502 = vmatprep.subr.mxu0 0.0
    %503 = vmatpush1.msra.mxu0 0.0
    %504 = vmatprep.subr.mxu0 0.0
    %505 = vmatpush1.msra.mxu0 0.0
    %506 = vmatprep.subr.mxu0 0.0
    %507 = vmatpush1.msra.mxu0 0.0
    %508 = vmatprep.subr.mxu0 0.0
    %509 = vmatpush1.msra.mxu0 0.0
    %510 = vmatprep.subr.mxu0 0.0
    %511 = vmatpush1.msra.mxu0 0.0
    %512 = vmatprep.subr.mxu0 0.0
    %513 = vmatpush1.msra.mxu0 0.0
    %514 = vmatprep.subr.mxu0 0.0
    %515 = vmatpush1.msra.mxu0 0.0
    %516 = vmatprep.subr.mxu0 0.0
    %517 = vmatpush1.msra.mxu0 0.0
    %518 = vmatprep.subr.mxu0 0.0
    %519 = vmatpush1.msra.mxu0 0.0
    %520 = vmatprep.subr.mxu0 0.0
    %521 = vmatpush1.msra.mxu0 0.0
    %522 = vmatprep.subr.mxu0 0.0
    %523 = vmatpush1.msra.mxu0 0.0
    %524 = vmatprep.subr.mxu0 0.0
    %525 = vmatpush1.msra.mxu0 0.0
    %526 = vmatprep.subr.mxu0 0.0
    %527 = vmatpush1.msra.mxu0 0.0
    %528 = vmatprep.subr.mxu0 0.0
    %529 = vmatpush1.msra.mxu0 0.0
    %530 = vmatprep.subr.mxu0 0.0
    %531 = vmatpush1.msra.mxu0 0.0
    %532 = vmatprep.subr.mxu0 0.0
    %533 = vmatpush1.msra.mxu0 0.0
    %534 = vmatprep.subr.mxu0 0.0
    %535 = vmatpush1.msra.mxu0 0.0
    %536 = vmatprep.subr.mxu0 0.0
    %537 = vmatpush1.msra.mxu0 0.0
    %538 = vmatprep.subr.mxu0 0.0
    %539 = vmatpush1.msra.mxu0 0.0
    %540 = vmatprep.subr.mxu0 0.0
    %541 = vmatpush1.msra.mxu0 0.0
    %542 = vmatprep.mubr.f32.mxu0 0.0
    %v543 = vand.u32 %v303, 4294901760
    %v544 = vsub.f32 %v303, %v543
    %545 = vmatmul.mubr.f32.gmra.mrb[0].mxu0 %v544
    %v546 = vpop.f32.mrb[0].mxu0
    %v547 = vadd.f32 %v467, %v546
    %v548 = vpop.f32.mrb[0].mxu0
    %549 = vmatprep.mubr.f32.mxu0 0.0
    %v550 = vand.u32 %v306, 4294901760
    %v551 = vsub.f32 %v306, %v550
    %552 = vmatmul.mubr.f32.gmra.mrb[0].mxu0 %v551
    %v553 = vpop.f32.mrb[0].mxu0
    %v554 = vadd.f32 %v473, %v553
    %v555 = vpop.f32.mrb[0].mxu0
    %556 = vdwg.mxu0
    %557 = vmatprep.subr.mxu0 0.0
    %v558 = vand.u32 %v301, 4294901760
    %559 = vmatpush1.msra.mxu0 %v558
    %560 = vmatprep.subr.mxu0 0.0
    %561 = vmatpush1.msra.mxu0 0.0
    %562 = vmatprep.subr.mxu0 0.0
    %563 = vmatpush1.msra.mxu0 0.0
    %564 = vmatprep.subr.mxu0 0.0
    %565 = vmatpush1.msra.mxu0 0.0
    %566 = vmatprep.subr.mxu0 0.0
    %567 = vmatpush1.msra.mxu0 0.0
    %568 = vmatprep.subr.mxu0 0.0
    %569 = vmatpush1.msra.mxu0 0.0
    %570 = vmatprep.subr.mxu0 0.0
    %571 = vmatpush1.msra.mxu0 0.0
    %572 = vmatprep.subr.mxu0 0.0
    %573 = vmatpush1.msra.mxu0 0.0
    %574 = vmatprep.subr.mxu0 0.0
    %575 = vmatpush1.msra.mxu0 0.0
    %576 = vmatprep.subr.mxu0 0.0
    %577 = vmatpush1.msra.mxu0 0.0
    %578 = vmatprep.subr.mxu0 0.0
    %579 = vmatpush1.msra.mxu0 0.0
    %580 = vmatprep.subr.mxu0 0.0
    %581 = vmatpush1.msra.mxu0 0.0
    %582 = vmatprep.subr.mxu0 0.0
    %583 = vmatpush1.msra.mxu0 0.0
    %584 = vmatprep.subr.mxu0 0.0
    %585 = vmatpush1.msra.mxu0 0.0
    %586 = vmatprep.subr.mxu0 0.0
    %587 = vmatpush1.msra.mxu0 0.0
    %588 = vmatprep.subr.mxu0 0.0
    %589 = vmatpush1.msra.mxu0 0.0
    %590 = vmatprep.subr.mxu0 0.0
    %591 = vmatpush1.msra.mxu0 0.0
    %592 = vmatprep.subr.mxu0 0.0
    %593 = vmatpush1.msra.mxu0 0.0
    %594 = vmatprep.subr.mxu0 0.0
    %595 = vmatpush1.msra.mxu0 0.0
    %596 = vmatprep.subr.mxu0 0.0
    %597 = vmatpush1.msra.mxu0 0.0
    %598 = vmatprep.subr.mxu0 0.0
    %599 = vmatpush1.msra.mxu0 0.0
    %600 = vmatprep.subr.mxu0 0.0
    %601 = vmatpush1.msra.mxu0 0.0
    %602 = vmatprep.subr.mxu0 0.0
    %603 = vmatpush1.msra.mxu0 0.0
    %604 = vmatprep.subr.mxu0 0.0
    %605 = vmatpush1.msra.mxu0 0.0
    %606 = vmatprep.subr.mxu0 0.0
    %607 = vmatpush1.msra.mxu0 0.0
    %608 = vmatprep.subr.mxu0 0.0
    %609 = vmatpush1.msra.mxu0 0.0
    %610 = vmatprep.subr.mxu0 0.0
    %611 = vmatpush1.msra.mxu0 0.0
    %612 = vmatprep.subr.mxu0 0.0
    %613 = vmatpush1.msra.mxu0 0.0
    %614 = vmatprep.subr.mxu0 0.0
    %615 = vmatpush1.msra.mxu0 0.0
    %616 = vmatprep.subr.mxu0 0.0
    %617 = vmatpush1.msra.mxu0 0.0
    %618 = vmatprep.subr.mxu0 0.0
    %619 = vmatpush1.msra.mxu0 0.0
    %620 = vmatprep.subr.mxu0 0.0
    %621 = vmatpush1.msra.mxu0 0.0
    %622 = vmatprep.mubr.f32.mxu0 0.0
    %v623 = vand.u32 %v303, 4294901760
    %v624 = vsub.f32 %v303, %v623
    %v625 = vand.u32 %v624, 4294901760
    %626 = vmatmul.mubr.f32.gmra.mrb[0].mxu0 %v625
    %v627 = vpop.f32.mrb[0].mxu0
    %v628 = vadd.f32 %v547, %v627
    %v629 = vpop.f32.mrb[0].mxu0
    %630 = vmatprep.mubr.f32.mxu0 0.0
    %v631 = vand.u32 %v306, 4294901760
    %v632 = vsub.f32 %v306, %v631
    %v633 = vand.u32 %v632, 4294901760
    %634 = vmatmul.mubr.f32.gmra.mrb[0].mxu0 %v633
    %v635 = vpop.f32.mrb[0].mxu0
    %v636 = vadd.f32 %v554, %v635
    %v637 = vpop.f32.mrb[0].mxu0
    %638 = vdwg.mxu0
    %639 = vmatprep.subr.mxu0 0.0
    %v640 = vand.u32 %v301, 4294901760
    %v641 = vsub.f32 %v301, %v640
    %v642 = vand.u32 %v641, 4294901760
    %643 = vmatpush1.msra.mxu0 %v642
    %644 = vmatprep.subr.mxu0 0.0
    %645 = vmatpush1.msra.mxu0 0.0
    %646 = vmatprep.subr.mxu0 0.0
    %647 = vmatpush1.msra.mxu0 0.0
    %648 = vmatprep.subr.mxu0 0.0
    %649 = vmatpush1.msra.mxu0 0.0
    %650 = vmatprep.subr.mxu0 0.0
    %651 = vmatpush1.msra.mxu0 0.0
    %652 = vmatprep.subr.mxu0 0.0
    %653 = vmatpush1.msra.mxu0 0.0
    %654 = vmatprep.subr.mxu0 0.0
    %655 = vmatpush1.msra.mxu0 0.0
    %656 = vmatprep.subr.mxu0 0.0
    %657 = vmatpush1.msra.mxu0 0.0
    %658 = vmatprep.subr.mxu0 0.0
    %659 = vmatpush1.msra.mxu0 0.0
    %660 = vmatprep.subr.mxu0 0.0
    %661 = vmatpush1.msra.mxu0 0.0
    %662 = vmatprep.subr.mxu0 0.0
    %663 = vmatpush1.msra.mxu0 0.0
    %664 = vmatprep.subr.mxu0 0.0
    %665 = vmatpush1.msra.mxu0 0.0
    %666 = vmatprep.subr.mxu0 0.0
    %667 = vmatpush1.msra.mxu0 0.0
    %668 = vmatprep.subr.mxu0 0.0
    %669 = vmatpush1.msra.mxu0 0.0
    %670 = vmatprep.subr.mxu0 0.0
    %671 = vmatpush1.msra.mxu0 0.0
    %672 = vmatprep.subr.mxu0 0.0
    %673 = vmatpush1.msra.mxu0 0.0
    %674 = vmatprep.subr.mxu0 0.0
    %675 = vmatpush1.msra.mxu0 0.0
    %676 = vmatprep.subr.mxu0 0.0
    %677 = vmatpush1.msra.mxu0 0.0
    %678 = vmatprep.subr.mxu0 0.0
    %679 = vmatpush1.msra.mxu0 0.0
    %680 = vmatprep.subr.mxu0 0.0
    %681 = vmatpush1.msra.mxu0 0.0
    %682 = vmatprep.subr.mxu0 0.0
    %683 = vmatpush1.msra.mxu0 0.0
    %684 = vmatprep.subr.mxu0 0.0
    %685 = vmatpush1.msra.mxu0 0.0
    %686 = vmatprep.subr.mxu0 0.0
    %687 = vmatpush1.msra.mxu0 0.0
    %688 = vmatprep.subr.mxu0 0.0
    %689 = vmatpush1.msra.mxu0 0.0
    %690 = vmatprep.subr.mxu0 0.0
    %691 = vmatpush1.msra.mxu0 0.0
    %692 = vmatprep.subr.mxu0 0.0
    %693 = vmatpush1.msra.mxu0 0.0
    %694 = vmatprep.subr.mxu0 0.0
    %695 = vmatpush1.msra.mxu0 0.0
    %696 = vmatprep.subr.mxu0 0.0
    %697 = vmatpush1.msra.mxu0 0.0
    %698 = vmatprep.subr.mxu0 0.0
    %699 = vmatpush1.msra.mxu0 0.0
    %700 = vmatprep.subr.mxu0 0.0
    %701 = vmatpush1.msra.mxu0 0.0
    %702 = vmatprep.subr.mxu0 0.0
    %703 = vmatpush1.msra.mxu0 0.0
    %704 = vmatprep.subr.mxu0 0.0
    %705 = vmatpush1.msra.mxu0 0.0
    %706 = vmatprep.mubr.f32.mxu0 0.0
    %v707 = vand.u32 %v303, 4294901760
    %708 = vmatmul.mubr.f32.gmra.mrb[0].mxu0 %v707
    %v709 = vpop.f32.mrb[0].mxu0
    %v710 = vadd.f32 %v628, %v709
    %v711 = vpop.f32.mrb[0].mxu0
    %712 = vmatprep.mubr.f32.mxu0 0.0
    %v713 = vand.u32 %v306, 4294901760
    %714 = vmatmul.mubr.f32.gmra.mrb[0].mxu0 %v713
    %v715 = vpop.f32.mrb[0].mxu0
    %v716 = vadd.f32 %v636, %v715
    %v717 = vpop.f32.mrb[0].mxu0
    %718 = vdwg.mxu0
    %719 = vmatprep.subr.mxu0 0.0
    %v720 = vand.u32 %v301, 4294901760
    %721 = vmatpush1.msra.mxu0 %v720
    %722 = vmatprep.subr.mxu0 0.0
    %723 = vmatpush1.msra.mxu0 0.0
    %724 = vmatprep.subr.mxu0 0.0
    %725 = vmatpush1.msra.mxu0 0.0
    %726 = vmatprep.subr.mxu0 0.0
    %727 = vmatpush1.msra.mxu0 0.0
    %728 = vmatprep.subr.mxu0 0.0
    %729 = vmatpush1.msra.mxu0 0.0
    %730 = vmatprep.subr.mxu0 0.0
    %731 = vmatpush1.msra.mxu0 0.0
    %732 = vmatprep.subr.mxu0 0.0
    %733 = vmatpush1.msra.mxu0 0.0
    %734 = vmatprep.subr.mxu0 0.0
    %735 = vmatpush1.msra.mxu0 0.0
    %736 = vmatprep.subr.mxu0 0.0
    %737 = vmatpush1.msra.mxu0 0.0
    %738 = vmatprep.subr.mxu0 0.0
    %739 = vmatpush1.msra.mxu0 0.0
    %740 = vmatprep.subr.mxu0 0.0
    %741 = vmatpush1.msra.mxu0 0.0
    %742 = vmatprep.subr.mxu0 0.0
    %743 = vmatpush1.msra.mxu0 0.0
    %744 = vmatprep.subr.mxu0 0.0
    %745 = vmatpush1.msra.mxu0 0.0
    %746 = vmatprep.subr.mxu0 0.0
    %747 = vmatpush1.msra.mxu0 0.0
    %748 = vmatprep.subr.mxu0 0.0
    %749 = vmatpush1.msra.mxu0 0.0
    %750 = vmatprep.subr.mxu0 0.0
    %751 = vmatpush1.msra.mxu0 0.0
    %752 = vmatprep.subr.mxu0 0.0
    %753 = vmatpush1.msra.mxu0 0.0
    %754 = vmatprep.subr.mxu0 0.0
    %755 = vmatpush1.msra.mxu0 0.0
    %756 = vmatprep.subr.mxu0 0.0
    %757 = vmatpush1.msra.mxu0 0.0
    %758 = vmatprep.subr.mxu0 0.0
    %759 = vmatpush1.msra.mxu0 0.0
    %760 = vmatprep.subr.mxu0 0.0
    %761 = vmatpush1.msra.mxu0 0.0
    %762 = vmatprep.subr.mxu0 0.0
    %763 = vmatpush1.msra.mxu0 0.0
    %764 = vmatprep.subr.mxu0 0.0
    %765 = vmatpush1.msra.mxu0 0.0
    %766 = vmatprep.subr.mxu0 0.0
    %767 = vmatpush1.msra.mxu0 0.0
    %768 = vmatprep.subr.mxu0 0.0
    %769 = vmatpush1.msra.mxu0 0.0
    %770 = vmatprep.subr.mxu0 0.0
    %771 = vmatpush1.msra.mxu0 0.0
    %772 = vmatprep.subr.mxu0 0.0
    %773 = vmatpush1.msra.mxu0 0.0
    %774 = vmatprep.subr.mxu0 0.0
    %775 = vmatpush1.msra.mxu0 0.0
    %776 = vmatprep.subr.mxu0 0.0
    %777 = vmatpush1.msra.mxu0 0.0
    %778 = vmatprep.subr.mxu0 0.0
    %779 = vmatpush1.msra.mxu0 0.0
    %780 = vmatprep.subr.mxu0 0.0
    %781 = vmatpush1.msra.mxu0 0.0
    %782 = vmatprep.subr.mxu0 0.0
    %783 = vmatpush1.msra.mxu0 0.0
    %784 = vmatprep.mubr.f32.mxu0 0.0
    %v785 = vand.u32 %v303, 4294901760
    %786 = vmatmul.mubr.f32.gmra.mrb[0].mxu0 %v785
    %v787 = vpop.f32.mrb[0].mxu0
    %v788 = vadd.f32 %v710, %v787
    %v789 = vpop.f32.mrb[0].mxu0
    %790 = vmatprep.mubr.f32.mxu0 0.0
    %v791 = vand.u32 %v306, 4294901760
    %792 = vmatmul.mubr.f32.gmra.mrb[0].mxu0 %v791
    %v793 = vpop.f32.mrb[0].mxu0
    %v794 = vadd.f32 %v716, %v793
    %v795 = vpop.f32.mrb[0].mxu0
    %796 = vdwg.mxu0
    %v797 = vsel %vm276, %v788, -inf
    %798 = vmax.xlane.f32.xlu0 %v797
    %v799 = vpop.xlane.xlu0 %798
    %v800 = vsel %vm276, %v794, -inf
    %801 = vmax.xlane.f32.xlu0 %v800
    %v802 = vpop.xlane.xlu0 %801
    %v803 = vsub.f32 %v788, %v799
    %v804 = vsub.f32 %v794, %v802
    %v805 = vmul.f32 %v803, 1.442695
    %v806 = vpow.pop %v805
    %v807 = vmul.f32 %v804, 1.442695
    %v808 = vpow.pop %v807
    %v809 = vsel %vm276, %v806, 0.0
    %810 = vadd.xlane.f32.xlu0 %v809
    %v811 = vpop.xlane.xlu0 %810
    %v812 = vsel %vm276, %v808, 0.0
    %813 = vadd.xlane.f32.xlu0 %v812
    %v814 = vpop.xlane.xlu0 %813
    %v815 = vrcp.pop %v811
    %v816 = vrcp.pop %v814
    %v817 = vmul.f32 %v806, %v815
    %v818 = vmul.f32 %v808, %v816
    %v819 = vld [vmem:[%s2] sm:$0x1]
    %v820 = vsub.f32 1.0, %v819
    %v822 = vlaneseq
    %v823 = vshrl.u32 %v822, 7
    %v824 = vsub.s32 0, %v823
    %v825 = vrot.slane %v820, %v824
    %826 = vset.pattern.permute.xlu0 0
    %827 = vperm.xlu0 %826, %v825
    %v828 = vpop.permute.xlu0 %827
    %v830 = vmul.f32 %v828, %v297
    %v831 = vmul.f32 %v828, %v298
    %v833 = vlaneseq
    %v834 = vshrl.u32 %v833, 7
    %v835 = vsub.s32 0, %v834
    %v836 = vrot.slane %v819, %v835
    %837 = vset.pattern.permute.xlu0 0
    %838 = vperm.xlu0 %837, %v836
    %v839 = vpop.permute.xlu0 %838
    %v841 = vmul.f32 %v839, %v817
    %v842 = vmul.f32 %v839, %v818
    %v843 = vadd.f32 %v830, %v841
    %v844 = vadd.f32 %v831, %v842
    %v845 = vsel %vm276, %v843, 0.0
    %846 = vadd.xlane.f32.xlu0 %v845
    %v847 = vpop.xlane.xlu0 %846
    %v848 = vsel %vm276, %v844, 0.0
    %849 = vadd.xlane.f32.xlu0 %v848
    %v850 = vpop.xlane.xlu0 %849
    %v851 = vrcp.pop %v847
    %v852 = vrcp.pop %v850
    %v853 = vmul.f32 %v843, %v851
    %v854 = vmul.f32 %v844, %v852
    %v855 = vld [vmem:[%s5] sm:$0xff]
    %v856 = vld [vmem:[%s5 + $0x8] sm:$0xff]
    %v858 = vsel %vm276, %v853, 0
    %v861 = vsel %vm276, %v854, 0
    %863 = vmatprep.subr.mxu0 0.0
    %v864 = vand.u32 %v855, 4294901760
    %865 = vmatpush1.msra.mxu0 %v864
    %866 = vmatprep.subr.mxu0 0.0
    %v867 = vand.u32 %v856, 4294901760
    %868 = vmatpush1.msra.mxu0 %v867
    %869 = vmatprep.subr.mxu0 0.0
    %870 = vmatpush1.msra.mxu0 0.0
    %871 = vmatprep.subr.mxu0 0.0
    %872 = vmatpush1.msra.mxu0 0.0
    %873 = vmatprep.subr.mxu0 0.0
    %874 = vmatpush1.msra.mxu0 0.0
    %875 = vmatprep.subr.mxu0 0.0
    %876 = vmatpush1.msra.mxu0 0.0
    %877 = vmatprep.subr.mxu0 0.0
    %878 = vmatpush1.msra.mxu0 0.0
    %879 = vmatprep.subr.mxu0 0.0
    %880 = vmatpush1.msra.mxu0 0.0
    %881 = vmatprep.subr.mxu0 0.0
    %882 = vmatpush1.msra.mxu0 0.0
    %883 = vmatprep.subr.mxu0 0.0
    %884 = vmatpush1.msra.mxu0 0.0
    %885 = vmatprep.subr.mxu0 0.0
    %886 = vmatpush1.msra.mxu0 0.0
    %887 = vmatprep.subr.mxu0 0.0
    %888 = vmatpush1.msra.mxu0 0.0
    %889 = vmatprep.subr.mxu0 0.0
    %890 = vmatpush1.msra.mxu0 0.0
    %891 = vmatprep.subr.mxu0 0.0
    %892 = vmatpush1.msra.mxu0 0.0
    %893 = vmatprep.subr.mxu0 0.0
    %894 = vmatpush1.msra.mxu0 0.0
    %895 = vmatprep.subr.mxu0 0.0
    %896 = vmatpush1.msra.mxu0 0.0
    %897 = vmatprep.subr.mxu0 0.0
    %898 = vmatpush1.msra.mxu0 0.0
    %899 = vmatprep.subr.mxu0 0.0
    %900 = vmatpush1.msra.mxu0 0.0
    %901 = vmatprep.subr.mxu0 0.0
    %902 = vmatpush1.msra.mxu0 0.0
    %903 = vmatprep.subr.mxu0 0.0
    %904 = vmatpush1.msra.mxu0 0.0
    %905 = vmatprep.subr.mxu0 0.0
    %906 = vmatpush1.msra.mxu0 0.0
    %907 = vmatprep.subr.mxu0 0.0
    %908 = vmatpush1.msra.mxu0 0.0
    %909 = vmatprep.subr.mxu0 0.0
    %910 = vmatpush1.msra.mxu0 0.0
    %911 = vmatprep.subr.mxu0 0.0
    %912 = vmatpush1.msra.mxu0 0.0
    %913 = vmatprep.subr.mxu0 0.0
    %914 = vmatpush1.msra.mxu0 0.0
    %915 = vmatprep.subr.mxu0 0.0
    %916 = vmatpush1.msra.mxu0 0.0
    %917 = vmatprep.subr.mxu0 0.0
    %918 = vmatpush1.msra.mxu0 0.0
    %919 = vmatprep.subr.mxu0 0.0
    %920 = vmatpush1.msra.mxu0 0.0
    %921 = vmatprep.subr.mxu0 0.0
    %922 = vmatpush1.msra.mxu0 0.0
    %923 = vmatprep.subr.mxu0 0.0
    %924 = vmatpush1.msra.mxu0 0.0
    %925 = vmatprep.subr.mxu0 0.0
    %926 = vmatpush1.msra.mxu0 0.0
    %927 = vmatprep.subr.mxu0 0.0
    %928 = vmatpush1.msra.mxu0 0.0
    %929 = vmatprep.mubr.f32.mxu0 0.0
    %v930 = vand.u32 %v858, 4294901760
    %v931 = vsub.f32 %v858, %v930
    %v932 = vand.u32 %v931, 4294901760
    %v933 = vsub.f32 %v931, %v932
    %v934 = vand.u32 %v933, 4294901760
    %935 = vmatmul.mubr.f32.gmra.mrb[0].mxu0 %v934
    %v936 = vpop.f32.mrb[0].mxu0
    %v937 = vadd.f32 0.0, %v936
    %v938 = vpop.f32.mrb[0].mxu0
    %939 = vmatprep.mubr.f32.mxu0 0.0
    %v940 = vand.u32 %v861, 4294901760
    %v941 = vsub.f32 %v861, %v940
    %v942 = vand.u32 %v941, 4294901760
    %v943 = vsub.f32 %v941, %v942
    %v944 = vand.u32 %v943, 4294901760
    %945 = vmatmul.mubr.f32.gmra.mrb[0].mxu0 %v944
    %v946 = vpop.f32.mrb[0].mxu0
    %v947 = vadd.f32 0.0, %v946
    %v948 = vpop.f32.mrb[0].mxu0
    %949 = vdwg.mxu0
    %950 = vmatprep.subr.mxu0 0.0
    %v951 = vand.u32 %v855, 4294901760
    %v952 = vsub.f32 %v855, %v951
    %v953 = vand.u32 %v952, 4294901760
    %v954 = vsub.f32 %v952, %v953
    %v955 = vand.u32 %v954, 4294901760
    %956 = vmatpush1.msra.mxu0 %v955
    %957 = vmatprep.subr.mxu0 0.0
    %v958 = vand.u32 %v856, 4294901760
    %v959 = vsub.f32 %v856, %v958
    %v960 = vand.u32 %v959, 4294901760
    %v961 = vsub.f32 %v959, %v960
    %v962 = vand.u32 %v961, 4294901760
    %963 = vmatpush1.msra.mxu0 %v962
    %964 = vmatprep.subr.mxu0 0.0
    %965 = vmatpush1.msra.mxu0 0.0
    %966 = vmatprep.subr.mxu0 0.0
    %967 = vmatpush1.msra.mxu0 0.0
    %968 = vmatprep.subr.mxu0 0.0
    %969 = vmatpush1.msra.mxu0 0.0
    %970 = vmatprep.subr.mxu0 0.0
    %971 = vmatpush1.msra.mxu0 0.0
    %972 = vmatprep.subr.mxu0 0.0
    %973 = vmatpush1.msra.mxu0 0.0
    %974 = vmatprep.subr.mxu0 0.0
    %975 = vmatpush1.msra.mxu0 0.0
    %976 = vmatprep.subr.mxu0 0.0
    %977 = vmatpush1.msra.mxu0 0.0
    %978 = vmatprep.subr.mxu0 0.0
    %979 = vmatpush1.msra.mxu0 0.0
    %980 = vmatprep.subr.mxu0 0.0
    %981 = vmatpush1.msra.mxu0 0.0
    %982 = vmatprep.subr.mxu0 0.0
    %983 = vmatpush1.msra.mxu0 0.0
    %984 = vmatprep.subr.mxu0 0.0
    %985 = vmatpush1.msra.mxu0 0.0
    %986 = vmatprep.subr.mxu0 0.0
    %987 = vmatpush1.msra.mxu0 0.0
    %988 = vmatprep.subr.mxu0 0.0
    %989 = vmatpush1.msra.mxu0 0.0
    %990 = vmatprep.subr.mxu0 0.0
    %991 = vmatpush1.msra.mxu0 0.0
    %992 = vmatprep.subr.mxu0 0.0
    %993 = vmatpush1.msra.mxu0 0.0
    %994 = vmatprep.subr.mxu0 0.0
    %995 = vmatpush1.msra.mxu0 0.0
    %996 = vmatprep.subr.mxu0 0.0
    %997 = vmatpush1.msra.mxu0 0.0
    %998 = vmatprep.subr.mxu0 0.0
    %999 = vmatpush1.msra.mxu0 0.0
    %1000 = vmatprep.subr.mxu0 0.0
    %1001 = vmatpush1.msra.mxu0 0.0
    %1002 = vmatprep.subr.mxu0 0.0
    %1003 = vmatpush1.msra.mxu0 0.0
    %1004 = vmatprep.subr.mxu0 0.0
    %1005 = vmatpush1.msra.mxu0 0.0
    %1006 = vmatprep.subr.mxu0 0.0
    %1007 = vmatpush1.msra.mxu0 0.0
    %1008 = vmatprep.subr.mxu0 0.0
    %1009 = vmatpush1.msra.mxu0 0.0
    %1010 = vmatprep.subr.mxu0 0.0
    %1011 = vmatpush1.msra.mxu0 0.0
    %1012 = vmatprep.subr.mxu0 0.0
    %1013 = vmatpush1.msra.mxu0 0.0
    %1014 = vmatprep.subr.mxu0 0.0
    %1015 = vmatpush1.msra.mxu0 0.0
    %1016 = vmatprep.subr.mxu0 0.0
    %1017 = vmatpush1.msra.mxu0 0.0
    %1018 = vmatprep.subr.mxu0 0.0
    %1019 = vmatpush1.msra.mxu0 0.0
    %1020 = vmatprep.subr.mxu0 0.0
    %1021 = vmatpush1.msra.mxu0 0.0
    %1022 = vmatprep.subr.mxu0 0.0
    %1023 = vmatpush1.msra.mxu0 0.0
    %1024 = vmatprep.mubr.f32.mxu0 0.0
    %v1025 = vand.u32 %v858, 4294901760
    %1026 = vmatmul.mubr.f32.gmra.mrb[0].mxu0 %v1025
    %v1027 = vpop.f32.mrb[0].mxu0
    %v1028 = vadd.f32 %v937, %v1027
    %v1029 = vpop.f32.mrb[0].mxu0
    %1030 = vmatprep.mubr.f32.mxu0 0.0
    %v1031 = vand.u32 %v861, 4294901760
    %1032 = vmatmul.mubr.f32.gmra.mrb[0].mxu0 %v1031
    %v1033 = vpop.f32.mrb[0].mxu0
    %v1034 = vadd.f32 %v947, %v1033
    %v1035 = vpop.f32.mrb[0].mxu0
    %1036 = vdwg.mxu0
    %1037 = vmatprep.subr.mxu0 0.0
    %v1038 = vand.u32 %v855, 4294901760
    %v1039 = vsub.f32 %v855, %v1038
    %1040 = vmatpush1.msra.mxu0 %v1039
    %1041 = vmatprep.subr.mxu0 0.0
    %v1042 = vand.u32 %v856, 4294901760
    %v1043 = vsub.f32 %v856, %v1042
    %1044 = vmatpush1.msra.mxu0 %v1043
    %1045 = vmatprep.subr.mxu0 0.0
    %1046 = vmatpush1.msra.mxu0 0.0
    %1047 = vmatprep.subr.mxu0 0.0
    %1048 = vmatpush1.msra.mxu0 0.0
    %1049 = vmatprep.subr.mxu0 0.0
    %1050 = vmatpush1.msra.mxu0 0.0
    %1051 = vmatprep.subr.mxu0 0.0
    %1052 = vmatpush1.msra.mxu0 0.0
    %1053 = vmatprep.subr.mxu0 0.0
    %1054 = vmatpush1.msra.mxu0 0.0
    %1055 = vmatprep.subr.mxu0 0.0
    %1056 = vmatpush1.msra.mxu0 0.0
    %1057 = vmatprep.subr.mxu0 0.0
    %1058 = vmatpush1.msra.mxu0 0.0
    %1059 = vmatprep.subr.mxu0 0.0
    %1060 = vmatpush1.msra.mxu0 0.0
    %1061 = vmatprep.subr.mxu0 0.0
    %1062 = vmatpush1.msra.mxu0 0.0
    %1063 = vmatprep.subr.mxu0 0.0
    %1064 = vmatpush1.msra.mxu0 0.0
    %1065 = vmatprep.subr.mxu0 0.0
    %1066 = vmatpush1.msra.mxu0 0.0
    %1067 = vmatprep.subr.mxu0 0.0
    %1068 = vmatpush1.msra.mxu0 0.0
    %1069 = vmatprep.subr.mxu0 0.0
    %1070 = vmatpush1.msra.mxu0 0.0
    %1071 = vmatprep.subr.mxu0 0.0
    %1072 = vmatpush1.msra.mxu0 0.0
    %1073 = vmatprep.subr.mxu0 0.0
    %1074 = vmatpush1.msra.mxu0 0.0
    %1075 = vmatprep.subr.mxu0 0.0
    %1076 = vmatpush1.msra.mxu0 0.0
    %1077 = vmatprep.subr.mxu0 0.0
    %1078 = vmatpush1.msra.mxu0 0.0
    %1079 = vmatprep.subr.mxu0 0.0
    %1080 = vmatpush1.msra.mxu0 0.0
    %1081 = vmatprep.subr.mxu0 0.0
    %1082 = vmatpush1.msra.mxu0 0.0
    %1083 = vmatprep.subr.mxu0 0.0
    %1084 = vmatpush1.msra.mxu0 0.0
    %1085 = vmatprep.subr.mxu0 0.0
    %1086 = vmatpush1.msra.mxu0 0.0
    %1087 = vmatprep.subr.mxu0 0.0
    %1088 = vmatpush1.msra.mxu0 0.0
    %1089 = vmatprep.subr.mxu0 0.0
    %1090 = vmatpush1.msra.mxu0 0.0
    %1091 = vmatprep.subr.mxu0 0.0
    %1092 = vmatpush1.msra.mxu0 0.0
    %1093 = vmatprep.subr.mxu0 0.0
    %1094 = vmatpush1.msra.mxu0 0.0
    %1095 = vmatprep.subr.mxu0 0.0
    %1096 = vmatpush1.msra.mxu0 0.0
    %1097 = vmatprep.subr.mxu0 0.0
    %1098 = vmatpush1.msra.mxu0 0.0
    %1099 = vmatprep.subr.mxu0 0.0
    %1100 = vmatpush1.msra.mxu0 0.0
    %1101 = vmatprep.subr.mxu0 0.0
    %1102 = vmatpush1.msra.mxu0 0.0
    %1103 = vmatprep.subr.mxu0 0.0
    %1104 = vmatpush1.msra.mxu0 0.0
    %1105 = vmatprep.mubr.f32.mxu0 0.0
    %v1106 = vand.u32 %v858, 4294901760
    %v1107 = vsub.f32 %v858, %v1106
    %1108 = vmatmul.mubr.f32.gmra.mrb[0].mxu0 %v1107
    %v1109 = vpop.f32.mrb[0].mxu0
    %v1110 = vadd.f32 %v1028, %v1109
    %v1111 = vpop.f32.mrb[0].mxu0
    %1112 = vmatprep.mubr.f32.mxu0 0.0
    %v1113 = vand.u32 %v861, 4294901760
    %v1114 = vsub.f32 %v861, %v1113
    %1115 = vmatmul.mubr.f32.gmra.mrb[0].mxu0 %v1114
    %v1116 = vpop.f32.mrb[0].mxu0
    %v1117 = vadd.f32 %v1034, %v1116
    %v1118 = vpop.f32.mrb[0].mxu0
    %1119 = vdwg.mxu0
    %1120 = vmatprep.subr.mxu0 0.0
    %v1121 = vand.u32 %v855, 4294901760
    %1122 = vmatpush1.msra.mxu0 %v1121
    %1123 = vmatprep.subr.mxu0 0.0
    %v1124 = vand.u32 %v856, 4294901760
    %1125 = vmatpush1.msra.mxu0 %v1124
    %1126 = vmatprep.subr.mxu0 0.0
    %1127 = vmatpush1.msra.mxu0 0.0
    %1128 = vmatprep.subr.mxu0 0.0
    %1129 = vmatpush1.msra.mxu0 0.0
    %1130 = vmatprep.subr.mxu0 0.0
    %1131 = vmatpush1.msra.mxu0 0.0
    %1132 = vmatprep.subr.mxu0 0.0
    %1133 = vmatpush1.msra.mxu0 0.0
    %1134 = vmatprep.subr.mxu0 0.0
    %1135 = vmatpush1.msra.mxu0 0.0
    %1136 = vmatprep.subr.mxu0 0.0
    %1137 = vmatpush1.msra.mxu0 0.0
    %1138 = vmatprep.subr.mxu0 0.0
    %1139 = vmatpush1.msra.mxu0 0.0
    %1140 = vmatprep.subr.mxu0 0.0
    %1141 = vmatpush1.msra.mxu0 0.0
    %1142 = vmatprep.subr.mxu0 0.0
    %1143 = vmatpush1.msra.mxu0 0.0
    %1144 = vmatprep.subr.mxu0 0.0
    %1145 = vmatpush1.msra.mxu0 0.0
    %1146 = vmatprep.subr.mxu0 0.0
    %1147 = vmatpush1.msra.mxu0 0.0
    %1148 = vmatprep.subr.mxu0 0.0
    %1149 = vmatpush1.msra.mxu0 0.0
    %1150 = vmatprep.subr.mxu0 0.0
    %1151 = vmatpush1.msra.mxu0 0.0
    %1152 = vmatprep.subr.mxu0 0.0
    %1153 = vmatpush1.msra.mxu0 0.0
    %1154 = vmatprep.subr.mxu0 0.0
    %1155 = vmatpush1.msra.mxu0 0.0
    %1156 = vmatprep.subr.mxu0 0.0
    %1157 = vmatpush1.msra.mxu0 0.0
    %1158 = vmatprep.subr.mxu0 0.0
    %1159 = vmatpush1.msra.mxu0 0.0
    %1160 = vmatprep.subr.mxu0 0.0
    %1161 = vmatpush1.msra.mxu0 0.0
    %1162 = vmatprep.subr.mxu0 0.0
    %1163 = vmatpush1.msra.mxu0 0.0
    %1164 = vmatprep.subr.mxu0 0.0
    %1165 = vmatpush1.msra.mxu0 0.0
    %1166 = vmatprep.subr.mxu0 0.0
    %1167 = vmatpush1.msra.mxu0 0.0
    %1168 = vmatprep.subr.mxu0 0.0
    %1169 = vmatpush1.msra.mxu0 0.0
    %1170 = vmatprep.subr.mxu0 0.0
    %1171 = vmatpush1.msra.mxu0 0.0
    %1172 = vmatprep.subr.mxu0 0.0
    %1173 = vmatpush1.msra.mxu0 0.0
    %1174 = vmatprep.subr.mxu0 0.0
    %1175 = vmatpush1.msra.mxu0 0.0
    %1176 = vmatprep.subr.mxu0 0.0
    %1177 = vmatpush1.msra.mxu0 0.0
    %1178 = vmatprep.subr.mxu0 0.0
    %1179 = vmatpush1.msra.mxu0 0.0
    %1180 = vmatprep.subr.mxu0 0.0
    %1181 = vmatpush1.msra.mxu0 0.0
    %1182 = vmatprep.subr.mxu0 0.0
    %1183 = vmatpush1.msra.mxu0 0.0
    %1184 = vmatprep.subr.mxu0 0.0
    %1185 = vmatpush1.msra.mxu0 0.0
    %1186 = vmatprep.mubr.f32.mxu0 0.0
    %v1187 = vand.u32 %v858, 4294901760
    %v1188 = vsub.f32 %v858, %v1187
    %v1189 = vand.u32 %v1188, 4294901760
    %1190 = vmatmul.mubr.f32.gmra.mrb[0].mxu0 %v1189
    %v1191 = vpop.f32.mrb[0].mxu0
    %v1192 = vadd.f32 %v1110, %v1191
    %v1193 = vpop.f32.mrb[0].mxu0
    %1194 = vmatprep.mubr.f32.mxu0 0.0
    %v1195 = vand.u32 %v861, 4294901760
    %v1196 = vsub.f32 %v861, %v1195
    %v1197 = vand.u32 %v1196, 4294901760
    %1198 = vmatmul.mubr.f32.gmra.mrb[0].mxu0 %v1197
    %v1199 = vpop.f32.mrb[0].mxu0
    %v1200 = vadd.f32 %v1117, %v1199
    %v1201 = vpop.f32.mrb[0].mxu0
    %1202 = vdwg.mxu0
    %1203 = vmatprep.subr.mxu0 0.0
    %v1204 = vand.u32 %v855, 4294901760
    %v1205 = vsub.f32 %v855, %v1204
    %v1206 = vand.u32 %v1205, 4294901760
    %1207 = vmatpush1.msra.mxu0 %v1206
    %1208 = vmatprep.subr.mxu0 0.0
    %v1209 = vand.u32 %v856, 4294901760
    %v1210 = vsub.f32 %v856, %v1209
    %v1211 = vand.u32 %v1210, 4294901760
    %1212 = vmatpush1.msra.mxu0 %v1211
    %1213 = vmatprep.subr.mxu0 0.0
    %1214 = vmatpush1.msra.mxu0 0.0
    %1215 = vmatprep.subr.mxu0 0.0
    %1216 = vmatpush1.msra.mxu0 0.0
    %1217 = vmatprep.subr.mxu0 0.0
    %1218 = vmatpush1.msra.mxu0 0.0
    %1219 = vmatprep.subr.mxu0 0.0
    %1220 = vmatpush1.msra.mxu0 0.0
    %1221 = vmatprep.subr.mxu0 0.0
    %1222 = vmatpush1.msra.mxu0 0.0
    %1223 = vmatprep.subr.mxu0 0.0
    %1224 = vmatpush1.msra.mxu0 0.0
    %1225 = vmatprep.subr.mxu0 0.0
    %1226 = vmatpush1.msra.mxu0 0.0
    %1227 = vmatprep.subr.mxu0 0.0
    %1228 = vmatpush1.msra.mxu0 0.0
    %1229 = vmatprep.subr.mxu0 0.0
    %1230 = vmatpush1.msra.mxu0 0.0
    %1231 = vmatprep.subr.mxu0 0.0
    %1232 = vmatpush1.msra.mxu0 0.0
    %1233 = vmatprep.subr.mxu0 0.0
    %1234 = vmatpush1.msra.mxu0 0.0
    %1235 = vmatprep.subr.mxu0 0.0
    %1236 = vmatpush1.msra.mxu0 0.0
    %1237 = vmatprep.subr.mxu0 0.0
    %1238 = vmatpush1.msra.mxu0 0.0
    %1239 = vmatprep.subr.mxu0 0.0
    %1240 = vmatpush1.msra.mxu0 0.0
    %1241 = vmatprep.subr.mxu0 0.0
    %1242 = vmatpush1.msra.mxu0 0.0
    %1243 = vmatprep.subr.mxu0 0.0
    %1244 = vmatpush1.msra.mxu0 0.0
    %1245 = vmatprep.subr.mxu0 0.0
    %1246 = vmatpush1.msra.mxu0 0.0
    %1247 = vmatprep.subr.mxu0 0.0
    %1248 = vmatpush1.msra.mxu0 0.0
    %1249 = vmatprep.subr.mxu0 0.0
    %1250 = vmatpush1.msra.mxu0 0.0
    %1251 = vmatprep.subr.mxu0 0.0
    %1252 = vmatpush1.msra.mxu0 0.0
    %1253 = vmatprep.subr.mxu0 0.0
    %1254 = vmatpush1.msra.mxu0 0.0
    %1255 = vmatprep.subr.mxu0 0.0
    %1256 = vmatpush1.msra.mxu0 0.0
    %1257 = vmatprep.subr.mxu0 0.0
    %1258 = vmatpush1.msra.mxu0 0.0
    %1259 = vmatprep.subr.mxu0 0.0
    %1260 = vmatpush1.msra.mxu0 0.0
    %1261 = vmatprep.subr.mxu0 0.0
    %1262 = vmatpush1.msra.mxu0 0.0
    %1263 = vmatprep.subr.mxu0 0.0
    %1264 = vmatpush1.msra.mxu0 0.0
    %1265 = vmatprep.subr.mxu0 0.0
    %1266 = vmatpush1.msra.mxu0 0.0
    %1267 = vmatprep.subr.mxu0 0.0
    %1268 = vmatpush1.msra.mxu0 0.0
    %1269 = vmatprep.subr.mxu0 0.0
    %1270 = vmatpush1.msra.mxu0 0.0
    %1271 = vmatprep.subr.mxu0 0.0
    %1272 = vmatpush1.msra.mxu0 0.0
    %1273 = vmatprep.mubr.f32.mxu0 0.0
    %v1274 = vand.u32 %v858, 4294901760
    %1275 = vmatmul.mubr.f32.gmra.mrb[0].mxu0 %v1274
    %v1276 = vpop.f32.mrb[0].mxu0
    %v1277 = vadd.f32 %v1192, %v1276
    %v1278 = vpop.f32.mrb[0].mxu0
    %1279 = vmatprep.mubr.f32.mxu0 0.0
    %v1280 = vand.u32 %v861, 4294901760
    %1281 = vmatmul.mubr.f32.gmra.mrb[0].mxu0 %v1280
    %v1282 = vpop.f32.mrb[0].mxu0
    %v1283 = vadd.f32 %v1200, %v1282
    %v1284 = vpop.f32.mrb[0].mxu0
    %1285 = vdwg.mxu0
    %1286 = vmatprep.subr.mxu0 0.0
    %v1287 = vand.u32 %v855, 4294901760
    %1288 = vmatpush1.msra.mxu0 %v1287
    %1289 = vmatprep.subr.mxu0 0.0
    %v1290 = vand.u32 %v856, 4294901760
    %1291 = vmatpush1.msra.mxu0 %v1290
    %1292 = vmatprep.subr.mxu0 0.0
    %1293 = vmatpush1.msra.mxu0 0.0
    %1294 = vmatprep.subr.mxu0 0.0
    %1295 = vmatpush1.msra.mxu0 0.0
    %1296 = vmatprep.subr.mxu0 0.0
    %1297 = vmatpush1.msra.mxu0 0.0
    %1298 = vmatprep.subr.mxu0 0.0
    %1299 = vmatpush1.msra.mxu0 0.0
    %1300 = vmatprep.subr.mxu0 0.0
    %1301 = vmatpush1.msra.mxu0 0.0
    %1302 = vmatprep.subr.mxu0 0.0
    %1303 = vmatpush1.msra.mxu0 0.0
    %1304 = vmatprep.subr.mxu0 0.0
    %1305 = vmatpush1.msra.mxu0 0.0
    %1306 = vmatprep.subr.mxu0 0.0
    %1307 = vmatpush1.msra.mxu0 0.0
    %1308 = vmatprep.subr.mxu0 0.0
    %1309 = vmatpush1.msra.mxu0 0.0
    %1310 = vmatprep.subr.mxu0 0.0
    %1311 = vmatpush1.msra.mxu0 0.0
    %1312 = vmatprep.subr.mxu0 0.0
    %1313 = vmatpush1.msra.mxu0 0.0
    %1314 = vmatprep.subr.mxu0 0.0
    %1315 = vmatpush1.msra.mxu0 0.0
    %1316 = vmatprep.subr.mxu0 0.0
    %1317 = vmatpush1.msra.mxu0 0.0
    %1318 = vmatprep.subr.mxu0 0.0
    %1319 = vmatpush1.msra.mxu0 0.0
    %1320 = vmatprep.subr.mxu0 0.0
    %1321 = vmatpush1.msra.mxu0 0.0
    %1322 = vmatprep.subr.mxu0 0.0
    %1323 = vmatpush1.msra.mxu0 0.0
    %1324 = vmatprep.subr.mxu0 0.0
    %1325 = vmatpush1.msra.mxu0 0.0
    %1326 = vmatprep.subr.mxu0 0.0
    %1327 = vmatpush1.msra.mxu0 0.0
    %1328 = vmatprep.subr.mxu0 0.0
    %1329 = vmatpush1.msra.mxu0 0.0
    %1330 = vmatprep.subr.mxu0 0.0
    %1331 = vmatpush1.msra.mxu0 0.0
    %1332 = vmatprep.subr.mxu0 0.0
    %1333 = vmatpush1.msra.mxu0 0.0
    %1334 = vmatprep.subr.mxu0 0.0
    %1335 = vmatpush1.msra.mxu0 0.0
    %1336 = vmatprep.subr.mxu0 0.0
    %1337 = vmatpush1.msra.mxu0 0.0
    %1338 = vmatprep.subr.mxu0 0.0
    %1339 = vmatpush1.msra.mxu0 0.0
    %1340 = vmatprep.subr.mxu0 0.0
    %1341 = vmatpush1.msra.mxu0 0.0
    %1342 = vmatprep.subr.mxu0 0.0
    %1343 = vmatpush1.msra.mxu0 0.0
    %1344 = vmatprep.subr.mxu0 0.0
    %1345 = vmatpush1.msra.mxu0 0.0
    %1346 = vmatprep.subr.mxu0 0.0
    %1347 = vmatpush1.msra.mxu0 0.0
    %1348 = vmatprep.subr.mxu0 0.0
    %1349 = vmatpush1.msra.mxu0 0.0
    %1350 = vmatprep.subr.mxu0 0.0
    %1351 = vmatpush1.msra.mxu0 0.0
    %1352 = vmatprep.mubr.f32.mxu0 0.0
    %v1353 = vand.u32 %v858, 4294901760
    %1354 = vmatmul.mubr.f32.gmra.mrb[0].mxu0 %v1353
    %v1355 = vpop.f32.mrb[0].mxu0
    %v1356 = vadd.f32 %v1277, %v1355
    %v1357 = vpop.f32.mrb[0].mxu0
    %1358 = vmatprep.mubr.f32.mxu0 0.0
    %v1359 = vand.u32 %v861, 4294901760
    %1360 = vmatmul.mubr.f32.gmra.mrb[0].mxu0 %v1359
    %v1361 = vpop.f32.mrb[0].mxu0
    %v1362 = vadd.f32 %v1283, %v1361
    %v1363 = vpop.f32.mrb[0].mxu0
    %1364 = vdwg.mxu0
    %1365 = vst.msk [vmem:[#allocation13] sm:$0xff] %vm192, %v1356
    %1366 = vst.msk [vmem:[#allocation13 + $0x8] sm:$0xff] %vm192, %v1362
    %1367 = vrot.lane.b32.xlu0 %v182, 64
    %v1368 = vpop.permute.xlu0 %1367
    %1369 = vrot.lane.b32.xlu0 %v183, 64
    %v1370 = vpop.permute.xlu0 %1369
    %1373 = vmatprep.subr.mxu0 0.0
    %1374 = vmatpush1.msra.mxu0 %v1368
    %1375 = vmatprep.subr.mxu0 0.0
    %1376 = vmatpush1.msra.mxu0 %v1370
    %1377 = vmatprep.subr.mxu0 0.0
    %1378 = vmatpush1.msra.mxu0 0.0
    %1379 = vmatprep.subr.mxu0 0.0
    %1380 = vmatpush1.msra.mxu0 0.0
    %1381 = vmatprep.subr.mxu0 0.0
    %1382 = vmatpush1.msra.mxu0 0.0
    %1383 = vmatprep.subr.mxu0 0.0
    %1384 = vmatpush1.msra.mxu0 0.0
    %1385 = vmatprep.subr.mxu0 0.0
    %1386 = vmatpush1.msra.mxu0 0.0
    %1387 = vmatprep.subr.mxu0 0.0
    %1388 = vmatpush1.msra.mxu0 0.0
    %1389 = vmatprep.subr.mxu0 0.0
    %1390 = vmatpush1.msra.mxu0 0.0
    %1391 = vmatprep.subr.mxu0 0.0
    %1392 = vmatpush1.msra.mxu0 0.0
    %1393 = vmatprep.subr.mxu0 0.0
    %1394 = vmatpush1.msra.mxu0 0.0
    %1395 = vmatprep.subr.mxu0 0.0
    %1396 = vmatpush1.msra.mxu0 0.0
    %1397 = vmatprep.subr.mxu0 0.0
    %1398 = vmatpush1.msra.mxu0 0.0
    %1399 = vmatprep.subr.mxu0 0.0
    %1400 = vmatpush1.msra.mxu0 0.0
    %1401 = vmatprep.subr.mxu0 0.0
    %1402 = vmatpush1.msra.mxu0 0.0
    %1403 = vmatprep.subr.mxu0 0.0
    %1404 = vmatpush1.msra.mxu0 0.0
    %1405 = vmatprep.subr.mxu0 0.0
    %1406 = vmatpush1.msra.mxu0 0.0
    %1407 = vmatprep.subr.mxu0 0.0
    %1408 = vmatpush1.msra.mxu0 0.0
    %1409 = vmatprep.subr.mxu0 0.0
    %1410 = vmatpush1.msra.mxu0 0.0
    %1411 = vmatprep.subr.mxu0 0.0
    %1412 = vmatpush1.msra.mxu0 0.0
    %1413 = vmatprep.subr.mxu0 0.0
    %1414 = vmatpush1.msra.mxu0 0.0
    %1415 = vmatprep.subr.mxu0 0.0
    %1416 = vmatpush1.msra.mxu0 0.0
    %1417 = vmatprep.subr.mxu0 0.0
    %1418 = vmatpush1.msra.mxu0 0.0
    %1419 = vmatprep.subr.mxu0 0.0
    %1420 = vmatpush1.msra.mxu0 0.0
    %1421 = vmatprep.subr.mxu0 0.0
    %1422 = vmatpush1.msra.mxu0 0.0
    %1423 = vmatprep.subr.mxu0 0.0
    %1424 = vmatpush1.msra.mxu0 0.0
    %1425 = vmatprep.subr.mxu0 0.0
    %1426 = vmatpush1.msra.mxu0 0.0
    %1427 = vmatprep.subr.mxu0 0.0
    %1428 = vmatpush1.msra.mxu0 0.0
    %1429 = vmatprep.subr.mxu0 0.0
    %1430 = vmatpush1.msra.mxu0 0.0
    %1431 = vmatprep.subr.mxu0 0.0
    %1432 = vmatpush1.msra.mxu0 0.0
    %1433 = vmatprep.subr.mxu0 0.0
    %1434 = vmatpush1.msra.mxu0 0.0
    %1435 = vmatprep.subr.mxu0 0.0
    %1436 = vmatpush1.msra.mxu0 0.0
    %1437 = vmatprep.mubr.f32.mxu0 0.0
    %1438 = vmatmul.mubr.f32.gmra.mrb[0].mxu0 %v858
    %v1439 = vpop.f32.mrb[0].mxu0
    %v1440 = vadd.f32 0.0, %v1439
    %v1441 = vpop.f32.mrb[0].mxu0
    %1442 = vmatprep.mubr.f32.mxu0 0.0
    %1443 = vmatmul.mubr.f32.gmra.mrb[0].mxu0 %v861
    %v1444 = vpop.f32.mrb[0].mxu0
    %v1445 = vadd.f32 0.0, %v1444
    %v1446 = vpop.f32.mrb[0].mxu0
    %1447 = vdwg.mxu0
    %1448 = vst.msk [vmem:[#allocation3] sm:$0xff] %vm192, %v1440
    %1449 = vst.msk [vmem:[#allocation3 + $0x8] sm:$0xff] %vm192, %v1445
    %v1450 = vld [vmem:[#allocation2] sm:$0xff]
    %v1451 = vld [vmem:[#allocation2 + $0x8] sm:$0xff]
    %v1452 = vld [vmem:[#allocation9] sm:$0xff]
    %v1453 = vld [vmem:[#allocation9 + $0x8] sm:$0xff]
    %1456 = vrot.lane.b32.xlu0 %v1450, 120
    %v1457 = vpop.permute.xlu0 %1456
    %1458 = vrot.lane.b32.xlu0 %v1451, 120
    %v1459 = vpop.permute.xlu0 %1458
    %1460 = vrot.lane.b32.xlu0 %v1450, 88
    %v1461 = vpop.permute.xlu0 %1460
    %1462 = vrot.lane.b32.xlu0 %v1451, 88
    %v1463 = vpop.permute.xlu0 %1462
    %v1464 = vsel %vm192, %v1457, 0
    %v1466 = vsel %vm192, %v1459, 0
    %v1468 = vsel %vm192, %v1461, 0
    %v1470 = vsel %vm192, %v1463, 0
    %1472 = vmatprep.subr.mxu0 0.0
    %1473 = vmatpush1.xpose.msra.mxu0 %v1468
    %1474 = vmatprep.subr.mxu0 0.0
    %1475 = vmatpush1.xpose.msra.mxu0 %v1470
    %1476 = vmatprep.subr.mxu0 0.0
    %1477 = vmatpush1.xpose.msra.mxu0 0.0
    %1478 = vmatprep.subr.mxu0 0.0
    %1479 = vmatpush1.xpose.msra.mxu0 0.0
    %1480 = vmatprep.subr.mxu0 0.0
    %1481 = vmatpush1.xpose.msra.mxu0 0.0
    %1482 = vmatprep.subr.mxu0 0.0
    %1483 = vmatpush1.xpose.msra.mxu0 0.0
    %1484 = vmatprep.subr.mxu0 0.0
    %1485 = vmatpush1.xpose.msra.mxu0 0.0
    %1486 = vmatprep.subr.mxu0 0.0
    %1487 = vmatpush1.xpose.msra.mxu0 0.0
    %1488 = vmatprep.subr.mxu0 0.0
    %1489 = vmatpush1.xpose.msra.mxu0 0.0
    %1490 = vmatprep.subr.mxu0 0.0
    %1491 = vmatpush1.xpose.msra.mxu0 0.0
    %1492 = vmatprep.subr.mxu0 0.0
    %1493 = vmatpush1.xpose.msra.mxu0 0.0
    %1494 = vmatprep.subr.mxu0 0.0
    %1495 = vmatpush1.xpose.msra.mxu0 0.0
    %1496 = vmatprep.subr.mxu0 0.0
    %1497 = vmatpush1.xpose.msra.mxu0 0.0
    %1498 = vmatprep.subr.mxu0 0.0
    %1499 = vmatpush1.xpose.msra.mxu0 0.0
    %1500 = vmatprep.subr.mxu0 0.0
    %1501 = vmatpush1.xpose.msra.mxu0 0.0
    %1502 = vmatprep.subr.mxu0 0.0
    %1503 = vmatpush1.xpose.msra.mxu0 0.0
    %1504 = vmatprep.subr.mxu0 0.0
    %1505 = vmatpush1.xpose.msra.mxu0 0.0
    %1506 = vmatprep.subr.mxu0 0.0
    %1507 = vmatpush1.xpose.msra.mxu0 0.0
    %1508 = vmatprep.subr.mxu0 0.0
    %1509 = vmatpush1.xpose.msra.mxu0 0.0
    %1510 = vmatprep.subr.mxu0 0.0
    %1511 = vmatpush1.xpose.msra.mxu0 0.0
    %1512 = vmatprep.subr.mxu0 0.0
    %1513 = vmatpush1.xpose.msra.mxu0 0.0
    %1514 = vmatprep.subr.mxu0 0.0
    %1515 = vmatpush1.xpose.msra.mxu0 0.0
    %1516 = vmatprep.subr.mxu0 0.0
    %1517 = vmatpush1.xpose.msra.mxu0 0.0
    %1518 = vmatprep.subr.mxu0 0.0
    %1519 = vmatpush1.xpose.msra.mxu0 0.0
    %1520 = vmatprep.subr.mxu0 0.0
    %1521 = vmatpush1.xpose.msra.mxu0 0.0
    %1522 = vmatprep.subr.mxu0 0.0
    %1523 = vmatpush1.xpose.msra.mxu0 0.0
    %1524 = vmatprep.subr.mxu0 0.0
    %1525 = vmatpush1.xpose.msra.mxu0 0.0
    %1526 = vmatprep.subr.mxu0 0.0
    %1527 = vmatpush1.xpose.msra.mxu0 0.0
    %1528 = vmatprep.subr.mxu0 0.0
    %1529 = vmatpush1.xpose.msra.mxu0 0.0
    %1530 = vmatprep.subr.mxu0 0.0
    %1531 = vmatpush1.xpose.msra.mxu0 0.0
    %1532 = vmatprep.subr.mxu0 0.0
    %1533 = vmatpush1.xpose.msra.mxu0 0.0
    %1534 = vmatprep.subr.mxu0 0.0
    %1535 = vmatpush1.xpose.msra.mxu0 0.0
    %1536 = vmatprep.mubr.f32.mxu0 0.0
    %1537 = vmatmul.mubr.f32.gmra.mrb[0].mxu0 %v1464
    %v1538 = vpop.f32.mrb[0].mxu0
    %v1539 = vadd.f32 %v1452, %v1538
    %v1540 = vpop.f32.mrb[0].mxu0
    %1541 = vmatprep.mubr.f32.mxu0 0.0
    %1542 = vmatmul.mubr.f32.gmra.mrb[0].mxu0 %v1466
    %v1543 = vpop.f32.mrb[0].mxu0
    %v1544 = vadd.f32 %v1453, %v1543
    %v1545 = vpop.f32.mrb[0].mxu0
    %1546 = vdwg.mxu0
    %v1547 = vsel %vm276, %v1539, -inf
    %1548 = vmax.xlane.f32.xlu0 %v1547
    %v1549 = vpop.xlane.xlu0 %1548
    %v1550 = vsel %vm276, %v1544, -inf
    %1551 = vmax.xlane.f32.xlu0 %v1550
    %v1552 = vpop.xlane.xlu0 %1551
    %v1553 = vsub.f32 %v1539, %v1549
    %v1554 = vsub.f32 %v1544, %v1552
    %v1555 = vmul.f32 %v1553, 1.442695
    %v1556 = vpow.pop %v1555
    %v1557 = vmul.f32 %v1554, 1.442695
    %v1558 = vpow.pop %v1557
    %v1559 = vsel %vm276, %v1556, 0.0
    %1560 = vadd.xlane.f32.xlu0 %v1559
    %v1561 = vpop.xlane.xlu0 %1560
    %v1562 = vsel %vm276, %v1558, 0.0
    %1563 = vadd.xlane.f32.xlu0 %v1562
    %v1564 = vpop.xlane.xlu0 %1563
    %v1565 = vrcp.pop %v1561
    %v1566 = vrcp.pop %v1564
    %v1567 = vmul.f32 %v1556, %v1565
    %v1568 = vmul.f32 %v1558, %v1566
    %v1569 = vld [vmem:[#allocation7] sm:$0xff]
    %v1570 = vld [vmem:[#allocation7 + $0x8] sm:$0xff]
    %v1571 = vld [vmem:[%s4] sm:$0xff]
    %1574 = vrot.lane.b32.xlu0 %v1569, 120
    %v1575 = vpop.permute.xlu0 %1574
    %1576 = vrot.lane.b32.xlu0 %v1570, 120
    %v1577 = vpop.permute.xlu0 %1576
    %v1578 = vsel %vm192, %v1575, 0
    %v1580 = vsel %vm192, %v1577, 0
    %1582 = vmatprep.subr.mxu0 0.0
    %v1583 = vand.u32 %v1571, 4294901760
    %1584 = vmatpush1.msra.mxu0 %v1583
    %1585 = vmatprep.subr.mxu0 0.0
    %1586 = vmatpush1.msra.mxu0 0.0
    %1587 = vmatprep.subr.mxu0 0.0
    %1588 = vmatpush1.msra.mxu0 0.0
    %1589 = vmatprep.subr.mxu0 0.0
    %1590 = vmatpush1.msra.mxu0 0.0
    %1591 = vmatprep.subr.mxu0 0.0
    %1592 = vmatpush1.msra.mxu0 0.0
    %1593 = vmatprep.subr.mxu0 0.0
    %1594 = vmatpush1.msra.mxu0 0.0
    %1595 = vmatprep.subr.mxu0 0.0
    %1596 = vmatpush1.msra.mxu0 0.0
    %1597 = vmatprep.subr.mxu0 0.0
    %1598 = vmatpush1.msra.mxu0 0.0
    %1599 = vmatprep.subr.mxu0 0.0
    %1600 = vmatpush1.msra.mxu0 0.0
    %1601 = vmatprep.subr.mxu0 0.0
    %1602 = vmatpush1.msra.mxu0 0.0
    %1603 = vmatprep.subr.mxu0 0.0
    %1604 = vmatpush1.msra.mxu0 0.0
    %1605 = vmatprep.subr.mxu0 0.0
    %1606 = vmatpush1.msra.mxu0 0.0
    %1607 = vmatprep.subr.mxu0 0.0
    %1608 = vmatpush1.msra.mxu0 0.0
    %1609 = vmatprep.subr.mxu0 0.0
    %1610 = vmatpush1.msra.mxu0 0.0
    %1611 = vmatprep.subr.mxu0 0.0
    %1612 = vmatpush1.msra.mxu0 0.0
    %1613 = vmatprep.subr.mxu0 0.0
    %1614 = vmatpush1.msra.mxu0 0.0
    %1615 = vmatprep.subr.mxu0 0.0
    %1616 = vmatpush1.msra.mxu0 0.0
    %1617 = vmatprep.subr.mxu0 0.0
    %1618 = vmatpush1.msra.mxu0 0.0
    %1619 = vmatprep.subr.mxu0 0.0
    %1620 = vmatpush1.msra.mxu0 0.0
    %1621 = vmatprep.subr.mxu0 0.0
    %1622 = vmatpush1.msra.mxu0 0.0
    %1623 = vmatprep.subr.mxu0 0.0
    %1624 = vmatpush1.msra.mxu0 0.0
    %1625 = vmatprep.subr.mxu0 0.0
    %1626 = vmatpush1.msra.mxu0 0.0
    %1627 = vmatprep.subr.mxu0 0.0
    %1628 = vmatpush1.msra.mxu0 0.0
    %1629 = vmatprep.subr.mxu0 0.0
    %1630 = vmatpush1.msra.mxu0 0.0
    %1631 = vmatprep.subr.mxu0 0.0
    %1632 = vmatpush1.msra.mxu0 0.0
    %1633 = vmatprep.subr.mxu0 0.0
    %1634 = vmatpush1.msra.mxu0 0.0
    %1635 = vmatprep.subr.mxu0 0.0
    %1636 = vmatpush1.msra.mxu0 0.0
    %1637 = vmatprep.subr.mxu0 0.0
    %1638 = vmatpush1.msra.mxu0 0.0
    %1639 = vmatprep.subr.mxu0 0.0
    %1640 = vmatpush1.msra.mxu0 0.0
    %1641 = vmatprep.subr.mxu0 0.0
    %1642 = vmatpush1.msra.mxu0 0.0
    %1643 = vmatprep.subr.mxu0 0.0
    %1644 = vmatpush1.msra.mxu0 0.0
    %1645 = vmatprep.subr.mxu0 0.0
    %1646 = vmatpush1.msra.mxu0 0.0
    %1647 = vmatprep.mubr.f32.mxu0 0.0
    %v1648 = vand.u32 %v1578, 4294901760
    %v1649 = vsub.f32 %v1578, %v1648
    %v1650 = vand.u32 %v1649, 4294901760
    %v1651 = vsub.f32 %v1649, %v1650
    %v1652 = vand.u32 %v1651, 4294901760
    %1653 = vmatmul.mubr.f32.gmra.mrb[0].mxu0 %v1652
    %v1654 = vpop.f32.mrb[0].mxu0
    %v1655 = vadd.f32 %v1452, %v1654
    %v1656 = vpop.f32.mrb[0].mxu0
    %1657 = vmatprep.mubr.f32.mxu0 0.0
    %v1658 = vand.u32 %v1580, 4294901760
    %v1659 = vsub.f32 %v1580, %v1658
    %v1660 = vand.u32 %v1659, 4294901760
    %v1661 = vsub.f32 %v1659, %v1660
    %v1662 = vand.u32 %v1661, 4294901760
    %1663 = vmatmul.mubr.f32.gmra.mrb[0].mxu0 %v1662
    %v1664 = vpop.f32.mrb[0].mxu0
    %v1665 = vadd.f32 %v1453, %v1664
    %v1666 = vpop.f32.mrb[0].mxu0
    %1667 = vdwg.mxu0
    %1668 = vmatprep.subr.mxu0 0.0
    %v1669 = vand.u32 %v1571, 4294901760
    %v1670 = vsub.f32 %v1571, %v1669
    %v1671 = vand.u32 %v1670, 4294901760
    %v1672 = vsub.f32 %v1670, %v1671
    %v1673 = vand.u32 %v1672, 4294901760
    %1674 = vmatpush1.msra.mxu0 %v1673
    %1675 = vmatprep.subr.mxu0 0.0
    %1676 = vmatpush1.msra.mxu0 0.0
    %1677 = vmatprep.subr.mxu0 0.0
    %1678 = vmatpush1.msra.mxu0 0.0
    %1679 = vmatprep.subr.mxu0 0.0
    %1680 = vmatpush1.msra.mxu0 0.0
    %1681 = vmatprep.subr.mxu0 0.0
    %1682 = vmatpush1.msra.mxu0 0.0
    %1683 = vmatprep.subr.mxu0 0.0
    %1684 = vmatpush1.msra.mxu0 0.0
    %1685 = vmatprep.subr.mxu0 0.0
    %1686 = vmatpush1.msra.mxu0 0.0
    %1687 = vmatprep.subr.mxu0 0.0
    %1688 = vmatpush1.msra.mxu0 0.0
    %1689 = vmatprep.subr.mxu0 0.0
    %1690 = vmatpush1.msra.mxu0 0.0
    %1691 = vmatprep.subr.mxu0 0.0
    %1692 = vmatpush1.msra.mxu0 0.0
    %1693 = vmatprep.subr.mxu0 0.0
    %1694 = vmatpush1.msra.mxu0 0.0
    %1695 = vmatprep.subr.mxu0 0.0
    %1696 = vmatpush1.msra.mxu0 0.0
    %1697 = vmatprep.subr.mxu0 0.0
    %1698 = vmatpush1.msra.mxu0 0.0
    %1699 = vmatprep.subr.mxu0 0.0
    %1700 = vmatpush1.msra.mxu0 0.0
    %1701 = vmatprep.subr.mxu0 0.0
    %1702 = vmatpush1.msra.mxu0 0.0
    %1703 = vmatprep.subr.mxu0 0.0
    %1704 = vmatpush1.msra.mxu0 0.0
    %1705 = vmatprep.subr.mxu0 0.0
    %1706 = vmatpush1.msra.mxu0 0.0
    %1707 = vmatprep.subr.mxu0 0.0
    %1708 = vmatpush1.msra.mxu0 0.0
    %1709 = vmatprep.subr.mxu0 0.0
    %1710 = vmatpush1.msra.mxu0 0.0
    %1711 = vmatprep.subr.mxu0 0.0
    %1712 = vmatpush1.msra.mxu0 0.0
    %1713 = vmatprep.subr.mxu0 0.0
    %1714 = vmatpush1.msra.mxu0 0.0
    %1715 = vmatprep.subr.mxu0 0.0
    %1716 = vmatpush1.msra.mxu0 0.0
    %1717 = vmatprep.subr.mxu0 0.0
    %1718 = vmatpush1.msra.mxu0 0.0
    %1719 = vmatprep.subr.mxu0 0.0
    %1720 = vmatpush1.msra.mxu0 0.0
    %1721 = vmatprep.subr.mxu0 0.0
    %1722 = vmatpush1.msra.mxu0 0.0
    %1723 = vmatprep.subr.mxu0 0.0
    %1724 = vmatpush1.msra.mxu0 0.0
    %1725 = vmatprep.subr.mxu0 0.0
    %1726 = vmatpush1.msra.mxu0 0.0
    %1727 = vmatprep.subr.mxu0 0.0
    %1728 = vmatpush1.msra.mxu0 0.0
    %1729 = vmatprep.subr.mxu0 0.0
    %1730 = vmatpush1.msra.mxu0 0.0
    %1731 = vmatprep.subr.mxu0 0.0
    %1732 = vmatpush1.msra.mxu0 0.0
    %1733 = vmatprep.subr.mxu0 0.0
    %1734 = vmatpush1.msra.mxu0 0.0
    %1735 = vmatprep.subr.mxu0 0.0
    %1736 = vmatpush1.msra.mxu0 0.0
    %1737 = vmatprep.mubr.f32.mxu0 0.0
    %v1738 = vand.u32 %v1578, 4294901760
    %1739 = vmatmul.mubr.f32.gmra.mrb[0].mxu0 %v1738
    %v1740 = vpop.f32.mrb[0].mxu0
    %v1741 = vadd.f32 %v1655, %v1740
    %v1742 = vpop.f32.mrb[0].mxu0
    %1743 = vmatprep.mubr.f32.mxu0 0.0
    %v1744 = vand.u32 %v1580, 4294901760
    %1745 = vmatmul.mubr.f32.gmra.mrb[0].mxu0 %v1744
    %v1746 = vpop.f32.mrb[0].mxu0
    %v1747 = vadd.f32 %v1665, %v1746
    %v1748 = vpop.f32.mrb[0].mxu0
    %1749 = vdwg.mxu0
    %1750 = vmatprep.subr.mxu0 0.0
    %v1751 = vand.u32 %v1571, 4294901760
    %v1752 = vsub.f32 %v1571, %v1751
    %1753 = vmatpush1.msra.mxu0 %v1752
    %1754 = vmatprep.subr.mxu0 0.0
    %1755 = vmatpush1.msra.mxu0 0.0
    %1756 = vmatprep.subr.mxu0 0.0
    %1757 = vmatpush1.msra.mxu0 0.0
    %1758 = vmatprep.subr.mxu0 0.0
    %1759 = vmatpush1.msra.mxu0 0.0
    %1760 = vmatprep.subr.mxu0 0.0
    %1761 = vmatpush1.msra.mxu0 0.0
    %1762 = vmatprep.subr.mxu0 0.0
    %1763 = vmatpush1.msra.mxu0 0.0
    %1764 = vmatprep.subr.mxu0 0.0
    %1765 = vmatpush1.msra.mxu0 0.0
    %1766 = vmatprep.subr.mxu0 0.0
    %1767 = vmatpush1.msra.mxu0 0.0
    %1768 = vmatprep.subr.mxu0 0.0
    %1769 = vmatpush1.msra.mxu0 0.0
    %1770 = vmatprep.subr.mxu0 0.0
    %1771 = vmatpush1.msra.mxu0 0.0
    %1772 = vmatprep.subr.mxu0 0.0
    %1773 = vmatpush1.msra.mxu0 0.0
    %1774 = vmatprep.subr.mxu0 0.0
    %1775 = vmatpush1.msra.mxu0 0.0
    %1776 = vmatprep.subr.mxu0 0.0
    %1777 = vmatpush1.msra.mxu0 0.0
    %1778 = vmatprep.subr.mxu0 0.0
    %1779 = vmatpush1.msra.mxu0 0.0
    %1780 = vmatprep.subr.mxu0 0.0
    %1781 = vmatpush1.msra.mxu0 0.0
    %1782 = vmatprep.subr.mxu0 0.0
    %1783 = vmatpush1.msra.mxu0 0.0
    %1784 = vmatprep.subr.mxu0 0.0
    %1785 = vmatpush1.msra.mxu0 0.0
    %1786 = vmatprep.subr.mxu0 0.0
    %1787 = vmatpush1.msra.mxu0 0.0
    %1788 = vmatprep.subr.mxu0 0.0
    %1789 = vmatpush1.msra.mxu0 0.0
    %1790 = vmatprep.subr.mxu0 0.0
    %1791 = vmatpush1.msra.mxu0 0.0
    %1792 = vmatprep.subr.mxu0 0.0
    %1793 = vmatpush1.msra.mxu0 0.0
    %1794 = vmatprep.subr.mxu0 0.0
    %1795 = vmatpush1.msra.mxu0 0.0
    %1796 = vmatprep.subr.mxu0 0.0
    %1797 = vmatpush1.msra.mxu0 0.0
    %1798 = vmatprep.subr.mxu0 0.0
    %1799 = vmatpush1.msra.mxu0 0.0
    %1800 = vmatprep.subr.mxu0 0.0
    %1801 = vmatpush1.msra.mxu0 0.0
    %1802 = vmatprep.subr.mxu0 0.0
    %1803 = vmatpush1.msra.mxu0 0.0
    %1804 = vmatprep.subr.mxu0 0.0
    %1805 = vmatpush1.msra.mxu0 0.0
    %1806 = vmatprep.subr.mxu0 0.0
    %1807 = vmatpush1.msra.mxu0 0.0
    %1808 = vmatprep.subr.mxu0 0.0
    %1809 = vmatpush1.msra.mxu0 0.0
    %1810 = vmatprep.subr.mxu0 0.0
    %1811 = vmatpush1.msra.mxu0 0.0
    %1812 = vmatprep.subr.mxu0 0.0
    %1813 = vmatpush1.msra.mxu0 0.0
    %1814 = vmatprep.subr.mxu0 0.0
    %1815 = vmatpush1.msra.mxu0 0.0
    %1816 = vmatprep.mubr.f32.mxu0 0.0
    %v1817 = vand.u32 %v1578, 4294901760
    %v1818 = vsub.f32 %v1578, %v1817
    %1819 = vmatmul.mubr.f32.gmra.mrb[0].mxu0 %v1818
    %v1820 = vpop.f32.mrb[0].mxu0
    %v1821 = vadd.f32 %v1741, %v1820
    %v1822 = vpop.f32.mrb[0].mxu0
    %1823 = vmatprep.mubr.f32.mxu0 0.0
    %v1824 = vand.u32 %v1580, 4294901760
    %v1825 = vsub.f32 %v1580, %v1824
    %1826 = vmatmul.mubr.f32.gmra.mrb[0].mxu0 %v1825
    %v1827 = vpop.f32.mrb[0].mxu0
    %v1828 = vadd.f32 %v1747, %v1827
    %v1829 = vpop.f32.mrb[0].mxu0
    %1830 = vdwg.mxu0
    %1831 = vmatprep.subr.mxu0 0.0
    %v1832 = vand.u32 %v1571, 4294901760
    %1833 = vmatpush1.msra.mxu0 %v1832
    %1834 = vmatprep.subr.mxu0 0.0
    %1835 = vmatpush1.msra.mxu0 0.0
    %1836 = vmatprep.subr.mxu0 0.0
    %1837 = vmatpush1.msra.mxu0 0.0
    %1838 = vmatprep.subr.mxu0 0.0
    %1839 = vmatpush1.msra.mxu0 0.0
    %1840 = vmatprep.subr.mxu0 0.0
    %1841 = vmatpush1.msra.mxu0 0.0
    %1842 = vmatprep.subr.mxu0 0.0
    %1843 = vmatpush1.msra.mxu0 0.0
    %1844 = vmatprep.subr.mxu0 0.0
    %1845 = vmatpush1.msra.mxu0 0.0
    %1846 = vmatprep.subr.mxu0 0.0
    %1847 = vmatpush1.msra.mxu0 0.0
    %1848 = vmatprep.subr.mxu0 0.0
    %1849 = vmatpush1.msra.mxu0 0.0
    %1850 = vmatprep.subr.mxu0 0.0
    %1851 = vmatpush1.msra.mxu0 0.0
    %1852 = vmatprep.subr.mxu0 0.0
    %1853 = vmatpush1.msra.mxu0 0.0
    %1854 = vmatprep.subr.mxu0 0.0
    %1855 = vmatpush1.msra.mxu0 0.0
    %1856 = vmatprep.subr.mxu0 0.0
    %1857 = vmatpush1.msra.mxu0 0.0
    %1858 = vmatprep.subr.mxu0 0.0
    %1859 = vmatpush1.msra.mxu0 0.0
    %1860 = vmatprep.subr.mxu0 0.0
    %1861 = vmatpush1.msra.mxu0 0.0
    %1862 = vmatprep.subr.mxu0 0.0
    %1863 = vmatpush1.msra.mxu0 0.0
    %1864 = vmatprep.subr.mxu0 0.0
    %1865 = vmatpush1.msra.mxu0 0.0
    %1866 = vmatprep.subr.mxu0 0.0
    %1867 = vmatpush1.msra.mxu0 0.0
    %1868 = vmatprep.subr.mxu0 0.0
    %1869 = vmatpush1.msra.mxu0 0.0
    %1870 = vmatprep.subr.mxu0 0.0
    %1871 = vmatpush1.msra.mxu0 0.0
    %1872 = vmatprep.subr.mxu0 0.0
    %1873 = vmatpush1.msra.mxu0 0.0
    %1874 = vmatprep.subr.mxu0 0.0
    %1875 = vmatpush1.msra.mxu0 0.0
    %1876 = vmatprep.subr.mxu0 0.0
    %1877 = vmatpush1.msra.mxu0 0.0
    %1878 = vmatprep.subr.mxu0 0.0
    %1879 = vmatpush1.msra.mxu0 0.0
    %1880 = vmatprep.subr.mxu0 0.0
    %1881 = vmatpush1.msra.mxu0 0.0
    %1882 = vmatprep.subr.mxu0 0.0
    %1883 = vmatpush1.msra.mxu0 0.0
    %1884 = vmatprep.subr.mxu0 0.0
    %1885 = vmatpush1.msra.mxu0 0.0
    %1886 = vmatprep.subr.mxu0 0.0
    %1887 = vmatpush1.msra.mxu0 0.0
    %1888 = vmatprep.subr.mxu0 0.0
    %1889 = vmatpush1.msra.mxu0 0.0
    %1890 = vmatprep.subr.mxu0 0.0
    %1891 = vmatpush1.msra.mxu0 0.0
    %1892 = vmatprep.subr.mxu0 0.0
    %1893 = vmatpush1.msra.mxu0 0.0
    %1894 = vmatprep.subr.mxu0 0.0
    %1895 = vmatpush1.msra.mxu0 0.0
    %1896 = vmatprep.mubr.f32.mxu0 0.0
    %v1897 = vand.u32 %v1578, 4294901760
    %v1898 = vsub.f32 %v1578, %v1897
    %v1899 = vand.u32 %v1898, 4294901760
    %1900 = vmatmul.mubr.f32.gmra.mrb[0].mxu0 %v1899
    %v1901 = vpop.f32.mrb[0].mxu0
    %v1902 = vadd.f32 %v1821, %v1901
    %v1903 = vpop.f32.mrb[0].mxu0
    %1904 = vmatprep.mubr.f32.mxu0 0.0
    %v1905 = vand.u32 %v1580, 4294901760
    %v1906 = vsub.f32 %v1580, %v1905
    %v1907 = vand.u32 %v1906, 4294901760
    %1908 = vmatmul.mubr.f32.gmra.mrb[0].mxu0 %v1907
    %v1909 = vpop.f32.mrb[0].mxu0
    %v1910 = vadd.f32 %v1828, %v1909
    %v1911 = vpop.f32.mrb[0].mxu0
    %1912 = vdwg.mxu0
    %1913 = vmatprep.subr.mxu0 0.0
    %v1914 = vand.u32 %v1571, 4294901760
    %v1915 = vsub.f32 %v1571, %v1914
    %v1916 = vand.u32 %v1915, 4294901760
    %1917 = vmatpush1.msra.mxu0 %v1916
    %1918 = vmatprep.subr.mxu0 0.0
    %1919 = vmatpush1.msra.mxu0 0.0
    %1920 = vmatprep.subr.mxu0 0.0
    %1921 = vmatpush1.msra.mxu0 0.0
    %1922 = vmatprep.subr.mxu0 0.0
    %1923 = vmatpush1.msra.mxu0 0.0
    %1924 = vmatprep.subr.mxu0 0.0
    %1925 = vmatpush1.msra.mxu0 0.0
    %1926 = vmatprep.subr.mxu0 0.0
    %1927 = vmatpush1.msra.mxu0 0.0
    %1928 = vmatprep.subr.mxu0 0.0
    %1929 = vmatpush1.msra.mxu0 0.0
    %1930 = vmatprep.subr.mxu0 0.0
    %1931 = vmatpush1.msra.mxu0 0.0
    %1932 = vmatprep.subr.mxu0 0.0
    %1933 = vmatpush1.msra.mxu0 0.0
    %1934 = vmatprep.subr.mxu0 0.0
    %1935 = vmatpush1.msra.mxu0 0.0
    %1936 = vmatprep.subr.mxu0 0.0
    %1937 = vmatpush1.msra.mxu0 0.0
    %1938 = vmatprep.subr.mxu0 0.0
    %1939 = vmatpush1.msra.mxu0 0.0
    %1940 = vmatprep.subr.mxu0 0.0
    %1941 = vmatpush1.msra.mxu0 0.0
    %1942 = vmatprep.subr.mxu0 0.0
    %1943 = vmatpush1.msra.mxu0 0.0
    %1944 = vmatprep.subr.mxu0 0.0
    %1945 = vmatpush1.msra.mxu0 0.0
    %1946 = vmatprep.subr.mxu0 0.0
    %1947 = vmatpush1.msra.mxu0 0.0
    %1948 = vmatprep.subr.mxu0 0.0
    %1949 = vmatpush1.msra.mxu0 0.0
    %1950 = vmatprep.subr.mxu0 0.0
    %1951 = vmatpush1.msra.mxu0 0.0
    %1952 = vmatprep.subr.mxu0 0.0
    %1953 = vmatpush1.msra.mxu0 0.0
    %1954 = vmatprep.subr.mxu0 0.0
    %1955 = vmatpush1.msra.mxu0 0.0
    %1956 = vmatprep.subr.mxu0 0.0
    %1957 = vmatpush1.msra.mxu0 0.0
    %1958 = vmatprep.subr.mxu0 0.0
    %1959 = vmatpush1.msra.mxu0 0.0
    %1960 = vmatprep.subr.mxu0 0.0
    %1961 = vmatpush1.msra.mxu0 0.0
    %1962 = vmatprep.subr.mxu0 0.0
    %1963 = vmatpush1.msra.mxu0 0.0
    %1964 = vmatprep.subr.mxu0 0.0
    %1965 = vmatpush1.msra.mxu0 0.0
    %1966 = vmatprep.subr.mxu0 0.0
    %1967 = vmatpush1.msra.mxu0 0.0
    %1968 = vmatprep.subr.mxu0 0.0
    %1969 = vmatpush1.msra.mxu0 0.0
    %1970 = vmatprep.subr.mxu0 0.0
    %1971 = vmatpush1.msra.mxu0 0.0
    %1972 = vmatprep.subr.mxu0 0.0
    %1973 = vmatpush1.msra.mxu0 0.0
    %1974 = vmatprep.subr.mxu0 0.0
    %1975 = vmatpush1.msra.mxu0 0.0
    %1976 = vmatprep.subr.mxu0 0.0
    %1977 = vmatpush1.msra.mxu0 0.0
    %1978 = vmatprep.subr.mxu0 0.0
    %1979 = vmatpush1.msra.mxu0 0.0
    %1980 = vmatprep.mubr.f32.mxu0 0.0
    %v1981 = vand.u32 %v1578, 4294901760
    %1982 = vmatmul.mubr.f32.gmra.mrb[0].mxu0 %v1981
    %v1983 = vpop.f32.mrb[0].mxu0
    %v1984 = vadd.f32 %v1902, %v1983
    %v1985 = vpop.f32.mrb[0].mxu0
    %1986 = vmatprep.mubr.f32.mxu0 0.0
    %v1987 = vand.u32 %v1580, 4294901760
    %1988 = vmatmul.mubr.f32.gmra.mrb[0].mxu0 %v1987
    %v1989 = vpop.f32.mrb[0].mxu0
    %v1990 = vadd.f32 %v1910, %v1989
    %v1991 = vpop.f32.mrb[0].mxu0
    %1992 = vdwg.mxu0
    %1993 = vmatprep.subr.mxu0 0.0
    %v1994 = vand.u32 %v1571, 4294901760
    %1995 = vmatpush1.msra.mxu0 %v1994
    %1996 = vmatprep.subr.mxu0 0.0
    %1997 = vmatpush1.msra.mxu0 0.0
    %1998 = vmatprep.subr.mxu0 0.0
    %1999 = vmatpush1.msra.mxu0 0.0
    %2000 = vmatprep.subr.mxu0 0.0
    %2001 = vmatpush1.msra.mxu0 0.0
    %2002 = vmatprep.subr.mxu0 0.0
    %2003 = vmatpush1.msra.mxu0 0.0
    %2004 = vmatprep.subr.mxu0 0.0
    %2005 = vmatpush1.msra.mxu0 0.0
    %2006 = vmatprep.subr.mxu0 0.0
    %2007 = vmatpush1.msra.mxu0 0.0
    %2008 = vmatprep.subr.mxu0 0.0
    %2009 = vmatpush1.msra.mxu0 0.0
    %2010 = vmatprep.subr.mxu0 0.0
    %2011 = vmatpush1.msra.mxu0 0.0
    %2012 = vmatprep.subr.mxu0 0.0
    %2013 = vmatpush1.msra.mxu0 0.0
    %2014 = vmatprep.subr.mxu0 0.0
    %2015 = vmatpush1.msra.mxu0 0.0
    %2016 = vmatprep.subr.mxu0 0.0
    %2017 = vmatpush1.msra.mxu0 0.0
    %2018 = vmatprep.subr.mxu0 0.0
    %2019 = vmatpush1.msra.mxu0 0.0
    %2020 = vmatprep.subr.mxu0 0.0
    %2021 = vmatpush1.msra.mxu0 0.0
    %2022 = vmatprep.subr.mxu0 0.0
    %2023 = vmatpush1.msra.mxu0 0.0
    %2024 = vmatprep.subr.mxu0 0.0
    %2025 = vmatpush1.msra.mxu0 0.0
    %2026 = vmatprep.subr.mxu0 0.0
    %2027 = vmatpush1.msra.mxu0 0.0
    %2028 = vmatprep.subr.mxu0 0.0
    %2029 = vmatpush1.msra.mxu0 0.0
    %2030 = vmatprep.subr.mxu0 0.0
    %2031 = vmatpush1.msra.mxu0 0.0
    %2032 = vmatprep.subr.mxu0 0.0
    %2033 = vmatpush1.msra.mxu0 0.0
    %2034 = vmatprep.subr.mxu0 0.0
    %2035 = vmatpush1.msra.mxu0 0.0
    %2036 = vmatprep.subr.mxu0 0.0
    %2037 = vmatpush1.msra.mxu0 0.0
    %2038 = vmatprep.subr.mxu0 0.0
    %2039 = vmatpush1.msra.mxu0 0.0
    %2040 = vmatprep.subr.mxu0 0.0
    %2041 = vmatpush1.msra.mxu0 0.0
    %2042 = vmatprep.subr.mxu0 0.0
    %2043 = vmatpush1.msra.mxu0 0.0
    %2044 = vmatprep.subr.mxu0 0.0
    %2045 = vmatpush1.msra.mxu0 0.0
    %2046 = vmatprep.subr.mxu0 0.0
    %2047 = vmatpush1.msra.mxu0 0.0
    %2048 = vmatprep.subr.mxu0 0.0
    %2049 = vmatpush1.msra.mxu0 0.0
    %2050 = vmatprep.subr.mxu0 0.0
    %2051 = vmatpush1.msra.mxu0 0.0
    %2052 = vmatprep.subr.mxu0 0.0
    %2053 = vmatpush1.msra.mxu0 0.0
    %2054 = vmatprep.subr.mxu0 0.0
    %2055 = vmatpush1.msra.mxu0 0.0
    %2056 = vmatprep.subr.mxu0 0.0
    %2057 = vmatpush1.msra.mxu0 0.0
    %2058 = vmatprep.mubr.f32.mxu0 0.0
    %v2059 = vand.u32 %v1578, 4294901760
    %2060 = vmatmul.mubr.f32.gmra.mrb[0].mxu0 %v2059
    %v2061 = vpop.f32.mrb[0].mxu0
    %v2062 = vadd.f32 %v1984, %v2061
    %v2063 = vpop.f32.mrb[0].mxu0
    %2064 = vmatprep.mubr.f32.mxu0 0.0
    %v2065 = vand.u32 %v1580, 4294901760
    %2066 = vmatmul.mubr.f32.gmra.mrb[0].mxu0 %v2065
    %v2067 = vpop.f32.mrb[0].mxu0
    %v2068 = vadd.f32 %v1990, %v2067
    %v2069 = vpop.f32.mrb[0].mxu0
    %2070 = vdwg.mxu0
    %v2071 = vsel %vm276, %v2062, -inf
    %2072 = vmax.xlane.f32.xlu0 %v2071
    %v2073 = vpop.xlane.xlu0 %2072
    %v2074 = vsel %vm276, %v2068, -inf
    %2075 = vmax.xlane.f32.xlu0 %v2074
    %v2076 = vpop.xlane.xlu0 %2075
    %v2077 = vsub.f32 %v2062, %v2073
    %v2078 = vsub.f32 %v2068, %v2076
    %v2079 = vmul.f32 %v2077, 1.442695
    %v2080 = vpow.pop %v2079
    %v2081 = vmul.f32 %v2078, 1.442695
    %v2082 = vpow.pop %v2081
    %v2083 = vsel %vm276, %v2080, 0.0
    %2084 = vadd.xlane.f32.xlu0 %v2083
    %v2085 = vpop.xlane.xlu0 %2084
    %v2086 = vsel %vm276, %v2082, 0.0
    %2087 = vadd.xlane.f32.xlu0 %v2086
    %v2088 = vpop.xlane.xlu0 %2087
    %v2089 = vrcp.pop %v2085
    %v2090 = vrcp.pop %v2088
    %v2091 = vmul.f32 %v2080, %v2089
    %v2092 = vmul.f32 %v2082, %v2090
    %v2093 = vld [vmem:[%s2] sm:$0x1]
    %v2094 = vsub.f32 1.0, %v2093
    %v2096 = vlaneseq
    %v2097 = vshrl.u32 %v2096, 7
    %v2098 = vsub.s32 0, %v2097
    %v2099 = vrot.slane %v2094, %v2098
    %2100 = vset.pattern.permute.xlu0 1
    %2101 = vperm.xlu0 %2100, %v2099
    %v2102 = vpop.permute.xlu0 %2101
    %v2104 = vmul.f32 %v2102, %v1567
    %v2105 = vmul.f32 %v2102, %v1568
    %v2107 = vlaneseq
    %v2108 = vshrl.u32 %v2107, 7
    %v2109 = vsub.s32 0, %v2108
    %v2110 = vrot.slane %v2093, %v2109
    %2111 = vset.pattern.permute.xlu0 1
    %2112 = vperm.xlu0 %2111, %v2110
    %v2113 = vpop.permute.xlu0 %2112
    %v2115 = vmul.f32 %v2113, %v2091
    %v2116 = vmul.f32 %v2113, %v2092
    %v2117 = vadd.f32 %v2104, %v2115
    %v2118 = vadd.f32 %v2105, %v2116
    %v2119 = vsel %vm276, %v2117, 0.0
    %2120 = vadd.xlane.f32.xlu0 %v2119
    %v2121 = vpop.xlane.xlu0 %2120
    %v2122 = vsel %vm276, %v2118, 0.0
    %2123 = vadd.xlane.f32.xlu0 %v2122
    %v2124 = vpop.xlane.xlu0 %2123
    %v2125 = vrcp.pop %v2121
    %v2126 = vrcp.pop %v2124
    %v2127 = vmul.f32 %v2117, %v2125
    %v2128 = vmul.f32 %v2118, %v2126
    %v2129 = vld [vmem:[%s5] sm:$0xff]
    %v2130 = vld [vmem:[%s5 + $0x8] sm:$0xff]
    %v2132 = vsel %vm276, %v2127, 0
    %v2135 = vsel %vm276, %v2128, 0
    %2137 = vmatprep.subr.mxu0 0.0
    %v2138 = vand.u32 %v2129, 4294901760
    %2139 = vmatpush1.msra.mxu0 %v2138
    %2140 = vmatprep.subr.mxu0 0.0
    %v2141 = vand.u32 %v2130, 4294901760
    %2142 = vmatpush1.msra.mxu0 %v2141
    %2143 = vmatprep.subr.mxu0 0.0
    %2144 = vmatpush1.msra.mxu0 0.0
    %2145 = vmatprep.subr.mxu0 0.0
    %2146 = vmatpush1.msra.mxu0 0.0
    %2147 = vmatprep.subr.mxu0 0.0
    %2148 = vmatpush1.msra.mxu0 0.0
    %2149 = vmatprep.subr.mxu0 0.0
    %2150 = vmatpush1.msra.mxu0 0.0
    %2151 = vmatprep.subr.mxu0 0.0
    %2152 = vmatpush1.msra.mxu0 0.0
    %2153 = vmatprep.subr.mxu0 0.0
    %2154 = vmatpush1.msra.mxu0 0.0
    %2155 = vmatprep.subr.mxu0 0.0
    %2156 = vmatpush1.msra.mxu0 0.0
    %2157 = vmatprep.subr.mxu0 0.0
    %2158 = vmatpush1.msra.mxu0 0.0
    %2159 = vmatprep.subr.mxu0 0.0
    %2160 = vmatpush1.msra.mxu0 0.0
    %2161 = vmatprep.subr.mxu0 0.0
    %2162 = vmatpush1.msra.mxu0 0.0
    %2163 = vmatprep.subr.mxu0 0.0
    %2164 = vmatpush1.msra.mxu0 0.0
    %2165 = vmatprep.subr.mxu0 0.0
    %2166 = vmatpush1.msra.mxu0 0.0
    %2167 = vmatprep.subr.mxu0 0.0
    %2168 = vmatpush1.msra.mxu0 0.0
    %2169 = vmatprep.subr.mxu0 0.0
    %2170 = vmatpush1.msra.mxu0 0.0
    %2171 = vmatprep.subr.mxu0 0.0
    %2172 = vmatpush1.msra.mxu0 0.0
    %2173 = vmatprep.subr.mxu0 0.0
    %2174 = vmatpush1.msra.mxu0 0.0
    %2175 = vmatprep.subr.mxu0 0.0
    %2176 = vmatpush1.msra.mxu0 0.0
    %2177 = vmatprep.subr.mxu0 0.0
    %2178 = vmatpush1.msra.mxu0 0.0
    %2179 = vmatprep.subr.mxu0 0.0
    %2180 = vmatpush1.msra.mxu0 0.0
    %2181 = vmatprep.subr.mxu0 0.0
    %2182 = vmatpush1.msra.mxu0 0.0
    %2183 = vmatprep.subr.mxu0 0.0
    %2184 = vmatpush1.msra.mxu0 0.0
    %2185 = vmatprep.subr.mxu0 0.0
    %2186 = vmatpush1.msra.mxu0 0.0
    %2187 = vmatprep.subr.mxu0 0.0
    %2188 = vmatpush1.msra.mxu0 0.0
    %2189 = vmatprep.subr.mxu0 0.0
    %2190 = vmatpush1.msra.mxu0 0.0
    %2191 = vmatprep.subr.mxu0 0.0
    %2192 = vmatpush1.msra.mxu0 0.0
    %2193 = vmatprep.subr.mxu0 0.0
    %2194 = vmatpush1.msra.mxu0 0.0
    %2195 = vmatprep.subr.mxu0 0.0
    %2196 = vmatpush1.msra.mxu0 0.0
    %2197 = vmatprep.subr.mxu0 0.0
    %2198 = vmatpush1.msra.mxu0 0.0
    %2199 = vmatprep.subr.mxu0 0.0
    %2200 = vmatpush1.msra.mxu0 0.0
    %2201 = vmatprep.subr.mxu0 0.0
    %2202 = vmatpush1.msra.mxu0 0.0
    %2203 = vmatprep.mubr.f32.mxu0 0.0
    %v2204 = vand.u32 %v2132, 4294901760
    %v2205 = vsub.f32 %v2132, %v2204
    %v2206 = vand.u32 %v2205, 4294901760
    %v2207 = vsub.f32 %v2205, %v2206
    %v2208 = vand.u32 %v2207, 4294901760
    %2209 = vmatmul.mubr.f32.gmra.mrb[0].mxu0 %v2208
    %v2210 = vpop.f32.mrb[0].mxu0
    %v2211 = vadd.f32 0.0, %v2210
    %v2212 = vpop.f32.mrb[0].mxu0
    %2213 = vmatprep.mubr.f32.mxu0 0.0
    %v2214 = vand.u32 %v2135, 4294901760
    %v2215 = vsub.f32 %v2135, %v2214
    %v2216 = vand.u32 %v2215, 4294901760
    %v2217 = vsub.f32 %v2215, %v2216
    %v2218 = vand.u32 %v2217, 4294901760
    %2219 = vmatmul.mubr.f32.gmra.mrb[0].mxu0 %v2218
    %v2220 = vpop.f32.mrb[0].mxu0
    %v2221 = vadd.f32 0.0, %v2220
    %v2222 = vpop.f32.mrb[0].mxu0
    %2223 = vdwg.mxu0
    %2224 = vmatprep.subr.mxu0 0.0
    %v2225 = vand.u32 %v2129, 4294901760
    %v2226 = vsub.f32 %v2129, %v2225
    %v2227 = vand.u32 %v2226, 4294901760
    %v2228 = vsub.f32 %v2226, %v2227
    %v2229 = vand.u32 %v2228, 4294901760
    %2230 = vmatpush1.msra.mxu0 %v2229
    %2231 = vmatprep.subr.mxu0 0.0
    %v2232 = vand.u32 %v2130, 4294901760
    %v2233 = vsub.f32 %v2130, %v2232
    %v2234 = vand.u32 %v2233, 4294901760
    %v2235 = vsub.f32 %v2233, %v2234
    %v2236 = vand.u32 %v2235, 4294901760
    %2237 = vmatpush1.msra.mxu0 %v2236
    %2238 = vmatprep.subr.mxu0 0.0
    %2239 = vmatpush1.msra.mxu0 0.0
    %2240 = vmatprep.subr.mxu0 0.0
    %2241 = vmatpush1.msra.mxu0 0.0
    %2242 = vmatprep.subr.mxu0 0.0
    %2243 = vmatpush1.msra.mxu0 0.0
    %2244 = vmatprep.subr.mxu0 0.0
    %2245 = vmatpush1.msra.mxu0 0.0
    %2246 = vmatprep.subr.mxu0 0.0
    %2247 = vmatpush1.msra.mxu0 0.0
    %2248 = vmatprep.subr.mxu0 0.0
    %2249 = vmatpush1.msra.mxu0 0.0
    %2250 = vmatprep.subr.mxu0 0.0
    %2251 = vmatpush1.msra.mxu0 0.0
    %2252 = vmatprep.subr.mxu0 0.0
    %2253 = vmatpush1.msra.mxu0 0.0
    %2254 = vmatprep.subr.mxu0 0.0
    %2255 = vmatpush1.msra.mxu0 0.0
    %2256 = vmatprep.subr.mxu0 0.0
    %2257 = vmatpush1.msra.mxu0 0.0
    %2258 = vmatprep.subr.mxu0 0.0
    %2259 = vmatpush1.msra.mxu0 0.0
    %2260 = vmatprep.subr.mxu0 0.0
    %2261 = vmatpush1.msra.mxu0 0.0
    %2262 = vmatprep.subr.mxu0 0.0
    %2263 = vmatpush1.msra.mxu0 0.0
    %2264 = vmatprep.subr.mxu0 0.0
    %2265 = vmatpush1.msra.mxu0 0.0
    %2266 = vmatprep.subr.mxu0 0.0
    %2267 = vmatpush1.msra.mxu0 0.0
    %2268 = vmatprep.subr.mxu0 0.0
    %2269 = vmatpush1.msra.mxu0 0.0
    %2270 = vmatprep.subr.mxu0 0.0
    %2271 = vmatpush1.msra.mxu0 0.0
    %2272 = vmatprep.subr.mxu0 0.0
    %2273 = vmatpush1.msra.mxu0 0.0
    %2274 = vmatprep.subr.mxu0 0.0
    %2275 = vmatpush1.msra.mxu0 0.0
    %2276 = vmatprep.subr.mxu0 0.0
    %2277 = vmatpush1.msra.mxu0 0.0
    %2278 = vmatprep.subr.mxu0 0.0
    %2279 = vmatpush1.msra.mxu0 0.0
    %2280 = vmatprep.subr.mxu0 0.0
    %2281 = vmatpush1.msra.mxu0 0.0
    %2282 = vmatprep.subr.mxu0 0.0
    %2283 = vmatpush1.msra.mxu0 0.0
    %2284 = vmatprep.subr.mxu0 0.0
    %2285 = vmatpush1.msra.mxu0 0.0
    %2286 = vmatprep.subr.mxu0 0.0
    %2287 = vmatpush1.msra.mxu0 0.0
    %2288 = vmatprep.subr.mxu0 0.0
    %2289 = vmatpush1.msra.mxu0 0.0
    %2290 = vmatprep.subr.mxu0 0.0
    %2291 = vmatpush1.msra.mxu0 0.0
    %2292 = vmatprep.subr.mxu0 0.0
    %2293 = vmatpush1.msra.mxu0 0.0
    %2294 = vmatprep.subr.mxu0 0.0
    %2295 = vmatpush1.msra.mxu0 0.0
    %2296 = vmatprep.subr.mxu0 0.0
    %2297 = vmatpush1.msra.mxu0 0.0
    %2298 = vmatprep.mubr.f32.mxu0 0.0
    %v2299 = vand.u32 %v2132, 4294901760
    %2300 = vmatmul.mubr.f32.gmra.mrb[0].mxu0 %v2299
    %v2301 = vpop.f32.mrb[0].mxu0
    %v2302 = vadd.f32 %v2211, %v2301
    %v2303 = vpop.f32.mrb[0].mxu0
    %2304 = vmatprep.mubr.f32.mxu0 0.0
    %v2305 = vand.u32 %v2135, 4294901760
    %2306 = vmatmul.mubr.f32.gmra.mrb[0].mxu0 %v2305
    %v2307 = vpop.f32.mrb[0].mxu0
    %v2308 = vadd.f32 %v2221, %v2307
    %v2309 = vpop.f32.mrb[0].mxu0
    %2310 = vdwg.mxu0
    %2311 = vmatprep.subr.mxu0 0.0
    %v2312 = vand.u32 %v2129, 4294901760
    %v2313 = vsub.f32 %v2129, %v2312
    %2314 = vmatpush1.msra.mxu0 %v2313
    %2315 = vmatprep.subr.mxu0 0.0
    %v2316 = vand.u32 %v2130, 4294901760
    %v2317 = vsub.f32 %v2130, %v2316
    %2318 = vmatpush1.msra.mxu0 %v2317
    %2319 = vmatprep.subr.mxu0 0.0
    %2320 = vmatpush1.msra.mxu0 0.0
    %2321 = vmatprep.subr.mxu0 0.0
    %2322 = vmatpush1.msra.mxu0 0.0
    %2323 = vmatprep.subr.mxu0 0.0
    %2324 = vmatpush1.msra.mxu0 0.0
    %2325 = vmatprep.subr.mxu0 0.0
    %2326 = vmatpush1.msra.mxu0 0.0
    %2327 = vmatprep.subr.mxu0 0.0
    %2328 = vmatpush1.msra.mxu0 0.0
    %2329 = vmatprep.subr.mxu0 0.0
    %2330 = vmatpush1.msra.mxu0 0.0
    %2331 = vmatprep.subr.mxu0 0.0
    %2332 = vmatpush1.msra.mxu0 0.0
    %2333 = vmatprep.subr.mxu0 0.0
    %2334 = vmatpush1.msra.mxu0 0.0
    %2335 = vmatprep.subr.mxu0 0.0
    %2336 = vmatpush1.msra.mxu0 0.0
    %2337 = vmatprep.subr.mxu0 0.0
    %2338 = vmatpush1.msra.mxu0 0.0
    %2339 = vmatprep.subr.mxu0 0.0
    %2340 = vmatpush1.msra.mxu0 0.0
    %2341 = vmatprep.subr.mxu0 0.0
    %2342 = vmatpush1.msra.mxu0 0.0
    %2343 = vmatprep.subr.mxu0 0.0
    %2344 = vmatpush1.msra.mxu0 0.0
    %2345 = vmatprep.subr.mxu0 0.0
    %2346 = vmatpush1.msra.mxu0 0.0
    %2347 = vmatprep.subr.mxu0 0.0
    %2348 = vmatpush1.msra.mxu0 0.0
    %2349 = vmatprep.subr.mxu0 0.0
    %2350 = vmatpush1.msra.mxu0 0.0
    %2351 = vmatprep.subr.mxu0 0.0
    %2352 = vmatpush1.msra.mxu0 0.0
    %2353 = vmatprep.subr.mxu0 0.0
    %2354 = vmatpush1.msra.mxu0 0.0
    %2355 = vmatprep.subr.mxu0 0.0
    %2356 = vmatpush1.msra.mxu0 0.0
    %2357 = vmatprep.subr.mxu0 0.0
    %2358 = vmatpush1.msra.mxu0 0.0
    %2359 = vmatprep.subr.mxu0 0.0
    %2360 = vmatpush1.msra.mxu0 0.0
    %2361 = vmatprep.subr.mxu0 0.0
    %2362 = vmatpush1.msra.mxu0 0.0
    %2363 = vmatprep.subr.mxu0 0.0
    %2364 = vmatpush1.msra.mxu0 0.0
    %2365 = vmatprep.subr.mxu0 0.0
    %2366 = vmatpush1.msra.mxu0 0.0
    %2367 = vmatprep.subr.mxu0 0.0
    %2368 = vmatpush1.msra.mxu0 0.0
    %2369 = vmatprep.subr.mxu0 0.0
    %2370 = vmatpush1.msra.mxu0 0.0
    %2371 = vmatprep.subr.mxu0 0.0
    %2372 = vmatpush1.msra.mxu0 0.0
    %2373 = vmatprep.subr.mxu0 0.0
    %2374 = vmatpush1.msra.mxu0 0.0
    %2375 = vmatprep.subr.mxu0 0.0
    %2376 = vmatpush1.msra.mxu0 0.0
    %2377 = vmatprep.subr.mxu0 0.0
    %2378 = vmatpush1.msra.mxu0 0.0
    %2379 = vmatprep.mubr.f32.mxu0 0.0
    %v2380 = vand.u32 %v2132, 4294901760
    %v2381 = vsub.f32 %v2132, %v2380
    %2382 = vmatmul.mubr.f32.gmra.mrb[0].mxu0 %v2381
    %v2383 = vpop.f32.mrb[0].mxu0
    %v2384 = vadd.f32 %v2302, %v2383
    %v2385 = vpop.f32.mrb[0].mxu0
    %2386 = vmatprep.mubr.f32.mxu0 0.0
    %v2387 = vand.u32 %v2135, 4294901760
    %v2388 = vsub.f32 %v2135, %v2387
    %2389 = vmatmul.mubr.f32.gmra.mrb[0].mxu0 %v2388
    %v2390 = vpop.f32.mrb[0].mxu0
    %v2391 = vadd.f32 %v2308, %v2390
    %v2392 = vpop.f32.mrb[0].mxu0
    %2393 = vdwg.mxu0
    %2394 = vmatprep.subr.mxu0 0.0
    %v2395 = vand.u32 %v2129, 4294901760
    %2396 = vmatpush1.msra.mxu0 %v2395
    %2397 = vmatprep.subr.mxu0 0.0
    %v2398 = vand.u32 %v2130, 4294901760
    %2399 = vmatpush1.msra.mxu0 %v2398
    %2400 = vmatprep.subr.mxu0 0.0
    %2401 = vmatpush1.msra.mxu0 0.0
    %2402 = vmatprep.subr.mxu0 0.0
    %2403 = vmatpush1.msra.mxu0 0.0
    %2404 = vmatprep.subr.mxu0 0.0
    %2405 = vmatpush1.msra.mxu0 0.0
    %2406 = vmatprep.subr.mxu0 0.0
    %2407 = vmatpush1.msra.mxu0 0.0
    %2408 = vmatprep.subr.mxu0 0.0
    %2409 = vmatpush1.msra.mxu0 0.0
    %2410 = vmatprep.subr.mxu0 0.0
    %2411 = vmatpush1.msra.mxu0 0.0
    %2412 = vmatprep.subr.mxu0 0.0
    %2413 = vmatpush1.msra.mxu0 0.0
    %2414 = vmatprep.subr.mxu0 0.0
    %2415 = vmatpush1.msra.mxu0 0.0
    %2416 = vmatprep.subr.mxu0 0.0
    %2417 = vmatpush1.msra.mxu0 0.0
    %2418 = vmatprep.subr.mxu0 0.0
    %2419 = vmatpush1.msra.mxu0 0.0
    %2420 = vmatprep.subr.mxu0 0.0
    %2421 = vmatpush1.msra.mxu0 0.0
    %2422 = vmatprep.subr.mxu0 0.0
    %2423 = vmatpush1.msra.mxu0 0.0
    %2424 = vmatprep.subr.mxu0 0.0
    %2425 = vmatpush1.msra.mxu0 0.0
    %2426 = vmatprep.subr.mxu0 0.0
    %2427 = vmatpush1.msra.mxu0 0.0
    %2428 = vmatprep.subr.mxu0 0.0
    %2429 = vmatpush1.msra.mxu0 0.0
    %2430 = vmatprep.subr.mxu0 0.0
    %2431 = vmatpush1.msra.mxu0 0.0
    %2432 = vmatprep.subr.mxu0 0.0
    %2433 = vmatpush1.msra.mxu0 0.0
    %2434 = vmatprep.subr.mxu0 0.0
    %2435 = vmatpush1.msra.mxu0 0.0
    %2436 = vmatprep.subr.mxu0 0.0
    %2437 = vmatpush1.msra.mxu0 0.0
    %2438 = vmatprep.subr.mxu0 0.0
    %2439 = vmatpush1.msra.mxu0 0.0
    %2440 = vmatprep.subr.mxu0 0.0
    %2441 = vmatpush1.msra.mxu0 0.0
    %2442 = vmatprep.subr.mxu0 0.0
    %2443 = vmatpush1.msra.mxu0 0.0
    %2444 = vmatprep.subr.mxu0 0.0
    %2445 = vmatpush1.msra.mxu0 0.0
    %2446 = vmatprep.subr.mxu0 0.0
    %2447 = vmatpush1.msra.mxu0 0.0
    %2448 = vmatprep.subr.mxu0 0.0
    %2449 = vmatpush1.msra.mxu0 0.0
    %2450 = vmatprep.subr.mxu0 0.0
    %2451 = vmatpush1.msra.mxu0 0.0
    %2452 = vmatprep.subr.mxu0 0.0
    %2453 = vmatpush1.msra.mxu0 0.0
    %2454 = vmatprep.subr.mxu0 0.0
    %2455 = vmatpush1.msra.mxu0 0.0
    %2456 = vmatprep.subr.mxu0 0.0
    %2457 = vmatpush1.msra.mxu0 0.0
    %2458 = vmatprep.subr.mxu0 0.0
    %2459 = vmatpush1.msra.mxu0 0.0
    %2460 = vmatprep.mubr.f32.mxu0 0.0
    %v2461 = vand.u32 %v2132, 4294901760
    %v2462 = vsub.f32 %v2132, %v2461
    %v2463 = vand.u32 %v2462, 4294901760
    %2464 = vmatmul.mubr.f32.gmra.mrb[0].mxu0 %v2463
    %v2465 = vpop.f32.mrb[0].mxu0
    %v2466 = vadd.f32 %v2384, %v2465
    %v2467 = vpop.f32.mrb[0].mxu0
    %2468 = vmatprep.mubr.f32.mxu0 0.0
    %v2469 = vand.u32 %v2135, 4294901760
    %v2470 = vsub.f32 %v2135, %v2469
    %v2471 = vand.u32 %v2470, 4294901760
    %2472 = vmatmul.mubr.f32.gmra.mrb[0].mxu0 %v2471
    %v2473 = vpop.f32.mrb[0].mxu0
    %v2474 = vadd.f32 %v2391, %v2473
    %v2475 = vpop.f32.mrb[0].mxu0
    %2476 = vdwg.mxu0
    %2477 = vmatprep.subr.mxu0 0.0
    %v2478 = vand.u32 %v2129, 4294901760
    %v2479 = vsub.f32 %v2129, %v2478
    %v2480 = vand.u32 %v2479, 4294901760
    %2481 = vmatpush1.msra.mxu0 %v2480
    %2482 = vmatprep.subr.mxu0 0.0
    %v2483 = vand.u32 %v2130, 4294901760
    %v2484 = vsub.f32 %v2130, %v2483
    %v2485 = vand.u32 %v2484, 4294901760
    %2486 = vmatpush1.msra.mxu0 %v2485
    %2487 = vmatprep.subr.mxu0 0.0
    %2488 = vmatpush1.msra.mxu0 0.0
    %2489 = vmatprep.subr.mxu0 0.0
    %2490 = vmatpush1.msra.mxu0 0.0
    %2491 = vmatprep.subr.mxu0 0.0
    %2492 = vmatpush1.msra.mxu0 0.0
    %2493 = vmatprep.subr.mxu0 0.0
    %2494 = vmatpush1.msra.mxu0 0.0
    %2495 = vmatprep.subr.mxu0 0.0
    %2496 = vmatpush1.msra.mxu0 0.0
    %2497 = vmatprep.subr.mxu0 0.0
    %2498 = vmatpush1.msra.mxu0 0.0
    %2499 = vmatprep.subr.mxu0 0.0
    %2500 = vmatpush1.msra.mxu0 0.0
    %2501 = vmatprep.subr.mxu0 0.0
    %2502 = vmatpush1.msra.mxu0 0.0
    %2503 = vmatprep.subr.mxu0 0.0
    %2504 = vmatpush1.msra.mxu0 0.0
    %2505 = vmatprep.subr.mxu0 0.0
    %2506 = vmatpush1.msra.mxu0 0.0
    %2507 = vmatprep.subr.mxu0 0.0
    %2508 = vmatpush1.msra.mxu0 0.0
    %2509 = vmatprep.subr.mxu0 0.0
    %2510 = vmatpush1.msra.mxu0 0.0
    %2511 = vmatprep.subr.mxu0 0.0
    %2512 = vmatpush1.msra.mxu0 0.0
    %2513 = vmatprep.subr.mxu0 0.0
    %2514 = vmatpush1.msra.mxu0 0.0
    %2515 = vmatprep.subr.mxu0 0.0
    %2516 = vmatpush1.msra.mxu0 0.0
    %2517 = vmatprep.subr.mxu0 0.0
    %2518 = vmatpush1.msra.mxu0 0.0
    %2519 = vmatprep.subr.mxu0 0.0
    %2520 = vmatpush1.msra.mxu0 0.0
    %2521 = vmatprep.subr.mxu0 0.0
    %2522 = vmatpush1.msra.mxu0 0.0
    %2523 = vmatprep.subr.mxu0 0.0
    %2524 = vmatpush1.msra.mxu0 0.0
    %2525 = vmatprep.subr.mxu0 0.0
    %2526 = vmatpush1.msra.mxu0 0.0
    %2527 = vmatprep.subr.mxu0 0.0
    %2528 = vmatpush1.msra.mxu0 0.0
    %2529 = vmatprep.subr.mxu0 0.0
    %2530 = vmatpush1.msra.mxu0 0.0
    %2531 = vmatprep.subr.mxu0 0.0
    %2532 = vmatpush1.msra.mxu0 0.0
    %2533 = vmatprep.subr.mxu0 0.0
    %2534 = vmatpush1.msra.mxu0 0.0
    %2535 = vmatprep.subr.mxu0 0.0
    %2536 = vmatpush1.msra.mxu0 0.0
    %2537 = vmatprep.subr.mxu0 0.0
    %2538 = vmatpush1.msra.mxu0 0.0
    %2539 = vmatprep.subr.mxu0 0.0
    %2540 = vmatpush1.msra.mxu0 0.0
    %2541 = vmatprep.subr.mxu0 0.0
    %2542 = vmatpush1.msra.mxu0 0.0
    %2543 = vmatprep.subr.mxu0 0.0
    %2544 = vmatpush1.msra.mxu0 0.0
    %2545 = vmatprep.subr.mxu0 0.0
    %2546 = vmatpush1.msra.mxu0 0.0
    %2547 = vmatprep.mubr.f32.mxu0 0.0
    %v2548 = vand.u32 %v2132, 4294901760
    %2549 = vmatmul.mubr.f32.gmra.mrb[0].mxu0 %v2548
    %v2550 = vpop.f32.mrb[0].mxu0
    %v2551 = vadd.f32 %v2466, %v2550
    %v2552 = vpop.f32.mrb[0].mxu0
    %2553 = vmatprep.mubr.f32.mxu0 0.0
    %v2554 = vand.u32 %v2135, 4294901760
    %2555 = vmatmul.mubr.f32.gmra.mrb[0].mxu0 %v2554
    %v2556 = vpop.f32.mrb[0].mxu0
    %v2557 = vadd.f32 %v2474, %v2556
    %v2558 = vpop.f32.mrb[0].mxu0
    %2559 = vdwg.mxu0
    %2560 = vmatprep.subr.mxu0 0.0
    %v2561 = vand.u32 %v2129, 4294901760
    %2562 = vmatpush1.msra.mxu0 %v2561
    %2563 = vmatprep.subr.mxu0 0.0
    %v2564 = vand.u32 %v2130, 4294901760
    %2565 = vmatpush1.msra.mxu0 %v2564
    %2566 = vmatprep.subr.mxu0 0.0
    %2567 = vmatpush1.msra.mxu0 0.0
    %2568 = vmatprep.subr.mxu0 0.0
    %2569 = vmatpush1.msra.mxu0 0.0
    %2570 = vmatprep.subr.mxu0 0.0
    %2571 = vmatpush1.msra.mxu0 0.0
    %2572 = vmatprep.subr.mxu0 0.0
    %2573 = vmatpush1.msra.mxu0 0.0
    %2574 = vmatprep.subr.mxu0 0.0
    %2575 = vmatpush1.msra.mxu0 0.0
    %2576 = vmatprep.subr.mxu0 0.0
    %2577 = vmatpush1.msra.mxu0 0.0
    %2578 = vmatprep.subr.mxu0 0.0
    %2579 = vmatpush1.msra.mxu0 0.0
    %2580 = vmatprep.subr.mxu0 0.0
    %2581 = vmatpush1.msra.mxu0 0.0
    %2582 = vmatprep.subr.mxu0 0.0
    %2583 = vmatpush1.msra.mxu0 0.0
    %2584 = vmatprep.subr.mxu0 0.0
    %2585 = vmatpush1.msra.mxu0 0.0
    %2586 = vmatprep.subr.mxu0 0.0
    %2587 = vmatpush1.msra.mxu0 0.0
    %2588 = vmatprep.subr.mxu0 0.0
    %2589 = vmatpush1.msra.mxu0 0.0
    %2590 = vmatprep.subr.mxu0 0.0
    %2591 = vmatpush1.msra.mxu0 0.0
    %2592 = vmatprep.subr.mxu0 0.0
    %2593 = vmatpush1.msra.mxu0 0.0
    %2594 = vmatprep.subr.mxu0 0.0
    %2595 = vmatpush1.msra.mxu0 0.0
    %2596 = vmatprep.subr.mxu0 0.0
    %2597 = vmatpush1.msra.mxu0 0.0
    %2598 = vmatprep.subr.mxu0 0.0
    %2599 = vmatpush1.msra.mxu0 0.0
    %2600 = vmatprep.subr.mxu0 0.0
    %2601 = vmatpush1.msra.mxu0 0.0
    %2602 = vmatprep.subr.mxu0 0.0
    %2603 = vmatpush1.msra.mxu0 0.0
    %2604 = vmatprep.subr.mxu0 0.0
    %2605 = vmatpush1.msra.mxu0 0.0
    %2606 = vmatprep.subr.mxu0 0.0
    %2607 = vmatpush1.msra.mxu0 0.0
    %2608 = vmatprep.subr.mxu0 0.0
    %2609 = vmatpush1.msra.mxu0 0.0
    %2610 = vmatprep.subr.mxu0 0.0
    %2611 = vmatpush1.msra.mxu0 0.0
    %2612 = vmatprep.subr.mxu0 0.0
    %2613 = vmatpush1.msra.mxu0 0.0
    %2614 = vmatprep.subr.mxu0 0.0
    %2615 = vmatpush1.msra.mxu0 0.0
    %2616 = vmatprep.subr.mxu0 0.0
    %2617 = vmatpush1.msra.mxu0 0.0
    %2618 = vmatprep.subr.mxu0 0.0
    %2619 = vmatpush1.msra.mxu0 0.0
    %2620 = vmatprep.subr.mxu0 0.0
    %2621 = vmatpush1.msra.mxu0 0.0
    %2622 = vmatprep.subr.mxu0 0.0
    %2623 = vmatpush1.msra.mxu0 0.0
    %2624 = vmatprep.subr.mxu0 0.0
    %2625 = vmatpush1.msra.mxu0 0.0
    %2626 = vmatprep.mubr.f32.mxu0 0.0
    %v2627 = vand.u32 %v2132, 4294901760
    %2628 = vmatmul.mubr.f32.gmra.mrb[0].mxu0 %v2627
    %v2629 = vpop.f32.mrb[0].mxu0
    %v2630 = vadd.f32 %v2551, %v2629
    %v2631 = vpop.f32.mrb[0].mxu0
    %2632 = vmatprep.mubr.f32.mxu0 0.0
    %v2633 = vand.u32 %v2135, 4294901760
    %2634 = vmatmul.mubr.f32.gmra.mrb[0].mxu0 %v2633
    %v2635 = vpop.f32.mrb[0].mxu0
    %v2636 = vadd.f32 %v2557, %v2635
    %v2637 = vpop.f32.mrb[0].mxu0
    %2638 = vdwg.mxu0
    %2641 = vrot.lane.b32.xlu0 %v2630, 8
    %v2642 = vpop.permute.xlu0 %2641
    %2643 = vrot.lane.b32.xlu0 %v2636, 8
    %v2644 = vpop.permute.xlu0 %2643
    %vm2647 = vcmask 130112
    %2648 = vst.msk [vmem:[#allocation13] sm:$0xff] %vm2647, %v2642
    %2649 = vst.msk [vmem:[#allocation13 + $0x8] sm:$0xff] %vm2647, %v2644
    %2650 = vrot.lane.b32.xlu0 %v1450, 56
    %v2651 = vpop.permute.xlu0 %2650
    %2652 = vrot.lane.b32.xlu0 %v1451, 56
    %v2653 = vpop.permute.xlu0 %2652
    %2656 = vmatprep.subr.mxu0 0.0
    %2657 = vmatpush1.msra.mxu0 %v2651
    %2658 = vmatprep.subr.mxu0 0.0
    %2659 = vmatpush1.msra.mxu0 %v2653
    %2660 = vmatprep.subr.mxu0 0.0
    %2661 = vmatpush1.msra.mxu0 0.0
    %2662 = vmatprep.subr.mxu0 0.0
    %2663 = vmatpush1.msra.mxu0 0.0
    %2664 = vmatprep.subr.mxu0 0.0
    %2665 = vmatpush1.msra.mxu0 0.0
    %2666 = vmatprep.subr.mxu0 0.0
    %2667 = vmatpush1.msra.mxu0 0.0
    %2668 = vmatprep.subr.mxu0 0.0
    %2669 = vmatpush1.msra.mxu0 0.0
    %2670 = vmatprep.subr.mxu0 0.0
    %2671 = vmatpush1.msra.mxu0 0.0
    %2672 = vmatprep.subr.mxu0 0.0
    %2673 = vmatpush1.msra.mxu0 0.0
    %2674 = vmatprep.subr.mxu0 0.0
    %2675 = vmatpush1.msra.mxu0 0.0
    %2676 = vmatprep.subr.mxu0 0.0
    %2677 = vmatpush1.msra.mxu0 0.0
    %2678 = vmatprep.subr.mxu0 0.0
    %2679 = vmatpush1.msra.mxu0 0.0
    %2680 = vmatprep.subr.mxu0 0.0
    %2681 = vmatpush1.msra.mxu0 0.0
    %2682 = vmatprep.subr.mxu0 0.0
    %2683 = vmatpush1.msra.mxu0 0.0
    %2684 = vmatprep.subr.mxu0 0.0
    %2685 = vmatpush1.msra.mxu0 0.0
    %2686 = vmatprep.subr.mxu0 0.0
    %2687 = vmatpush1.msra.mxu0 0.0
    %2688 = vmatprep.subr.mxu0 0.0
    %2689 = vmatpush1.msra.mxu0 0.0
    %2690 = vmatprep.subr.mxu0 0.0
    %2691 = vmatpush1.msra.mxu0 0.0
    %2692 = vmatprep.subr.mxu0 0.0
    %2693 = vmatpush1.msra.mxu0 0.0
    %2694 = vmatprep.subr.mxu0 0.0
    %2695 = vmatpush1.msra.mxu0 0.0
    %2696 = vmatprep.subr.mxu0 0.0
    %2697 = vmatpush1.msra.mxu0 0.0
    %2698 = vmatprep.subr.mxu0 0.0
    %2699 = vmatpush1.msra.mxu0 0.0
    %2700 = vmatprep.subr.mxu0 0.0
    %2701 = vmatpush1.msra.mxu0 0.0
    %2702 = vmatprep.subr.mxu0 0.0
    %2703 = vmatpush1.msra.mxu0 0.0
    %2704 = vmatprep.subr.mxu0 0.0
    %2705 = vmatpush1.msra.mxu0 0.0
    %2706 = vmatprep.subr.mxu0 0.0
    %2707 = vmatpush1.msra.mxu0 0.0
    %2708 = vmatprep.subr.mxu0 0.0
    %2709 = vmatpush1.msra.mxu0 0.0
    %2710 = vmatprep.subr.mxu0 0.0
    %2711 = vmatpush1.msra.mxu0 0.0
    %2712 = vmatprep.subr.mxu0 0.0
    %2713 = vmatpush1.msra.mxu0 0.0
    %2714 = vmatprep.subr.mxu0 0.0
    %2715 = vmatpush1.msra.mxu0 0.0
    %2716 = vmatprep.subr.mxu0 0.0
    %2717 = vmatpush1.msra.mxu0 0.0
    %2718 = vmatprep.subr.mxu0 0.0
    %2719 = vmatpush1.msra.mxu0 0.0
    %2720 = vmatprep.mubr.f32.mxu0 0.0
    %2721 = vmatmul.mubr.f32.gmra.mrb[0].mxu0 %v2132
    %v2722 = vpop.f32.mrb[0].mxu0
    %v2723 = vadd.f32 0.0, %v2722
    %v2724 = vpop.f32.mrb[0].mxu0
    %2725 = vmatprep.mubr.f32.mxu0 0.0
    %2726 = vmatmul.mubr.f32.gmra.mrb[0].mxu0 %v2135
    %v2727 = vpop.f32.mrb[0].mxu0
    %v2728 = vadd.f32 0.0, %v2727
    %v2729 = vpop.f32.mrb[0].mxu0
    %2730 = vdwg.mxu0
    %2733 = vrot.lane.b32.xlu0 %v2723, 8
    %v2734 = vpop.permute.xlu0 %2733
    %2735 = vrot.lane.b32.xlu0 %v2728, 8
    %v2736 = vpop.permute.xlu0 %2735
    %2739 = vst.msk [vmem:[#allocation3] sm:$0xff] %vm2647, %v2734
    %2740 = vst.msk [vmem:[#allocation3 + $0x8] sm:$0xff] %vm2647, %v2736
    %v2741 = vld [vmem:[#allocation2] sm:$0xff]
    %v2742 = vld [vmem:[#allocation2 + $0x8] sm:$0xff]
    %v2743 = vld [vmem:[#allocation9] sm:$0xff]
    %v2744 = vld [vmem:[#allocation9 + $0x8] sm:$0xff]
    %2747 = vrot.lane.b32.xlu0 %v2741, 112
    %v2748 = vpop.permute.xlu0 %2747
    %2749 = vrot.lane.b32.xlu0 %v2742, 112
    %v2750 = vpop.permute.xlu0 %2749
    %2751 = vrot.lane.b32.xlu0 %v2741, 80
    %v2752 = vpop.permute.xlu0 %2751
    %2753 = vrot.lane.b32.xlu0 %v2742, 80
    %v2754 = vpop.permute.xlu0 %2753
    %v2755 = vsel %vm192, %v2748, 0
    %v2757 = vsel %vm192, %v2750, 0
    %v2759 = vsel %vm192, %v2752, 0
    %v2761 = vsel %vm192, %v2754, 0
    %2763 = vmatprep.subr.mxu0 0.0
    %2764 = vmatpush1.xpose.msra.mxu0 %v2759
    %2765 = vmatprep.subr.mxu0 0.0
    %2766 = vmatpush1.xpose.msra.mxu0 %v2761
    %2767 = vmatprep.subr.mxu0 0.0
    %2768 = vmatpush1.xpose.msra.mxu0 0.0
    %2769 = vmatprep.subr.mxu0 0.0
    %2770 = vmatpush1.xpose.msra.mxu0 0.0
    %2771 = vmatprep.subr.mxu0 0.0
    %2772 = vmatpush1.xpose.msra.mxu0 0.0
    %2773 = vmatprep.subr.mxu0 0.0
    %2774 = vmatpush1.xpose.msra.mxu0 0.0
    %2775 = vmatprep.subr.mxu0 0.0
    %2776 = vmatpush1.xpose.msra.mxu0 0.0
    %2777 = vmatprep.subr.mxu0 0.0
    %2778 = vmatpush1.xpose.msra.mxu0 0.0
    %2779 = vmatprep.subr.mxu0 0.0
    %2780 = vmatpush1.xpose.msra.mxu0 0.0
    %2781 = vmatprep.subr.mxu0 0.0
    %2782 = vmatpush1.xpose.msra.mxu0 0.0
    %2783 = vmatprep.subr.mxu0 0.0
    %2784 = vmatpush1.xpose.msra.mxu0 0.0
    %2785 = vmatprep.subr.mxu0 0.0
    %2786 = vmatpush1.xpose.msra.mxu0 0.0
    %2787 = vmatprep.subr.mxu0 0.0
    %2788 = vmatpush1.xpose.msra.mxu0 0.0
    %2789 = vmatprep.subr.mxu0 0.0
    %2790 = vmatpush1.xpose.msra.mxu0 0.0
    %2791 = vmatprep.subr.mxu0 0.0
    %2792 = vmatpush1.xpose.msra.mxu0 0.0
    %2793 = vmatprep.subr.mxu0 0.0
    %2794 = vmatpush1.xpose.msra.mxu0 0.0
    %2795 = vmatprep.subr.mxu0 0.0
    %2796 = vmatpush1.xpose.msra.mxu0 0.0
    %2797 = vmatprep.subr.mxu0 0.0
    %2798 = vmatpush1.xpose.msra.mxu0 0.0
    %2799 = vmatprep.subr.mxu0 0.0
    %2800 = vmatpush1.xpose.msra.mxu0 0.0
    %2801 = vmatprep.subr.mxu0 0.0
    %2802 = vmatpush1.xpose.msra.mxu0 0.0
    %2803 = vmatprep.subr.mxu0 0.0
    %2804 = vmatpush1.xpose.msra.mxu0 0.0
    %2805 = vmatprep.subr.mxu0 0.0
    %2806 = vmatpush1.xpose.msra.mxu0 0.0
    %2807 = vmatprep.subr.mxu0 0.0
    %2808 = vmatpush1.xpose.msra.mxu0 0.0
    %2809 = vmatprep.subr.mxu0 0.0
    %2810 = vmatpush1.xpose.msra.mxu0 0.0
    %2811 = vmatprep.subr.mxu0 0.0
    %2812 = vmatpush1.xpose.msra.mxu0 0.0
    %2813 = vmatprep.subr.mxu0 0.0
    %2814 = vmatpush1.xpose.msra.mxu0 0.0
    %2815 = vmatprep.subr.mxu0 0.0
    %2816 = vmatpush1.xpose.msra.mxu0 0.0
    %2817 = vmatprep.subr.mxu0 0.0
    %2818 = vmatpush1.xpose.msra.mxu0 0.0
    %2819 = vmatprep.subr.mxu0 0.0
    %2820 = vmatpush1.xpose.msra.mxu0 0.0
    %2821 = vmatprep.subr.mxu0 0.0
    %2822 = vmatpush1.xpose.msra.mxu0 0.0
    %2823 = vmatprep.subr.mxu0 0.0
    %2824 = vmatpush1.xpose.msra.mxu0 0.0
    %2825 = vmatprep.subr.mxu0 0.0
    %2826 = vmatpush1.xpose.msra.mxu0 0.0
    %2827 = vmatprep.mubr.f32.mxu0 0.0
    %2828 = vmatmul.mubr.f32.gmra.mrb[0].mxu0 %v2755
    %v2829 = vpop.f32.mrb[0].mxu0
    %v2830 = vadd.f32 %v2743, %v2829
    %v2831 = vpop.f32.mrb[0].mxu0
    %2832 = vmatprep.mubr.f32.mxu0 0.0
    %2833 = vmatmul.mubr.f32.gmra.mrb[0].mxu0 %v2757
    %v2834 = vpop.f32.mrb[0].mxu0
    %v2835 = vadd.f32 %v2744, %v2834
    %v2836 = vpop.f32.mrb[0].mxu0
    %2837 = vdwg.mxu0
    %v2838 = vsel %vm276, %v2830, -inf
    %2839 = vmax.xlane.f32.xlu0 %v2838
    %v2840 = vpop.xlane.xlu0 %2839
    %v2841 = vsel %vm276, %v2835, -inf
    %2842 = vmax.xlane.f32.xlu0 %v2841
    %v2843 = vpop.xlane.xlu0 %2842
    %v2844 = vsub.f32 %v2830, %v2840
    %v2845 = vsub.f32 %v2835, %v2843
    %v2846 = vmul.f32 %v2844, 1.442695
    %v2847 = vpow.pop %v2846
    %v2848 = vmul.f32 %v2845, 1.442695
    %v2849 = vpow.pop %v2848
    %v2850 = vsel %vm276, %v2847, 0.0
    %2851 = vadd.xlane.f32.xlu0 %v2850
    %v2852 = vpop.xlane.xlu0 %2851
    %v2853 = vsel %vm276, %v2849, 0.0
    %2854 = vadd.xlane.f32.xlu0 %v2853
    %v2855 = vpop.xlane.xlu0 %2854
    %v2856 = vrcp.pop %v2852
    %v2857 = vrcp.pop %v2855
    %v2858 = vmul.f32 %v2847, %v2856
    %v2859 = vmul.f32 %v2849, %v2857
    %v2860 = vld [vmem:[#allocation7] sm:$0xff]
    %v2861 = vld [vmem:[#allocation7 + $0x8] sm:$0xff]
    %v2862 = vld [vmem:[%s4] sm:$0xff]
    %2865 = vrot.lane.b32.xlu0 %v2860, 112
    %v2866 = vpop.permute.xlu0 %2865
    %2867 = vrot.lane.b32.xlu0 %v2861, 112
    %v2868 = vpop.permute.xlu0 %2867
    %v2869 = vsel %vm192, %v2866, 0
    %v2871 = vsel %vm192, %v2868, 0
    %2873 = vmatprep.subr.mxu0 0.0
    %v2874 = vand.u32 %v2862, 4294901760
    %2875 = vmatpush1.msra.mxu0 %v2874
    %2876 = vmatprep.subr.mxu0 0.0
    %2877 = vmatpush1.msra.mxu0 0.0
    %2878 = vmatprep.subr.mxu0 0.0
    %2879 = vmatpush1.msra.mxu0 0.0
    %2880 = vmatprep.subr.mxu0 0.0
    %2881 = vmatpush1.msra.mxu0 0.0
    %2882 = vmatprep.subr.mxu0 0.0
    %2883 = vmatpush1.msra.mxu0 0.0
    %2884 = vmatprep.subr.mxu0 0.0
    %2885 = vmatpush1.msra.mxu0 0.0
    %2886 = vmatprep.subr.mxu0 0.0
    %2887 = vmatpush1.msra.mxu0 0.0
    %2888 = vmatprep.subr.mxu0 0.0
    %2889 = vmatpush1.msra.mxu0 0.0
    %2890 = vmatprep.subr.mxu0 0.0
    %2891 = vmatpush1.msra.mxu0 0.0
    %2892 = vmatprep.subr.mxu0 0.0
    %2893 = vmatpush1.msra.mxu0 0.0
    %2894 = vmatprep.subr.mxu0 0.0
    %2895 = vmatpush1.msra.mxu0 0.0
    %2896 = vmatprep.subr.mxu0 0.0
    %2897 = vmatpush1.msra.mxu0 0.0
    %2898 = vmatprep.subr.mxu0 0.0
    %2899 = vmatpush1.msra.mxu0 0.0
    %2900 = vmatprep.subr.mxu0 0.0
    %2901 = vmatpush1.msra.mxu0 0.0
    %2902 = vmatprep.subr.mxu0 0.0
    %2903 = vmatpush1.msra.mxu0 0.0
    %2904 = vmatprep.subr.mxu0 0.0
    %2905 = vmatpush1.msra.mxu0 0.0
    %2906 = vmatprep.subr.mxu0 0.0
    %2907 = vmatpush1.msra.mxu0 0.0
    %2908 = vmatprep.subr.mxu0 0.0
    %2909 = vmatpush1.msra.mxu0 0.0
    %2910 = vmatprep.subr.mxu0 0.0
    %2911 = vmatpush1.msra.mxu0 0.0
    %2912 = vmatprep.subr.mxu0 0.0
    %2913 = vmatpush1.msra.mxu0 0.0
    %2914 = vmatprep.subr.mxu0 0.0
    %2915 = vmatpush1.msra.mxu0 0.0
    %2916 = vmatprep.subr.mxu0 0.0
    %2917 = vmatpush1.msra.mxu0 0.0
    %2918 = vmatprep.subr.mxu0 0.0
    %2919 = vmatpush1.msra.mxu0 0.0
    %2920 = vmatprep.subr.mxu0 0.0
    %2921 = vmatpush1.msra.mxu0 0.0
    %2922 = vmatprep.subr.mxu0 0.0
    %2923 = vmatpush1.msra.mxu0 0.0
    %2924 = vmatprep.subr.mxu0 0.0
    %2925 = vmatpush1.msra.mxu0 0.0
    %2926 = vmatprep.subr.mxu0 0.0
    %2927 = vmatpush1.msra.mxu0 0.0
    %2928 = vmatprep.subr.mxu0 0.0
    %2929 = vmatpush1.msra.mxu0 0.0
    %2930 = vmatprep.subr.mxu0 0.0
    %2931 = vmatpush1.msra.mxu0 0.0
    %2932 = vmatprep.subr.mxu0 0.0
    %2933 = vmatpush1.msra.mxu0 0.0
    %2934 = vmatprep.subr.mxu0 0.0
    %2935 = vmatpush1.msra.mxu0 0.0
    %2936 = vmatprep.subr.mxu0 0.0
    %2937 = vmatpush1.msra.mxu0 0.0
    %2938 = vmatprep.mubr.f32.mxu0 0.0
    %v2939 = vand.u32 %v2869, 4294901760
    %v2940 = vsub.f32 %v2869, %v2939
    %v2941 = vand.u32 %v2940, 4294901760
    %v2942 = vsub.f32 %v2940, %v2941
    %v2943 = vand.u32 %v2942, 4294901760
    %2944 = vmatmul.mubr.f32.gmra.mrb[0].mxu0 %v2943
    %v2945 = vpop.f32.mrb[0].mxu0
    %v2946 = vadd.f32 %v2743, %v2945
    %v2947 = vpop.f32.mrb[0].mxu0
    %2948 = vmatprep.mubr.f32.mxu0 0.0
    %v2949 = vand.u32 %v2871, 4294901760
    %v2950 = vsub.f32 %v2871, %v2949
    %v2951 = vand.u32 %v2950, 4294901760
    %v2952 = vsub.f32 %v2950, %v2951
    %v2953 = vand.u32 %v2952, 4294901760
    %2954 = vmatmul.mubr.f32.gmra.mrb[0].mxu0 %v2953
    %v2955 = vpop.f32.mrb[0].mxu0
    %v2956 = vadd.f32 %v2744, %v2955
    %v2957 = vpop.f32.mrb[0].mxu0
    %2958 = vdwg.mxu0
    %2959 = vmatprep.subr.mxu0 0.0
    %v2960 = vand.u32 %v2862, 4294901760
    %v2961 = vsub.f32 %v2862, %v2960
    %v2962 = vand.u32 %v2961, 4294901760
    %v2963 = vsub.f32 %v2961, %v2962
    %v2964 = vand.u32 %v2963, 4294901760
    %2965 = vmatpush1.msra.mxu0 %v2964
    %2966 = vmatprep.subr.mxu0 0.0
    %2967 = vmatpush1.msra.mxu0 0.0
    %2968 = vmatprep.subr.mxu0 0.0
    %2969 = vmatpush1.msra.mxu0 0.0
    %2970 = vmatprep.subr.mxu0 0.0
    %2971 = vmatpush1.msra.mxu0 0.0
    %2972 = vmatprep.subr.mxu0 0.0
    %2973 = vmatpush1.msra.mxu0 0.0
    %2974 = vmatprep.subr.mxu0 0.0
    %2975 = vmatpush1.msra.mxu0 0.0
    %2976 = vmatprep.subr.mxu0 0.0
    %2977 = vmatpush1.msra.mxu0 0.0
    %2978 = vmatprep.subr.mxu0 0.0
    %2979 = vmatpush1.msra.mxu0 0.0
    %2980 = vmatprep.subr.mxu0 0.0
    %2981 = vmatpush1.msra.mxu0 0.0
    %2982 = vmatprep.subr.mxu0 0.0
    %2983 = vmatpush1.msra.mxu0 0.0
    %2984 = vmatprep.subr.mxu0 0.0
    %2985 = vmatpush1.msra.mxu0 0.0
    %2986 = vmatprep.subr.mxu0 0.0
    %2987 = vmatpush1.msra.mxu0 0.0
    %2988 = vmatprep.subr.mxu0 0.0
    %2989 = vmatpush1.msra.mxu0 0.0
    %2990 = vmatprep.subr.mxu0 0.0
    %2991 = vmatpush1.msra.mxu0 0.0
    %2992 = vmatprep.subr.mxu0 0.0
    %2993 = vmatpush1.msra.mxu0 0.0
    %2994 = vmatprep.subr.mxu0 0.0
    %2995 = vmatpush1.msra.mxu0 0.0
    %2996 = vmatprep.subr.mxu0 0.0
    %2997 = vmatpush1.msra.mxu0 0.0
    %2998 = vmatprep.subr.mxu0 0.0
    %2999 = vmatpush1.msra.mxu0 0.0
    %3000 = vmatprep.subr.mxu0 0.0
    %3001 = vmatpush1.msra.mxu0 0.0
    %3002 = vmatprep.subr.mxu0 0.0
    %3003 = vmatpush1.msra.mxu0 0.0
    %3004 = vmatprep.subr.mxu0 0.0
    %3005 = vmatpush1.msra.mxu0 0.0
    %3006 = vmatprep.subr.mxu0 0.0
    %3007 = vmatpush1.msra.mxu0 0.0
    %3008 = vmatprep.subr.mxu0 0.0
    %3009 = vmatpush1.msra.mxu0 0.0
    %3010 = vmatprep.subr.mxu0 0.0
    %3011 = vmatpush1.msra.mxu0 0.0
    %3012 = vmatprep.subr.mxu0 0.0
    %3013 = vmatpush1.msra.mxu0 0.0
    %3014 = vmatprep.subr.mxu0 0.0
    %3015 = vmatpush1.msra.mxu0 0.0
    %3016 = vmatprep.subr.mxu0 0.0
    %3017 = vmatpush1.msra.mxu0 0.0
    %3018 = vmatprep.subr.mxu0 0.0
    %3019 = vmatpush1.msra.mxu0 0.0
    %3020 = vmatprep.subr.mxu0 0.0
    %3021 = vmatpush1.msra.mxu0 0.0
    %3022 = vmatprep.subr.mxu0 0.0
    %3023 = vmatpush1.msra.mxu0 0.0
    %3024 = vmatprep.subr.mxu0 0.0
    %3025 = vmatpush1.msra.mxu0 0.0
    %3026 = vmatprep.subr.mxu0 0.0
    %3027 = vmatpush1.msra.mxu0 0.0
    %3028 = vmatprep.mubr.f32.mxu0 0.0
    %v3029 = vand.u32 %v2869, 4294901760
    %3030 = vmatmul.mubr.f32.gmra.mrb[0].mxu0 %v3029
    %v3031 = vpop.f32.mrb[0].mxu0
    %v3032 = vadd.f32 %v2946, %v3031
    %v3033 = vpop.f32.mrb[0].mxu0
    %3034 = vmatprep.mubr.f32.mxu0 0.0
    %v3035 = vand.u32 %v2871, 4294901760
    %3036 = vmatmul.mubr.f32.gmra.mrb[0].mxu0 %v3035
    %v3037 = vpop.f32.mrb[0].mxu0
    %v3038 = vadd.f32 %v2956, %v3037
    %v3039 = vpop.f32.mrb[0].mxu0
    %3040 = vdwg.mxu0
    %3041 = vmatprep.subr.mxu0 0.0
    %v3042 = vand.u32 %v2862, 4294901760
    %v3043 = vsub.f32 %v2862, %v3042
    %3044 = vmatpush1.msra.mxu0 %v3043
    %3045 = vmatprep.subr.mxu0 0.0
    %3046 = vmatpush1.msra.mxu0 0.0
    %3047 = vmatprep.subr.mxu0 0.0
    %3048 = vmatpush1.msra.mxu0 0.0
    %3049 = vmatprep.subr.mxu0 0.0
    %3050 = vmatpush1.msra.mxu0 0.0
    %3051 = vmatprep.subr.mxu0 0.0
    %3052 = vmatpush1.msra.mxu0 0.0
    %3053 = vmatprep.subr.mxu0 0.0
    %3054 = vmatpush1.msra.mxu0 0.0
    %3055 = vmatprep.subr.mxu0 0.0
    %3056 = vmatpush1.msra.mxu0 0.0
    %3057 = vmatprep.subr.mxu0 0.0
    %3058 = vmatpush1.msra.mxu0 0.0
    %3059 = vmatprep.subr.mxu0 0.0
    %3060 = vmatpush1.msra.mxu0 0.0
    %3061 = vmatprep.subr.mxu0 0.0
    %3062 = vmatpush1.msra.mxu0 0.0
    %3063 = vmatprep.subr.mxu0 0.0
    %3064 = vmatpush1.msra.mxu0 0.0
    %3065 = vmatprep.subr.mxu0 0.0
    %3066 = vmatpush1.msra.mxu0 0.0
    %3067 = vmatprep.subr.mxu0 0.0
    %3068 = vmatpush1.msra.mxu0 0.0
    %3069 = vmatprep.subr.mxu0 0.0
    %3070 = vmatpush1.msra.mxu0 0.0
    %3071 = vmatprep.subr.mxu0 0.0
    %3072 = vmatpush1.msra.mxu0 0.0
    %3073 = vmatprep.subr.mxu0 0.0
    %3074 = vmatpush1.msra.mxu0 0.0
    %3075 = vmatprep.subr.mxu0 0.0
    %3076 = vmatpush1.msra.mxu0 0.0
    %3077 = vmatprep.subr.mxu0 0.0
    %3078 = vmatpush1.msra.mxu0 0.0
    %3079 = vmatprep.subr.mxu0 0.0
    %3080 = vmatpush1.msra.mxu0 0.0
    %3081 = vmatprep.subr.mxu0 0.0
    %3082 = vmatpush1.msra.mxu0 0.0
    %3083 = vmatprep.subr.mxu0 0.0
    %3084 = vmatpush1.msra.mxu0 0.0
    %3085 = vmatprep.subr.mxu0 0.0
    %3086 = vmatpush1.msra.mxu0 0.0
    %3087 = vmatprep.subr.mxu0 0.0
    %3088 = vmatpush1.msra.mxu0 0.0
    %3089 = vmatprep.subr.mxu0 0.0
    %3090 = vmatpush1.msra.mxu0 0.0
    %3091 = vmatprep.subr.mxu0 0.0
    %3092 = vmatpush1.msra.mxu0 0.0
    %3093 = vmatprep.subr.mxu0 0.0
    %3094 = vmatpush1.msra.mxu0 0.0
    %3095 = vmatprep.subr.mxu0 0.0
    %3096 = vmatpush1.msra.mxu0 0.0
    %3097 = vmatprep.subr.mxu0 0.0
    %3098 = vmatpush1.msra.mxu0 0.0
    %3099 = vmatprep.subr.mxu0 0.0
    %3100 = vmatpush1.msra.mxu0 0.0
    %3101 = vmatprep.subr.mxu0 0.0
    %3102 = vmatpush1.msra.mxu0 0.0
    %3103 = vmatprep.subr.mxu0 0.0
    %3104 = vmatpush1.msra.mxu0 0.0
    %3105 = vmatprep.subr.mxu0 0.0
    %3106 = vmatpush1.msra.mxu0 0.0
    %3107 = vmatprep.mubr.f32.mxu0 0.0
    %v3108 = vand.u32 %v2869, 4294901760
    %v3109 = vsub.f32 %v2869, %v3108
    %3110 = vmatmul.mubr.f32.gmra.mrb[0].mxu0 %v3109
    %v3111 = vpop.f32.mrb[0].mxu0
    %v3112 = vadd.f32 %v3032, %v3111
    %v3113 = vpop.f32.mrb[0].mxu0
    %3114 = vmatprep.mubr.f32.mxu0 0.0
    %v3115 = vand.u32 %v2871, 4294901760
    %v3116 = vsub.f32 %v2871, %v3115
    %3117 = vmatmul.mubr.f32.gmra.mrb[0].mxu0 %v3116
    %v3118 = vpop.f32.mrb[0].mxu0
    %v3119 = vadd.f32 %v3038, %v3118
    %v3120 = vpop.f32.mrb[0].mxu0
    %3121 = vdwg.mxu0
    %3122 = vmatprep.subr.mxu0 0.0
    %v3123 = vand.u32 %v2862, 4294901760
    %3124 = vmatpush1.msra.mxu0 %v3123
    %3125 = vmatprep.subr.mxu0 0.0
    %3126 = vmatpush1.msra.mxu0 0.0
    %3127 = vmatprep.subr.mxu0 0.0
    %3128 = vmatpush1.msra.mxu0 0.0
    %3129 = vmatprep.subr.mxu0 0.0
    %3130 = vmatpush1.msra.mxu0 0.0
    %3131 = vmatprep.subr.mxu0 0.0
    %3132 = vmatpush1.msra.mxu0 0.0
    %3133 = vmatprep.subr.mxu0 0.0
    %3134 = vmatpush1.msra.mxu0 0.0
    %3135 = vmatprep.subr.mxu0 0.0
    %3136 = vmatpush1.msra.mxu0 0.0
    %3137 = vmatprep.subr.mxu0 0.0
    %3138 = vmatpush1.msra.mxu0 0.0
    %3139 = vmatprep.subr.mxu0 0.0
    %3140 = vmatpush1.msra.mxu0 0.0
    %3141 = vmatprep.subr.mxu0 0.0
    %3142 = vmatpush1.msra.mxu0 0.0
    %3143 = vmatprep.subr.mxu0 0.0
    %3144 = vmatpush1.msra.mxu0 0.0
    %3145 = vmatprep.subr.mxu0 0.0
    %3146 = vmatpush1.msra.mxu0 0.0
    %3147 = vmatprep.subr.mxu0 0.0
    %3148 = vmatpush1.msra.mxu0 0.0
    %3149 = vmatprep.subr.mxu0 0.0
    %3150 = vmatpush1.msra.mxu0 0.0
    %3151 = vmatprep.subr.mxu0 0.0
    %3152 = vmatpush1.msra.mxu0 0.0
    %3153 = vmatprep.subr.mxu0 0.0
    %3154 = vmatpush1.msra.mxu0 0.0
    %3155 = vmatprep.subr.mxu0 0.0
    %3156 = vmatpush1.msra.mxu0 0.0
    %3157 = vmatprep.subr.mxu0 0.0
    %3158 = vmatpush1.msra.mxu0 0.0
    %3159 = vmatprep.subr.mxu0 0.0
    %3160 = vmatpush1.msra.mxu0 0.0
    %3161 = vmatprep.subr.mxu0 0.0
    %3162 = vmatpush1.msra.mxu0 0.0
    %3163 = vmatprep.subr.mxu0 0.0
    %3164 = vmatpush1.msra.mxu0 0.0
    %3165 = vmatprep.subr.mxu0 0.0
    %3166 = vmatpush1.msra.mxu0 0.0
    %3167 = vmatprep.subr.mxu0 0.0
    %3168 = vmatpush1.msra.mxu0 0.0
    %3169 = vmatprep.subr.mxu0 0.0
    %3170 = vmatpush1.msra.mxu0 0.0
    %3171 = vmatprep.subr.mxu0 0.0
    %3172 = vmatpush1.msra.mxu0 0.0
    %3173 = vmatprep.subr.mxu0 0.0
    %3174 = vmatpush1.msra.mxu0 0.0
    %3175 = vmatprep.subr.mxu0 0.0
    %3176 = vmatpush1.msra.mxu0 0.0
    %3177 = vmatprep.subr.mxu0 0.0
    %3178 = vmatpush1.msra.mxu0 0.0
    %3179 = vmatprep.subr.mxu0 0.0
    %3180 = vmatpush1.msra.mxu0 0.0
    %3181 = vmatprep.subr.mxu0 0.0
    %3182 = vmatpush1.msra.mxu0 0.0
    %3183 = vmatprep.subr.mxu0 0.0
    %3184 = vmatpush1.msra.mxu0 0.0
    %3185 = vmatprep.subr.mxu0 0.0
    %3186 = vmatpush1.msra.mxu0 0.0
    %3187 = vmatprep.mubr.f32.mxu0 0.0
    %v3188 = vand.u32 %v2869, 4294901760
    %v3189 = vsub.f32 %v2869, %v3188
    %v3190 = vand.u32 %v3189, 4294901760
    %3191 = vmatmul.mubr.f32.gmra.mrb[0].mxu0 %v3190
    %v3192 = vpop.f32.mrb[0].mxu0
    %v3193 = vadd.f32 %v3112, %v3192
    %v3194 = vpop.f32.mrb[0].mxu0
    %3195 = vmatprep.mubr.f32.mxu0 0.0
    %v3196 = vand.u32 %v2871, 4294901760
    %v3197 = vsub.f32 %v2871, %v3196
    %v3198 = vand.u32 %v3197, 4294901760
    %3199 = vmatmul.mubr.f32.gmra.mrb[0].mxu0 %v3198
    %v3200 = vpop.f32.mrb[0].mxu0
    %v3201 = vadd.f32 %v3119, %v3200
    %v3202 = vpop.f32.mrb[0].mxu0
    %3203 = vdwg.mxu0
    %3204 = vmatprep.subr.mxu0 0.0
    %v3205 = vand.u32 %v2862, 4294901760
    %v3206 = vsub.f32 %v2862, %v3205
    %v3207 = vand.u32 %v3206, 4294901760
    %3208 = vmatpush1.msra.mxu0 %v3207
    %3209 = vmatprep.subr.mxu0 0.0
    %3210 = vmatpush1.msra.mxu0 0.0
    %3211 = vmatprep.subr.mxu0 0.0
    %3212 = vmatpush1.msra.mxu0 0.0
    %3213 = vmatprep.subr.mxu0 0.0
    %3214 = vmatpush1.msra.mxu0 0.0
    %3215 = vmatprep.subr.mxu0 0.0
    %3216 = vmatpush1.msra.mxu0 0.0
    %3217 = vmatprep.subr.mxu0 0.0
    %3218 = vmatpush1.msra.mxu0 0.0
    %3219 = vmatprep.subr.mxu0 0.0
    %3220 = vmatpush1.msra.mxu0 0.0
    %3221 = vmatprep.subr.mxu0 0.0
    %3222 = vmatpush1.msra.mxu0 0.0
    %3223 = vmatprep.subr.mxu0 0.0
    %3224 = vmatpush1.msra.mxu0 0.0
    %3225 = vmatprep.subr.mxu0 0.0
    %3226 = vmatpush1.msra.mxu0 0.0
    %3227 = vmatprep.subr.mxu0 0.0
    %3228 = vmatpush1.msra.mxu0 0.0
    %3229 = vmatprep.subr.mxu0 0.0
    %3230 = vmatpush1.msra.mxu0 0.0
    %3231 = vmatprep.subr.mxu0 0.0
    %3232 = vmatpush1.msra.mxu0 0.0
    %3233 = vmatprep.subr.mxu0 0.0
    %3234 = vmatpush1.msra.mxu0 0.0
    %3235 = vmatprep.subr.mxu0 0.0
    %3236 = vmatpush1.msra.mxu0 0.0
    %3237 = vmatprep.subr.mxu0 0.0
    %3238 = vmatpush1.msra.mxu0 0.0
    %3239 = vmatprep.subr.mxu0 0.0
    %3240 = vmatpush1.msra.mxu0 0.0
    %3241 = vmatprep.subr.mxu0 0.0
    %3242 = vmatpush1.msra.mxu0 0.0
    %3243 = vmatprep.subr.mxu0 0.0
    %3244 = vmatpush1.msra.mxu0 0.0
    %3245 = vmatprep.subr.mxu0 0.0
    %3246 = vmatpush1.msra.mxu0 0.0
    %3247 = vmatprep.subr.mxu0 0.0
    %3248 = vmatpush1.msra.mxu0 0.0
    %3249 = vmatprep.subr.mxu0 0.0
    %3250 = vmatpush1.msra.mxu0 0.0
    %3251 = vmatprep.subr.mxu0 0.0
    %3252 = vmatpush1.msra.mxu0 0.0
    %3253 = vmatprep.subr.mxu0 0.0
    %3254 = vmatpush1.msra.mxu0 0.0
    %3255 = vmatprep.subr.mxu0 0.0
    %3256 = vmatpush1.msra.mxu0 0.0
    %3257 = vmatprep.subr.mxu0 0.0
    %3258 = vmatpush1.msra.mxu0 0.0
    %3259 = vmatprep.subr.mxu0 0.0
    %3260 = vmatpush1.msra.mxu0 0.0
    %3261 = vmatprep.subr.mxu0 0.0
    %3262 = vmatpush1.msra.mxu0 0.0
    %3263 = vmatprep.subr.mxu0 0.0
    %3264 = vmatpush1.msra.mxu0 0.0
    %3265 = vmatprep.subr.mxu0 0.0
    %3266 = vmatpush1.msra.mxu0 0.0
    %3267 = vmatprep.subr.mxu0 0.0
    %3268 = vmatpush1.msra.mxu0 0.0
    %3269 = vmatprep.subr.mxu0 0.0
    %3270 = vmatpush1.msra.mxu0 0.0
    %3271 = vmatprep.mubr.f32.mxu0 0.0
    %v3272 = vand.u32 %v2869, 4294901760
    %3273 = vmatmul.mubr.f32.gmra.mrb[0].mxu0 %v3272
    %v3274 = vpop.f32.mrb[0].mxu0
    %v3275 = vadd.f32 %v3193, %v3274
    %v3276 = vpop.f32.mrb[0].mxu0
    %3277 = vmatprep.mubr.f32.mxu0 0.0
    %v3278 = vand.u32 %v2871, 4294901760
    %3279 = vmatmul.mubr.f32.gmra.mrb[0].mxu0 %v3278
    %v3280 = vpop.f32.mrb[0].mxu0
    %v3281 = vadd.f32 %v3201, %v3280
    %v3282 = vpop.f32.mrb[0].mxu0
    %3283 = vdwg.mxu0
    %3284 = vmatprep.subr.mxu0 0.0
    %v3285 = vand.u32 %v2862, 4294901760
    %3286 = vmatpush1.msra.mxu0 %v3285
    %3287 = vmatprep.subr.mxu0 0.0
    %3288 = vmatpush1.msra.mxu0 0.0
    %3289 = vmatprep.subr.mxu0 0.0
    %3290 = vmatpush1.msra.mxu0 0.0
    %3291 = vmatprep.subr.mxu0 0.0
    %3292 = vmatpush1.msra.mxu0 0.0
    %3293 = vmatprep.subr.mxu0 0.0
    %3294 = vmatpush1.msra.mxu0 0.0
    %3295 = vmatprep.subr.mxu0 0.0
    %3296 = vmatpush1.msra.mxu0 0.0
    %3297 = vmatprep.subr.mxu0 0.0
    %3298 = vmatpush1.msra.mxu0 0.0
    %3299 = vmatprep.subr.mxu0 0.0
    %3300 = vmatpush1.msra.mxu0 0.0
    %3301 = vmatprep.subr.mxu0 0.0
    %3302 = vmatpush1.msra.mxu0 0.0
    %3303 = vmatprep.subr.mxu0 0.0
    %3304 = vmatpush1.msra.mxu0 0.0
    %3305 = vmatprep.subr.mxu0 0.0
    %3306 = vmatpush1.msra.mxu0 0.0
    %3307 = vmatprep.subr.mxu0 0.0
    %3308 = vmatpush1.msra.mxu0 0.0
    %3309 = vmatprep.subr.mxu0 0.0
    %3310 = vmatpush1.msra.mxu0 0.0
    %3311 = vmatprep.subr.mxu0 0.0
    %3312 = vmatpush1.msra.mxu0 0.0
    %3313 = vmatprep.subr.mxu0 0.0
    %3314 = vmatpush1.msra.mxu0 0.0
    %3315 = vmatprep.subr.mxu0 0.0
    %3316 = vmatpush1.msra.mxu0 0.0
    %3317 = vmatprep.subr.mxu0 0.0
    %3318 = vmatpush1.msra.mxu0 0.0
    %3319 = vmatprep.subr.mxu0 0.0
    %3320 = vmatpush1.msra.mxu0 0.0
    %3321 = vmatprep.subr.mxu0 0.0
    %3322 = vmatpush1.msra.mxu0 0.0
    %3323 = vmatprep.subr.mxu0 0.0
    %3324 = vmatpush1.msra.mxu0 0.0
    %3325 = vmatprep.subr.mxu0 0.0
    %3326 = vmatpush1.msra.mxu0 0.0
    %3327 = vmatprep.subr.mxu0 0.0
    %3328 = vmatpush1.msra.mxu0 0.0
    %3329 = vmatprep.subr.mxu0 0.0
    %3330 = vmatpush1.msra.mxu0 0.0
    %3331 = vmatprep.subr.mxu0 0.0
    %3332 = vmatpush1.msra.mxu0 0.0
    %3333 = vmatprep.subr.mxu0 0.0
    %3334 = vmatpush1.msra.mxu0 0.0
    %3335 = vmatprep.subr.mxu0 0.0
    %3336 = vmatpush1.msra.mxu0 0.0
    %3337 = vmatprep.subr.mxu0 0.0
    %3338 = vmatpush1.msra.mxu0 0.0
    %3339 = vmatprep.subr.mxu0 0.0
    %3340 = vmatpush1.msra.mxu0 0.0
    %3341 = vmatprep.subr.mxu0 0.0
    %3342 = vmatpush1.msra.mxu0 0.0
    %3343 = vmatprep.subr.mxu0 0.0
    %3344 = vmatpush1.msra.mxu0 0.0
    %3345 = vmatprep.subr.mxu0 0.0
    %3346 = vmatpush1.msra.mxu0 0.0
    %3347 = vmatprep.subr.mxu0 0.0
    %3348 = vmatpush1.msra.mxu0 0.0
    %3349 = vmatprep.mubr.f32.mxu0 0.0
    %v3350 = vand.u32 %v2869, 4294901760
    %3351 = vmatmul.mubr.f32.gmra.mrb[0].mxu0 %v3350
    %v3352 = vpop.f32.mrb[0].mxu0
    %v3353 = vadd.f32 %v3275, %v3352
    %v3354 = vpop.f32.mrb[0].mxu0
    %3355 = vmatprep.mubr.f32.mxu0 0.0
    %v3356 = vand.u32 %v2871, 4294901760
    %3357 = vmatmul.mubr.f32.gmra.mrb[0].mxu0 %v3356
    %v3358 = vpop.f32.mrb[0].mxu0
    %v3359 = vadd.f32 %v3281, %v3358
    %v3360 = vpop.f32.mrb[0].mxu0
    %3361 = vdwg.mxu0
    %v3362 = vsel %vm276, %v3353, -inf
    %3363 = vmax.xlane.f32.xlu0 %v3362
    %v3364 = vpop.xlane.xlu0 %3363
    %v3365 = vsel %vm276, %v3359, -inf
    %3366 = vmax.xlane.f32.xlu0 %v3365
    %v3367 = vpop.xlane.xlu0 %3366
    %v3368 = vsub.f32 %v3353, %v3364
    %v3369 = vsub.f32 %v3359, %v3367
    %v3370 = vmul.f32 %v3368, 1.442695
    %v3371 = vpow.pop %v3370
    %v3372 = vmul.f32 %v3369, 1.442695
    %v3373 = vpow.pop %v3372
    %v3374 = vsel %vm276, %v3371, 0.0
    %3375 = vadd.xlane.f32.xlu0 %v3374
    %v3376 = vpop.xlane.xlu0 %3375
    %v3377 = vsel %vm276, %v3373, 0.0
    %3378 = vadd.xlane.f32.xlu0 %v3377
    %v3379 = vpop.xlane.xlu0 %3378
    %v3380 = vrcp.pop %v3376
    %v3381 = vrcp.pop %v3379
    %v3382 = vmul.f32 %v3371, %v3380
    %v3383 = vmul.f32 %v3373, %v3381
    %v3384 = vld [vmem:[%s2] sm:$0x1]
    %v3385 = vsub.f32 1.0, %v3384
    %v3387 = vlaneseq
    %v3388 = vshrl.u32 %v3387, 7
    %v3389 = vsub.s32 0, %v3388
    %v3390 = vrot.slane %v3385, %v3389
    %3391 = vset.pattern.permute.xlu0 2
    %3392 = vperm.xlu0 %3391, %v3390
    %v3393 = vpop.permute.xlu0 %3392
    %v3395 = vmul.f32 %v3393, %v2858
    %v3396 = vmul.f32 %v3393, %v2859
    %v3398 = vlaneseq
    %v3399 = vshrl.u32 %v3398, 7
    %v3400 = vsub.s32 0, %v3399
    %v3401 = vrot.slane %v3384, %v3400
    %3402 = vset.pattern.permute.xlu0 2
    %3403 = vperm.xlu0 %3402, %v3401
    %v3404 = vpop.permute.xlu0 %3403
    %v3406 = vmul.f32 %v3404, %v3382
    %v3407 = vmul.f32 %v3404, %v3383
    %v3408 = vadd.f32 %v3395, %v3406
    %v3409 = vadd.f32 %v3396, %v3407
    %v3410 = vsel %vm276, %v3408, 0.0
    %3411 = vadd.xlane.f32.xlu0 %v3410
    %v3412 = vpop.xlane.xlu0 %3411
    %v3413 = vsel %vm276, %v3409, 0.0
    %3414 = vadd.xlane.f32.xlu0 %v3413
    %v3415 = vpop.xlane.xlu0 %3414
    %v3416 = vrcp.pop %v3412
    %v3417 = vrcp.pop %v3415
    %v3418 = vmul.f32 %v3408, %v3416
    %v3419 = vmul.f32 %v3409, %v3417
    %v3420 = vld [vmem:[%s5] sm:$0xff]
    %v3421 = vld [vmem:[%s5 + $0x8] sm:$0xff]
    %v3423 = vsel %vm276, %v3418, 0
    %v3426 = vsel %vm276, %v3419, 0
    %3428 = vmatprep.subr.mxu0 0.0
    %v3429 = vand.u32 %v3420, 4294901760
    %3430 = vmatpush1.msra.mxu0 %v3429
    %3431 = vmatprep.subr.mxu0 0.0
    %v3432 = vand.u32 %v3421, 4294901760
    %3433 = vmatpush1.msra.mxu0 %v3432
    %3434 = vmatprep.subr.mxu0 0.0
    %3435 = vmatpush1.msra.mxu0 0.0
    %3436 = vmatprep.subr.mxu0 0.0
    %3437 = vmatpush1.msra.mxu0 0.0
    %3438 = vmatprep.subr.mxu0 0.0
    %3439 = vmatpush1.msra.mxu0 0.0
    %3440 = vmatprep.subr.mxu0 0.0
    %3441 = vmatpush1.msra.mxu0 0.0
    %3442 = vmatprep.subr.mxu0 0.0
    %3443 = vmatpush1.msra.mxu0 0.0
    %3444 = vmatprep.subr.mxu0 0.0
    %3445 = vmatpush1.msra.mxu0 0.0
    %3446 = vmatprep.subr.mxu0 0.0
    %3447 = vmatpush1.msra.mxu0 0.0
    %3448 = vmatprep.subr.mxu0 0.0
    %3449 = vmatpush1.msra.mxu0 0.0
    %3450 = vmatprep.subr.mxu0 0.0
    %3451 = vmatpush1.msra.mxu0 0.0
    %3452 = vmatprep.subr.mxu0 0.0
    %3453 = vmatpush1.msra.mxu0 0.0
    %3454 = vmatprep.subr.mxu0 0.0
    %3455 = vmatpush1.msra.mxu0 0.0
    %3456 = vmatprep.subr.mxu0 0.0
    %3457 = vmatpush1.msra.mxu0 0.0
    %3458 = vmatprep.subr.mxu0 0.0
    %3459 = vmatpush1.msra.mxu0 0.0
    %3460 = vmatprep.subr.mxu0 0.0
    %3461 = vmatpush1.msra.mxu0 0.0
    %3462 = vmatprep.subr.mxu0 0.0
    %3463 = vmatpush1.msra.mxu0 0.0
    %3464 = vmatprep.subr.mxu0 0.0
    %3465 = vmatpush1.msra.mxu0 0.0
    %3466 = vmatprep.subr.mxu0 0.0
    %3467 = vmatpush1.msra.mxu0 0.0
    %3468 = vmatprep.subr.mxu0 0.0
    %3469 = vmatpush1.msra.mxu0 0.0
    %3470 = vmatprep.subr.mxu0 0.0
    %3471 = vmatpush1.msra.mxu0 0.0
    %3472 = vmatprep.subr.mxu0 0.0
    %3473 = vmatpush1.msra.mxu0 0.0
    %3474 = vmatprep.subr.mxu0 0.0
    %3475 = vmatpush1.msra.mxu0 0.0
    %3476 = vmatprep.subr.mxu0 0.0
    %3477 = vmatpush1.msra.mxu0 0.0
    %3478 = vmatprep.subr.mxu0 0.0
    %3479 = vmatpush1.msra.mxu0 0.0
    %3480 = vmatprep.subr.mxu0 0.0
    %3481 = vmatpush1.msra.mxu0 0.0
    %3482 = vmatprep.subr.mxu0 0.0
    %3483 = vmatpush1.msra.mxu0 0.0
    %3484 = vmatprep.subr.mxu0 0.0
    %3485 = vmatpush1.msra.mxu0 0.0
    %3486 = vmatprep.subr.mxu0 0.0
    %3487 = vmatpush1.msra.mxu0 0.0
    %3488 = vmatprep.subr.mxu0 0.0
    %3489 = vmatpush1.msra.mxu0 0.0
    %3490 = vmatprep.subr.mxu0 0.0
    %3491 = vmatpush1.msra.mxu0 0.0
    %3492 = vmatprep.subr.mxu0 0.0
    %3493 = vmatpush1.msra.mxu0 0.0
    %3494 = vmatprep.mubr.f32.mxu0 0.0
    %v3495 = vand.u32 %v3423, 4294901760
    %v3496 = vsub.f32 %v3423, %v3495
    %v3497 = vand.u32 %v3496, 4294901760
    %v3498 = vsub.f32 %v3496, %v3497
    %v3499 = vand.u32 %v3498, 4294901760
    %3500 = vmatmul.mubr.f32.gmra.mrb[0].mxu0 %v3499
    %v3501 = vpop.f32.mrb[0].mxu0
    %v3502 = vadd.f32 0.0, %v3501
    %v3503 = vpop.f32.mrb[0].mxu0
    %3504 = vmatprep.mubr.f32.mxu0 0.0
    %v3505 = vand.u32 %v3426, 4294901760
    %v3506 = vsub.f32 %v3426, %v3505
    %v3507 = vand.u32 %v3506, 4294901760
    %v3508 = vsub.f32 %v3506, %v3507
    %v3509 = vand.u32 %v3508, 4294901760
    %3510 = vmatmul.mubr.f32.gmra.mrb[0].mxu0 %v3509
    %v3511 = vpop.f32.mrb[0].mxu0
    %v3512 = vadd.f32 0.0, %v3511
    %v3513 = vpop.f32.mrb[0].mxu0
    %3514 = vdwg.mxu0
    %3515 = vmatprep.subr.mxu0 0.0
    %v3516 = vand.u32 %v3420, 4294901760
    %v3517 = vsub.f32 %v3420, %v3516
    %v3518 = vand.u32 %v3517, 4294901760
    %v3519 = vsub.f32 %v3517, %v3518
    %v3520 = vand.u32 %v3519, 4294901760
    %3521 = vmatpush1.msra.mxu0 %v3520
    %3522 = vmatprep.subr.mxu0 0.0
    %v3523 = vand.u32 %v3421, 4294901760
    %v3524 = vsub.f32 %v3421, %v3523
    %v3525 = vand.u32 %v3524, 4294901760
    %v3526 = vsub.f32 %v3524, %v3525
    %v3527 = vand.u32 %v3526, 4294901760
    %3528 = vmatpush1.msra.mxu0 %v3527
    %3529 = vmatprep.subr.mxu0 0.0
    %3530 = vmatpush1.msra.mxu0 0.0
    %3531 = vmatprep.subr.mxu0 0.0
    %3532 = vmatpush1.msra.mxu0 0.0
    %3533 = vmatprep.subr.mxu0 0.0
    %3534 = vmatpush1.msra.mxu0 0.0
    %3535 = vmatprep.subr.mxu0 0.0
    %3536 = vmatpush1.msra.mxu0 0.0
    %3537 = vmatprep.subr.mxu0 0.0
    %3538 = vmatpush1.msra.mxu0 0.0
    %3539 = vmatprep.subr.mxu0 0.0
    %3540 = vmatpush1.msra.mxu0 0.0
    %3541 = vmatprep.subr.mxu0 0.0
    %3542 = vmatpush1.msra.mxu0 0.0
    %3543 = vmatprep.subr.mxu0 0.0
    %3544 = vmatpush1.msra.mxu0 0.0
    %3545 = vmatprep.subr.mxu0 0.0
    %3546 = vmatpush1.msra.mxu0 0.0
    %3547 = vmatprep.subr.mxu0 0.0
    %3548 = vmatpush1.msra.mxu0 0.0
    %3549 = vmatprep.subr.mxu0 0.0
    %3550 = vmatpush1.msra.mxu0 0.0
    %3551 = vmatprep.subr.mxu0 0.0
    %3552 = vmatpush1.msra.mxu0 0.0
    %3553 = vmatprep.subr.mxu0 0.0
    %3554 = vmatpush1.msra.mxu0 0.0
    %3555 = vmatprep.subr.mxu0 0.0
    %3556 = vmatpush1.msra.mxu0 0.0
    %3557 = vmatprep.subr.mxu0 0.0
    %3558 = vmatpush1.msra.mxu0 0.0
    %3559 = vmatprep.subr.mxu0 0.0
    %3560 = vmatpush1.msra.mxu0 0.0
    %3561 = vmatprep.subr.mxu0 0.0
    %3562 = vmatpush1.msra.mxu0 0.0
    %3563 = vmatprep.subr.mxu0 0.0
    %3564 = vmatpush1.msra.mxu0 0.0
    %3565 = vmatprep.subr.mxu0 0.0
    %3566 = vmatpush1.msra.mxu0 0.0
    %3567 = vmatprep.subr.mxu0 0.0
    %3568 = vmatpush1.msra.mxu0 0.0
    %3569 = vmatprep.subr.mxu0 0.0
    %3570 = vmatpush1.msra.mxu0 0.0
    %3571 = vmatprep.subr.mxu0 0.0
    %3572 = vmatpush1.msra.mxu0 0.0
    %3573 = vmatprep.subr.mxu0 0.0
    %3574 = vmatpush1.msra.mxu0 0.0
    %3575 = vmatprep.subr.mxu0 0.0
    %3576 = vmatpush1.msra.mxu0 0.0
    %3577 = vmatprep.subr.mxu0 0.0
    %3578 = vmatpush1.msra.mxu0 0.0
    %3579 = vmatprep.subr.mxu0 0.0
    %3580 = vmatpush1.msra.mxu0 0.0
    %3581 = vmatprep.subr.mxu0 0.0
    %3582 = vmatpush1.msra.mxu0 0.0
    %3583 = vmatprep.subr.mxu0 0.0
    %3584 = vmatpush1.msra.mxu0 0.0
    %3585 = vmatprep.subr.mxu0 0.0
    %3586 = vmatpush1.msra.mxu0 0.0
    %3587 = vmatprep.subr.mxu0 0.0
    %3588 = vmatpush1.msra.mxu0 0.0
    %3589 = vmatprep.mubr.f32.mxu0 0.0
    %v3590 = vand.u32 %v3423, 4294901760
    %3591 = vmatmul.mubr.f32.gmra.mrb[0].mxu0 %v3590
    %v3592 = vpop.f32.mrb[0].mxu0
    %v3593 = vadd.f32 %v3502, %v3592
    %v3594 = vpop.f32.mrb[0].mxu0
    %3595 = vmatprep.mubr.f32.mxu0 0.0
    %v3596 = vand.u32 %v3426, 4294901760
    %3597 = vmatmul.mubr.f32.gmra.mrb[0].mxu0 %v3596
    %v3598 = vpop.f32.mrb[0].mxu0
    %v3599 = vadd.f32 %v3512, %v3598
    %v3600 = vpop.f32.mrb[0].mxu0
    %3601 = vdwg.mxu0
    %3602 = vmatprep.subr.mxu0 0.0
    %v3603 = vand.u32 %v3420, 4294901760
    %v3604 = vsub.f32 %v3420, %v3603
    %3605 = vmatpush1.msra.mxu0 %v3604
    %3606 = vmatprep.subr.mxu0 0.0
    %v3607 = vand.u32 %v3421, 4294901760
    %v3608 = vsub.f32 %v3421, %v3607
    %3609 = vmatpush1.msra.mxu0 %v3608
    %3610 = vmatprep.subr.mxu0 0.0
    %3611 = vmatpush1.msra.mxu0 0.0
    %3612 = vmatprep.subr.mxu0 0.0
    %3613 = vmatpush1.msra.mxu0 0.0
    %3614 = vmatprep.subr.mxu0 0.0
    %3615 = vmatpush1.msra.mxu0 0.0
    %3616 = vmatprep.subr.mxu0 0.0
    %3617 = vmatpush1.msra.mxu0 0.0
    %3618 = vmatprep.subr.mxu0 0.0
    %3619 = vmatpush1.msra.mxu0 0.0
    %3620 = vmatprep.subr.mxu0 0.0
    %3621 = vmatpush1.msra.mxu0 0.0
    %3622 = vmatprep.subr.mxu0 0.0
    %3623 = vmatpush1.msra.mxu0 0.0
    %3624 = vmatprep.subr.mxu0 0.0
    %3625 = vmatpush1.msra.mxu0 0.0
    %3626 = vmatprep.subr.mxu0 0.0
    %3627 = vmatpush1.msra.mxu0 0.0
    %3628 = vmatprep.subr.mxu0 0.0
    %3629 = vmatpush1.msra.mxu0 0.0
    %3630 = vmatprep.subr.mxu0 0.0
    %3631 = vmatpush1.msra.mxu0 0.0
    %3632 = vmatprep.subr.mxu0 0.0
    %3633 = vmatpush1.msra.mxu0 0.0
    %3634 = vmatprep.subr.mxu0 0.0
    %3635 = vmatpush1.msra.mxu0 0.0
    %3636 = vmatprep.subr.mxu0 0.0
    %3637 = vmatpush1.msra.mxu0 0.0
    %3638 = vmatprep.subr.mxu0 0.0
    %3639 = vmatpush1.msra.mxu0 0.0
    %3640 = vmatprep.subr.mxu0 0.0
    %3641 = vmatpush1.msra.mxu0 0.0
    %3642 = vmatprep.subr.mxu0 0.0
    %3643 = vmatpush1.msra.mxu0 0.0
    %3644 = vmatprep.subr.mxu0 0.0
    %3645 = vmatpush1.msra.mxu0 0.0
    %3646 = vmatprep.subr.mxu0 0.0
    %3647 = vmatpush1.msra.mxu0 0.0
    %3648 = vmatprep.subr.mxu0 0.0
    %3649 = vmatpush1.msra.mxu0 0.0
    %3650 = vmatprep.subr.mxu0 0.0
    %3651 = vmatpush1.msra.mxu0 0.0
    %3652 = vmatprep.subr.mxu0 0.0
    %3653 = vmatpush1.msra.mxu0 0.0
    %3654 = vmatprep.subr.mxu0 0.0
    %3655 = vmatpush1.msra.mxu0 0.0
    %3656 = vmatprep.subr.mxu0 0.0
    %3657 = vmatpush1.msra.mxu0 0.0
    %3658 = vmatprep.subr.mxu0 0.0
    %3659 = vmatpush1.msra.mxu0 0.0
    %3660 = vmatprep.subr.mxu0 0.0
    %3661 = vmatpush1.msra.mxu0 0.0
    %3662 = vmatprep.subr.mxu0 0.0
    %3663 = vmatpush1.msra.mxu0 0.0
    %3664 = vmatprep.subr.mxu0 0.0
    %3665 = vmatpush1.msra.mxu0 0.0
    %3666 = vmatprep.subr.mxu0 0.0
    %3667 = vmatpush1.msra.mxu0 0.0
    %3668 = vmatprep.subr.mxu0 0.0
    %3669 = vmatpush1.msra.mxu0 0.0
    %3670 = vmatprep.mubr.f32.mxu0 0.0
    %v3671 = vand.u32 %v3423, 4294901760
    %v3672 = vsub.f32 %v3423, %v3671
    %3673 = vmatmul.mubr.f32.gmra.mrb[0].mxu0 %v3672
    %v3674 = vpop.f32.mrb[0].mxu0
    %v3675 = vadd.f32 %v3593, %v3674
    %v3676 = vpop.f32.mrb[0].mxu0
    %3677 = vmatprep.mubr.f32.mxu0 0.0
    %v3678 = vand.u32 %v3426, 4294901760
    %v3679 = vsub.f32 %v3426, %v3678
    %3680 = vmatmul.mubr.f32.gmra.mrb[0].mxu0 %v3679
    %v3681 = vpop.f32.mrb[0].mxu0
    %v3682 = vadd.f32 %v3599, %v3681
    %v3683 = vpop.f32.mrb[0].mxu0
    %3684 = vdwg.mxu0
    %3685 = vmatprep.subr.mxu0 0.0
    %v3686 = vand.u32 %v3420, 4294901760
    %3687 = vmatpush1.msra.mxu0 %v3686
    %3688 = vmatprep.subr.mxu0 0.0
    %v3689 = vand.u32 %v3421, 4294901760
    %3690 = vmatpush1.msra.mxu0 %v3689
    %3691 = vmatprep.subr.mxu0 0.0
    %3692 = vmatpush1.msra.mxu0 0.0
    %3693 = vmatprep.subr.mxu0 0.0
    %3694 = vmatpush1.msra.mxu0 0.0
    %3695 = vmatprep.subr.mxu0 0.0
    %3696 = vmatpush1.msra.mxu0 0.0
    %3697 = vmatprep.subr.mxu0 0.0
    %3698 = vmatpush1.msra.mxu0 0.0
    %3699 = vmatprep.subr.mxu0 0.0
    %3700 = vmatpush1.msra.mxu0 0.0
    %3701 = vmatprep.subr.mxu0 0.0
    %3702 = vmatpush1.msra.mxu0 0.0
    %3703 = vmatprep.subr.mxu0 0.0
    %3704 = vmatpush1.msra.mxu0 0.0
    %3705 = vmatprep.subr.mxu0 0.0
    %3706 = vmatpush1.msra.mxu0 0.0
    %3707 = vmatprep.subr.mxu0 0.0
    %3708 = vmatpush1.msra.mxu0 0.0
    %3709 = vmatprep.subr.mxu0 0.0
    %3710 = vmatpush1.msra.mxu0 0.0
    %3711 = vmatprep.subr.mxu0 0.0
    %3712 = vmatpush1.msra.mxu0 0.0
    %3713 = vmatprep.subr.mxu0 0.0
    %3714 = vmatpush1.msra.mxu0 0.0
    %3715 = vmatprep.subr.mxu0 0.0
    %3716 = vmatpush1.msra.mxu0 0.0
    %3717 = vmatprep.subr.mxu0 0.0
    %3718 = vmatpush1.msra.mxu0 0.0
    %3719 = vmatprep.subr.mxu0 0.0
    %3720 = vmatpush1.msra.mxu0 0.0
    %3721 = vmatprep.subr.mxu0 0.0
    %3722 = vmatpush1.msra.mxu0 0.0
    %3723 = vmatprep.subr.mxu0 0.0
    %3724 = vmatpush1.msra.mxu0 0.0
    %3725 = vmatprep.subr.mxu0 0.0
    %3726 = vmatpush1.msra.mxu0 0.0
    %3727 = vmatprep.subr.mxu0 0.0
    %3728 = vmatpush1.msra.mxu0 0.0
    %3729 = vmatprep.subr.mxu0 0.0
    %3730 = vmatpush1.msra.mxu0 0.0
    %3731 = vmatprep.subr.mxu0 0.0
    %3732 = vmatpush1.msra.mxu0 0.0
    %3733 = vmatprep.subr.mxu0 0.0
    %3734 = vmatpush1.msra.mxu0 0.0
    %3735 = vmatprep.subr.mxu0 0.0
    %3736 = vmatpush1.msra.mxu0 0.0
    %3737 = vmatprep.subr.mxu0 0.0
    %3738 = vmatpush1.msra.mxu0 0.0
    %3739 = vmatprep.subr.mxu0 0.0
    %3740 = vmatpush1.msra.mxu0 0.0
    %3741 = vmatprep.subr.mxu0 0.0
    %3742 = vmatpush1.msra.mxu0 0.0
    %3743 = vmatprep.subr.mxu0 0.0
    %3744 = vmatpush1.msra.mxu0 0.0
    %3745 = vmatprep.subr.mxu0 0.0
    %3746 = vmatpush1.msra.mxu0 0.0
    %3747 = vmatprep.subr.mxu0 0.0
    %3748 = vmatpush1.msra.mxu0 0.0
    %3749 = vmatprep.subr.mxu0 0.0
    %3750 = vmatpush1.msra.mxu0 0.0
    %3751 = vmatprep.mubr.f32.mxu0 0.0
    %v3752 = vand.u32 %v3423, 4294901760
    %v3753 = vsub.f32 %v3423, %v3752
    %v3754 = vand.u32 %v3753, 4294901760
    %3755 = vmatmul.mubr.f32.gmra.mrb[0].mxu0 %v3754
    %v3756 = vpop.f32.mrb[0].mxu0
    %v3757 = vadd.f32 %v3675, %v3756
    %v3758 = vpop.f32.mrb[0].mxu0
    %3759 = vmatprep.mubr.f32.mxu0 0.0
    %v3760 = vand.u32 %v3426, 4294901760
    %v3761 = vsub.f32 %v3426, %v3760
    %v3762 = vand.u32 %v3761, 4294901760
    %3763 = vmatmul.mubr.f32.gmra.mrb[0].mxu0 %v3762
    %v3764 = vpop.f32.mrb[0].mxu0
    %v3765 = vadd.f32 %v3682, %v3764
    %v3766 = vpop.f32.mrb[0].mxu0
    %3767 = vdwg.mxu0
    %3768 = vmatprep.subr.mxu0 0.0
    %v3769 = vand.u32 %v3420, 4294901760
    %v3770 = vsub.f32 %v3420, %v3769
    %v3771 = vand.u32 %v3770, 4294901760
    %3772 = vmatpush1.msra.mxu0 %v3771
    %3773 = vmatprep.subr.mxu0 0.0
    %v3774 = vand.u32 %v3421, 4294901760
    %v3775 = vsub.f32 %v3421, %v3774
    %v3776 = vand.u32 %v3775, 4294901760
    %3777 = vmatpush1.msra.mxu0 %v3776
    %3778 = vmatprep.subr.mxu0 0.0
    %3779 = vmatpush1.msra.mxu0 0.0
    %3780 = vmatprep.subr.mxu0 0.0
    %3781 = vmatpush1.msra.mxu0 0.0
    %3782 = vmatprep.subr.mxu0 0.0
    %3783 = vmatpush1.msra.mxu0 0.0
    %3784 = vmatprep.subr.mxu0 0.0
    %3785 = vmatpush1.msra.mxu0 0.0
    %3786 = vmatprep.subr.mxu0 0.0
    %3787 = vmatpush1.msra.mxu0 0.0
    %3788 = vmatprep.subr.mxu0 0.0
    %3789 = vmatpush1.msra.mxu0 0.0
    %3790 = vmatprep.subr.mxu0 0.0
    %3791 = vmatpush1.msra.mxu0 0.0
    %3792 = vmatprep.subr.mxu0 0.0
    %3793 = vmatpush1.msra.mxu0 0.0
    %3794 = vmatprep.subr.mxu0 0.0
    %3795 = vmatpush1.msra.mxu0 0.0
    %3796 = vmatprep.subr.mxu0 0.0
    %3797 = vmatpush1.msra.mxu0 0.0
    %3798 = vmatprep.subr.mxu0 0.0
    %3799 = vmatpush1.msra.mxu0 0.0
    %3800 = vmatprep.subr.mxu0 0.0
    %3801 = vmatpush1.msra.mxu0 0.0
    %3802 = vmatprep.subr.mxu0 0.0
    %3803 = vmatpush1.msra.mxu0 0.0
    %3804 = vmatprep.subr.mxu0 0.0
    %3805 = vmatpush1.msra.mxu0 0.0
    %3806 = vmatprep.subr.mxu0 0.0
    %3807 = vmatpush1.msra.mxu0 0.0
    %3808 = vmatprep.subr.mxu0 0.0
    %3809 = vmatpush1.msra.mxu0 0.0
    %3810 = vmatprep.subr.mxu0 0.0
    %3811 = vmatpush1.msra.mxu0 0.0
    %3812 = vmatprep.subr.mxu0 0.0
    %3813 = vmatpush1.msra.mxu0 0.0
    %3814 = vmatprep.subr.mxu0 0.0
    %3815 = vmatpush1.msra.mxu0 0.0
    %3816 = vmatprep.subr.mxu0 0.0
    %3817 = vmatpush1.msra.mxu0 0.0
    %3818 = vmatprep.subr.mxu0 0.0
    %3819 = vmatpush1.msra.mxu0 0.0
    %3820 = vmatprep.subr.mxu0 0.0
    %3821 = vmatpush1.msra.mxu0 0.0
    %3822 = vmatprep.subr.mxu0 0.0
    %3823 = vmatpush1.msra.mxu0 0.0
    %3824 = vmatprep.subr.mxu0 0.0
    %3825 = vmatpush1.msra.mxu0 0.0
    %3826 = vmatprep.subr.mxu0 0.0
    %3827 = vmatpush1.msra.mxu0 0.0
    %3828 = vmatprep.subr.mxu0 0.0
    %3829 = vmatpush1.msra.mxu0 0.0
    %3830 = vmatprep.subr.mxu0 0.0
    %3831 = vmatpush1.msra.mxu0 0.0
    %3832 = vmatprep.subr.mxu0 0.0
    %3833 = vmatpush1.msra.mxu0 0.0
    %3834 = vmatprep.subr.mxu0 0.0
    %3835 = vmatpush1.msra.mxu0 0.0
    %3836 = vmatprep.subr.mxu0 0.0
    %3837 = vmatpush1.msra.mxu0 0.0
    %3838 = vmatprep.mubr.f32.mxu0 0.0
    %v3839 = vand.u32 %v3423, 4294901760
    %3840 = vmatmul.mubr.f32.gmra.mrb[0].mxu0 %v3839
    %v3841 = vpop.f32.mrb[0].mxu0
    %v3842 = vadd.f32 %v3757, %v3841
    %v3843 = vpop.f32.mrb[0].mxu0
    %3844 = vmatprep.mubr.f32.mxu0 0.0
    %v3845 = vand.u32 %v3426, 4294901760
    %3846 = vmatmul.mubr.f32.gmra.mrb[0].mxu0 %v3845
    %v3847 = vpop.f32.mrb[0].mxu0
    %v3848 = vadd.f32 %v3765, %v3847
    %v3849 = vpop.f32.mrb[0].mxu0
    %3850 = vdwg.mxu0
    %3851 = vmatprep.subr.mxu0 0.0
    %v3852 = vand.u32 %v3420, 4294901760
    %3853 = vmatpush1.msra.mxu0 %v3852
    %3854 = vmatprep.subr.mxu0 0.0
    %v3855 = vand.u32 %v3421, 4294901760
    %3856 = vmatpush1.msra.mxu0 %v3855
    %3857 = vmatprep.subr.mxu0 0.0
    %3858 = vmatpush1.msra.mxu0 0.0
    %3859 = vmatprep.subr.mxu0 0.0
    %3860 = vmatpush1.msra.mxu0 0.0
    %3861 = vmatprep.subr.mxu0 0.0
    %3862 = vmatpush1.msra.mxu0 0.0
    %3863 = vmatprep.subr.mxu0 0.0
    %3864 = vmatpush1.msra.mxu0 0.0
    %3865 = vmatprep.subr.mxu0 0.0
    %3866 = vmatpush1.msra.mxu0 0.0
    %3867 = vmatprep.subr.mxu0 0.0
    %3868 = vmatpush1.msra.mxu0 0.0
    %3869 = vmatprep.subr.mxu0 0.0
    %3870 = vmatpush1.msra.mxu0 0.0
    %3871 = vmatprep.subr.mxu0 0.0
    %3872 = vmatpush1.msra.mxu0 0.0
    %3873 = vmatprep.subr.mxu0 0.0
    %3874 = vmatpush1.msra.mxu0 0.0
    %3875 = vmatprep.subr.mxu0 0.0
    %3876 = vmatpush1.msra.mxu0 0.0
    %3877 = vmatprep.subr.mxu0 0.0
    %3878 = vmatpush1.msra.mxu0 0.0
    %3879 = vmatprep.subr.mxu0 0.0
    %3880 = vmatpush1.msra.mxu0 0.0
    %3881 = vmatprep.subr.mxu0 0.0
    %3882 = vmatpush1.msra.mxu0 0.0
    %3883 = vmatprep.subr.mxu0 0.0
    %3884 = vmatpush1.msra.mxu0 0.0
    %3885 = vmatprep.subr.mxu0 0.0
    %3886 = vmatpush1.msra.mxu0 0.0
    %3887 = vmatprep.subr.mxu0 0.0
    %3888 = vmatpush1.msra.mxu0 0.0
    %3889 = vmatprep.subr.mxu0 0.0
    %3890 = vmatpush1.msra.mxu0 0.0
    %3891 = vmatprep.subr.mxu0 0.0
    %3892 = vmatpush1.msra.mxu0 0.0
    %3893 = vmatprep.subr.mxu0 0.0
    %3894 = vmatpush1.msra.mxu0 0.0
    %3895 = vmatprep.subr.mxu0 0.0
    %3896 = vmatpush1.msra.mxu0 0.0
    %3897 = vmatprep.subr.mxu0 0.0
    %3898 = vmatpush1.msra.mxu0 0.0
    %3899 = vmatprep.subr.mxu0 0.0
    %3900 = vmatpush1.msra.mxu0 0.0
    %3901 = vmatprep.subr.mxu0 0.0
    %3902 = vmatpush1.msra.mxu0 0.0
    %3903 = vmatprep.subr.mxu0 0.0
    %3904 = vmatpush1.msra.mxu0 0.0
    %3905 = vmatprep.subr.mxu0 0.0
    %3906 = vmatpush1.msra.mxu0 0.0
    %3907 = vmatprep.subr.mxu0 0.0
    %3908 = vmatpush1.msra.mxu0 0.0
    %3909 = vmatprep.subr.mxu0 0.0
    %3910 = vmatpush1.msra.mxu0 0.0
    %3911 = vmatprep.subr.mxu0 0.0
    %3912 = vmatpush1.msra.mxu0 0.0
    %3913 = vmatprep.subr.mxu0 0.0
    %3914 = vmatpush1.msra.mxu0 0.0
    %3915 = vmatprep.subr.mxu0 0.0
    %3916 = vmatpush1.msra.mxu0 0.0
    %3917 = vmatprep.mubr.f32.mxu0 0.0
    %v3918 = vand.u32 %v3423, 4294901760
    %3919 = vmatmul.mubr.f32.gmra.mrb[0].mxu0 %v3918
    %v3920 = vpop.f32.mrb[0].mxu0
    %v3921 = vadd.f32 %v3842, %v3920
    %v3922 = vpop.f32.mrb[0].mxu0
    %3923 = vmatprep.mubr.f32.mxu0 0.0
    %v3924 = vand.u32 %v3426, 4294901760
    %3925 = vmatmul.mubr.f32.gmra.mrb[0].mxu0 %v3924
    %v3926 = vpop.f32.mrb[0].mxu0
    %v3927 = vadd.f32 %v3848, %v3926
    %v3928 = vpop.f32.mrb[0].mxu0
    %3929 = vdwg.mxu0
    %3932 = vrot.lane.b32.xlu0 %v3921, 16
    %v3933 = vpop.permute.xlu0 %3932
    %3934 = vrot.lane.b32.xlu0 %v3927, 16
    %v3935 = vpop.permute.xlu0 %3934
    %vm3938 = vcmask 195712
    %3939 = vst.msk [vmem:[#allocation13] sm:$0xff] %vm3938, %v3933
    %3940 = vst.msk [vmem:[#allocation13 + $0x8] sm:$0xff] %vm3938, %v3935
    %3941 = vrot.lane.b32.xlu0 %v2741, 48
    %v3942 = vpop.permute.xlu0 %3941
    %3943 = vrot.lane.b32.xlu0 %v2742, 48
    %v3944 = vpop.permute.xlu0 %3943
    %3947 = vmatprep.subr.mxu0 0.0
    %3948 = vmatpush1.msra.mxu0 %v3942
    %3949 = vmatprep.subr.mxu0 0.0
    %3950 = vmatpush1.msra.mxu0 %v3944
    %3951 = vmatprep.subr.mxu0 0.0
    %3952 = vmatpush1.msra.mxu0 0.0
    %3953 = vmatprep.subr.mxu0 0.0
    %3954 = vmatpush1.msra.mxu0 0.0
    %3955 = vmatprep.subr.mxu0 0.0
    %3956 = vmatpush1.msra.mxu0 0.0
    %3957 = vmatprep.subr.mxu0 0.0
    %3958 = vmatpush1.msra.mxu0 0.0
    %3959 = vmatprep.subr.mxu0 0.0
    %3960 = vmatpush1.msra.mxu0 0.0
    %3961 = vmatprep.subr.mxu0 0.0
    %3962 = vmatpush1.msra.mxu0 0.0
    %3963 = vmatprep.subr.mxu0 0.0
    %3964 = vmatpush1.msra.mxu0 0.0
    %3965 = vmatprep.subr.mxu0 0.0
    %3966 = vmatpush1.msra.mxu0 0.0
    %3967 = vmatprep.subr.mxu0 0.0
    %3968 = vmatpush1.msra.mxu0 0.0
    %3969 = vmatprep.subr.mxu0 0.0
    %3970 = vmatpush1.msra.mxu0 0.0
    %3971 = vmatprep.subr.mxu0 0.0
    %3972 = vmatpush1.msra.mxu0 0.0
    %3973 = vmatprep.subr.mxu0 0.0
    %3974 = vmatpush1.msra.mxu0 0.0
    %3975 = vmatprep.subr.mxu0 0.0
    %3976 = vmatpush1.msra.mxu0 0.0
    %3977 = vmatprep.subr.mxu0 0.0
    %3978 = vmatpush1.msra.mxu0 0.0
    %3979 = vmatprep.subr.mxu0 0.0
    %3980 = vmatpush1.msra.mxu0 0.0
    %3981 = vmatprep.subr.mxu0 0.0
    %3982 = vmatpush1.msra.mxu0 0.0
    %3983 = vmatprep.subr.mxu0 0.0
    %3984 = vmatpush1.msra.mxu0 0.0
    %3985 = vmatprep.subr.mxu0 0.0
    %3986 = vmatpush1.msra.mxu0 0.0
    %3987 = vmatprep.subr.mxu0 0.0
    %3988 = vmatpush1.msra.mxu0 0.0
    %3989 = vmatprep.subr.mxu0 0.0
    %3990 = vmatpush1.msra.mxu0 0.0
    %3991 = vmatprep.subr.mxu0 0.0
    %3992 = vmatpush1.msra.mxu0 0.0
    %3993 = vmatprep.subr.mxu0 0.0
    %3994 = vmatpush1.msra.mxu0 0.0
    %3995 = vmatprep.subr.mxu0 0.0
    %3996 = vmatpush1.msra.mxu0 0.0
    %3997 = vmatprep.subr.mxu0 0.0
    %3998 = vmatpush1.msra.mxu0 0.0
    %3999 = vmatprep.subr.mxu0 0.0
    %4000 = vmatpush1.msra.mxu0 0.0
    %4001 = vmatprep.subr.mxu0 0.0
    %4002 = vmatpush1.msra.mxu0 0.0
    %4003 = vmatprep.subr.mxu0 0.0
    %4004 = vmatpush1.msra.mxu0 0.0
    %4005 = vmatprep.subr.mxu0 0.0
    %4006 = vmatpush1.msra.mxu0 0.0
    %4007 = vmatprep.subr.mxu0 0.0
    %4008 = vmatpush1.msra.mxu0 0.0
    %4009 = vmatprep.subr.mxu0 0.0
    %4010 = vmatpush1.msra.mxu0 0.0
    %4011 = vmatprep.mubr.f32.mxu0 0.0
    %4012 = vmatmul.mubr.f32.gmra.mrb[0].mxu0 %v3423
    %v4013 = vpop.f32.mrb[0].mxu0
    %v4014 = vadd.f32 0.0, %v4013
    %v4015 = vpop.f32.mrb[0].mxu0
    %4016 = vmatprep.mubr.f32.mxu0 0.0
    %4017 = vmatmul.mubr.f32.gmra.mrb[0].mxu0 %v3426
    %v4018 = vpop.f32.mrb[0].mxu0
    %v4019 = vadd.f32 0.0, %v4018
    %v4020 = vpop.f32.mrb[0].mxu0
    %4021 = vdwg.mxu0
    %4024 = vrot.lane.b32.xlu0 %v4014, 16
    %v4025 = vpop.permute.xlu0 %4024
    %4026 = vrot.lane.b32.xlu0 %v4019, 16
    %v4027 = vpop.permute.xlu0 %4026
    %4030 = vst.msk [vmem:[#allocation3] sm:$0xff] %vm3938, %v4025
    %4031 = vst.msk [vmem:[#allocation3 + $0x8] sm:$0xff] %vm3938, %v4027
    %v4032 = vld [vmem:[#allocation2] sm:$0xff]
    %v4033 = vld [vmem:[#allocation2 + $0x8] sm:$0xff]
    %v4034 = vld [vmem:[#allocation9] sm:$0xff]
    %v4035 = vld [vmem:[#allocation9 + $0x8] sm:$0xff]
    %4038 = vrot.lane.b32.xlu0 %v4032, 104
    %v4039 = vpop.permute.xlu0 %4038
    %4040 = vrot.lane.b32.xlu0 %v4033, 104
    %v4041 = vpop.permute.xlu0 %4040
    %4042 = vrot.lane.b32.xlu0 %v4032, 72
    %v4043 = vpop.permute.xlu0 %4042
    %4044 = vrot.lane.b32.xlu0 %v4033, 72
    %v4045 = vpop.permute.xlu0 %4044
    %v4046 = vsel %vm192, %v4039, 0
    %v4048 = vsel %vm192, %v4041, 0
    %v4050 = vsel %vm192, %v4043, 0
    %v4052 = vsel %vm192, %v4045, 0
    %4054 = vmatprep.subr.mxu0 0.0
    %4055 = vmatpush1.xpose.msra.mxu0 %v4050
    %4056 = vmatprep.subr.mxu0 0.0
    %4057 = vmatpush1.xpose.msra.mxu0 %v4052
    %4058 = vmatprep.subr.mxu0 0.0
    %4059 = vmatpush1.xpose.msra.mxu0 0.0
    %4060 = vmatprep.subr.mxu0 0.0
    %4061 = vmatpush1.xpose.msra.mxu0 0.0
    %4062 = vmatprep.subr.mxu0 0.0
    %4063 = vmatpush1.xpose.msra.mxu0 0.0
    %4064 = vmatprep.subr.mxu0 0.0
    %4065 = vmatpush1.xpose.msra.mxu0 0.0
    %4066 = vmatprep.subr.mxu0 0.0
    %4067 = vmatpush1.xpose.msra.mxu0 0.0
    %4068 = vmatprep.subr.mxu0 0.0
    %4069 = vmatpush1.xpose.msra.mxu0 0.0
    %4070 = vmatprep.subr.mxu0 0.0
    %4071 = vmatpush1.xpose.msra.mxu0 0.0
    %4072 = vmatprep.subr.mxu0 0.0
    %4073 = vmatpush1.xpose.msra.mxu0 0.0
    %4074 = vmatprep.subr.mxu0 0.0
    %4075 = vmatpush1.xpose.msra.mxu0 0.0
    %4076 = vmatprep.subr.mxu0 0.0
    %4077 = vmatpush1.xpose.msra.mxu0 0.0
    %4078 = vmatprep.subr.mxu0 0.0
    %4079 = vmatpush1.xpose.msra.mxu0 0.0
    %4080 = vmatprep.subr.mxu0 0.0
    %4081 = vmatpush1.xpose.msra.mxu0 0.0
    %4082 = vmatprep.subr.mxu0 0.0
    %4083 = vmatpush1.xpose.msra.mxu0 0.0
    %4084 = vmatprep.subr.mxu0 0.0
    %4085 = vmatpush1.xpose.msra.mxu0 0.0
    %4086 = vmatprep.subr.mxu0 0.0
    %4087 = vmatpush1.xpose.msra.mxu0 0.0
    %4088 = vmatprep.subr.mxu0 0.0
    %4089 = vmatpush1.xpose.msra.mxu0 0.0
    %4090 = vmatprep.subr.mxu0 0.0
    %4091 = vmatpush1.xpose.msra.mxu0 0.0
    %4092 = vmatprep.subr.mxu0 0.0
    %4093 = vmatpush1.xpose.msra.mxu0 0.0
    %4094 = vmatprep.subr.mxu0 0.0
    %4095 = vmatpush1.xpose.msra.mxu0 0.0
    %4096 = vmatprep.subr.mxu0 0.0
    %4097 = vmatpush1.xpose.msra.mxu0 0.0
    %4098 = vmatprep.subr.mxu0 0.0
    %4099 = vmatpush1.xpose.msra.mxu0 0.0
    %4100 = vmatprep.subr.mxu0 0.0
    %4101 = vmatpush1.xpose.msra.mxu0 0.0
    %4102 = vmatprep.subr.mxu0 0.0
    %4103 = vmatpush1.xpose.msra.mxu0 0.0
    %4104 = vmatprep.subr.mxu0 0.0
    %4105 = vmatpush1.xpose.msra.mxu0 0.0
    %4106 = vmatprep.subr.mxu0 0.0
    %4107 = vmatpush1.xpose.msra.mxu0 0.0
    %4108 = vmatprep.subr.mxu0 0.0
    %4109 = vmatpush1.xpose.msra.mxu0 0.0
    %4110 = vmatprep.subr.mxu0 0.0
    %4111 = vmatpush1.xpose.msra.mxu0 0.0
    %4112 = vmatprep.subr.mxu0 0.0
    %4113 = vmatpush1.xpose.msra.mxu0 0.0
    %4114 = vmatprep.subr.mxu0 0.0
    %4115 = vmatpush1.xpose.msra.mxu0 0.0
    %4116 = vmatprep.subr.mxu0 0.0
    %4117 = vmatpush1.xpose.msra.mxu0 0.0
    %4118 = vmatprep.mubr.f32.mxu0 0.0
    %4119 = vmatmul.mubr.f32.gmra.mrb[0].mxu0 %v4046
    %v4120 = vpop.f32.mrb[0].mxu0
    %v4121 = vadd.f32 %v4034, %v4120
    %v4122 = vpop.f32.mrb[0].mxu0
    %4123 = vmatprep.mubr.f32.mxu0 0.0
    %4124 = vmatmul.mubr.f32.gmra.mrb[0].mxu0 %v4048
    %v4125 = vpop.f32.mrb[0].mxu0
    %v4126 = vadd.f32 %v4035, %v4125
    %v4127 = vpop.f32.mrb[0].mxu0
    %4128 = vdwg.mxu0
    %v4129 = vsel %vm276, %v4121, -inf
    %4130 = vmax.xlane.f32.xlu0 %v4129
    %v4131 = vpop.xlane.xlu0 %4130
    %v4132 = vsel %vm276, %v4126, -inf
    %4133 = vmax.xlane.f32.xlu0 %v4132
    %v4134 = vpop.xlane.xlu0 %4133
    %v4135 = vsub.f32 %v4121, %v4131
    %v4136 = vsub.f32 %v4126, %v4134
    %v4137 = vmul.f32 %v4135, 1.442695
    %v4138 = vpow.pop %v4137
    %v4139 = vmul.f32 %v4136, 1.442695
    %v4140 = vpow.pop %v4139
    %v4141 = vsel %vm276, %v4138, 0.0
    %4142 = vadd.xlane.f32.xlu0 %v4141
    %v4143 = vpop.xlane.xlu0 %4142
    %v4144 = vsel %vm276, %v4140, 0.0
    %4145 = vadd.xlane.f32.xlu0 %v4144
    %v4146 = vpop.xlane.xlu0 %4145
    %v4147 = vrcp.pop %v4143
    %v4148 = vrcp.pop %v4146
    %v4149 = vmul.f32 %v4138, %v4147
    %v4150 = vmul.f32 %v4140, %v4148
    %v4151 = vld [vmem:[#allocation7] sm:$0xff]
    %v4152 = vld [vmem:[#allocation7 + $0x8] sm:$0xff]
    %v4153 = vld [vmem:[%s4] sm:$0xff]
    %4156 = vrot.lane.b32.xlu0 %v4151, 104
    %v4157 = vpop.permute.xlu0 %4156
    %4158 = vrot.lane.b32.xlu0 %v4152, 104
    %v4159 = vpop.permute.xlu0 %4158
    %v4160 = vsel %vm192, %v4157, 0
    %v4162 = vsel %vm192, %v4159, 0
    %4164 = vmatprep.subr.mxu0 0.0
    %v4165 = vand.u32 %v4153, 4294901760
    %4166 = vmatpush1.msra.mxu0 %v4165
    %4167 = vmatprep.subr.mxu0 0.0
    %4168 = vmatpush1.msra.mxu0 0.0
    %4169 = vmatprep.subr.mxu0 0.0
    %4170 = vmatpush1.msra.mxu0 0.0
    %4171 = vmatprep.subr.mxu0 0.0
    %4172 = vmatpush1.msra.mxu0 0.0
    %4173 = vmatprep.subr.mxu0 0.0
    %4174 = vmatpush1.msra.mxu0 0.0
    %4175 = vmatprep.subr.mxu0 0.0
    %4176 = vmatpush1.msra.mxu0 0.0
    %4177 = vmatprep.subr.mxu0 0.0
    %4178 = vmatpush1.msra.mxu0 0.0
    %4179 = vmatprep.subr.mxu0 0.0
    %4180 = vmatpush1.msra.mxu0 0.0
    %4181 = vmatprep.subr.mxu0 0.0
    %4182 = vmatpush1.msra.mxu0 0.0
    %4183 = vmatprep.subr.mxu0 0.0
    %4184 = vmatpush1.msra.mxu0 0.0
    %4185 = vmatprep.subr.mxu0 0.0
    %4186 = vmatpush1.msra.mxu0 0.0
    %4187 = vmatprep.subr.mxu0 0.0
    %4188 = vmatpush1.msra.mxu0 0.0
    %4189 = vmatprep.subr.mxu0 0.0
    %4190 = vmatpush1.msra.mxu0 0.0
    %4191 = vmatprep.subr.mxu0 0.0
    %4192 = vmatpush1.msra.mxu0 0.0
    %4193 = vmatprep.subr.mxu0 0.0
    %4194 = vmatpush1.msra.mxu0 0.0
    %4195 = vmatprep.subr.mxu0 0.0
    %4196 = vmatpush1.msra.mxu0 0.0
    %4197 = vmatprep.subr.mxu0 0.0
    %4198 = vmatpush1.msra.mxu0 0.0
    %4199 = vmatprep.subr.mxu0 0.0
    %4200 = vmatpush1.msra.mxu0 0.0
    %4201 = vmatprep.subr.mxu0 0.0
    %4202 = vmatpush1.msra.mxu0 0.0
    %4203 = vmatprep.subr.mxu0 0.0
    %4204 = vmatpush1.msra.mxu0 0.0
    %4205 = vmatprep.subr.mxu0 0.0
    %4206 = vmatpush1.msra.mxu0 0.0
    %4207 = vmatprep.subr.mxu0 0.0
    %4208 = vmatpush1.msra.mxu0 0.0
    %4209 = vmatprep.subr.mxu0 0.0
    %4210 = vmatpush1.msra.mxu0 0.0
    %4211 = vmatprep.subr.mxu0 0.0
    %4212 = vmatpush1.msra.mxu0 0.0
    %4213 = vmatprep.subr.mxu0 0.0
    %4214 = vmatpush1.msra.mxu0 0.0
    %4215 = vmatprep.subr.mxu0 0.0
    %4216 = vmatpush1.msra.mxu0 0.0
    %4217 = vmatprep.subr.mxu0 0.0
    %4218 = vmatpush1.msra.mxu0 0.0
    %4219 = vmatprep.subr.mxu0 0.0
    %4220 = vmatpush1.msra.mxu0 0.0
    %4221 = vmatprep.subr.mxu0 0.0
    %4222 = vmatpush1.msra.mxu0 0.0
    %4223 = vmatprep.subr.mxu0 0.0
    %4224 = vmatpush1.msra.mxu0 0.0
    %4225 = vmatprep.subr.mxu0 0.0
    %4226 = vmatpush1.msra.mxu0 0.0
    %4227 = vmatprep.subr.mxu0 0.0
    %4228 = vmatpush1.msra.mxu0 0.0
    %4229 = vmatprep.mubr.f32.mxu0 0.0
    %v4230 = vand.u32 %v4160, 4294901760
    %v4231 = vsub.f32 %v4160, %v4230
    %v4232 = vand.u32 %v4231, 4294901760
    %v4233 = vsub.f32 %v4231, %v4232
    %v4234 = vand.u32 %v4233, 4294901760
    %4235 = vmatmul.mubr.f32.gmra.mrb[0].mxu0 %v4234
    %v4236 = vpop.f32.mrb[0].mxu0
    %v4237 = vadd.f32 %v4034, %v4236
    %v4238 = vpop.f32.mrb[0].mxu0
    %4239 = vmatprep.mubr.f32.mxu0 0.0
    %v4240 = vand.u32 %v4162, 4294901760
    %v4241 = vsub.f32 %v4162, %v4240
    %v4242 = vand.u32 %v4241, 4294901760
    %v4243 = vsub.f32 %v4241, %v4242
    %v4244 = vand.u32 %v4243, 4294901760
    %4245 = vmatmul.mubr.f32.gmra.mrb[0].mxu0 %v4244
    %v4246 = vpop.f32.mrb[0].mxu0
    %v4247 = vadd.f32 %v4035, %v4246
    %v4248 = vpop.f32.mrb[0].mxu0
    %4249 = vdwg.mxu0
    %4250 = vmatprep.subr.mxu0 0.0
    %v4251 = vand.u32 %v4153, 4294901760
    %v4252 = vsub.f32 %v4153, %v4251
    %v4253 = vand.u32 %v4252, 4294901760
    %v4254 = vsub.f32 %v4252, %v4253
    %v4255 = vand.u32 %v4254, 4294901760
    %4256 = vmatpush1.msra.mxu0 %v4255
    %4257 = vmatprep.subr.mxu0 0.0
    %4258 = vmatpush1.msra.mxu0 0.0
    %4259 = vmatprep.subr.mxu0 0.0
    %4260 = vmatpush1.msra.mxu0 0.0
    %4261 = vmatprep.subr.mxu0 0.0
    %4262 = vmatpush1.msra.mxu0 0.0
    %4263 = vmatprep.subr.mxu0 0.0
    %4264 = vmatpush1.msra.mxu0 0.0
    %4265 = vmatprep.subr.mxu0 0.0
    %4266 = vmatpush1.msra.mxu0 0.0
    %4267 = vmatprep.subr.mxu0 0.0
    %4268 = vmatpush1.msra.mxu0 0.0
    %4269 = vmatprep.subr.mxu0 0.0
    %4270 = vmatpush1.msra.mxu0 0.0
    %4271 = vmatprep.subr.mxu0 0.0
    %4272 = vmatpush1.msra.mxu0 0.0
    %4273 = vmatprep.subr.mxu0 0.0
    %4274 = vmatpush1.msra.mxu0 0.0
    %4275 = vmatprep.subr.mxu0 0.0
    %4276 = vmatpush1.msra.mxu0 0.0
    %4277 = vmatprep.subr.mxu0 0.0
    %4278 = vmatpush1.msra.mxu0 0.0
    %4279 = vmatprep.subr.mxu0 0.0
    %4280 = vmatpush1.msra.mxu0 0.0
    %4281 = vmatprep.subr.mxu0 0.0
    %4282 = vmatpush1.msra.mxu0 0.0
    %4283 = vmatprep.subr.mxu0 0.0
    %4284 = vmatpush1.msra.mxu0 0.0
    %4285 = vmatprep.subr.mxu0 0.0
    %4286 = vmatpush1.msra.mxu0 0.0
    %4287 = vmatprep.subr.mxu0 0.0
    %4288 = vmatpush1.msra.mxu0 0.0
    %4289 = vmatprep.subr.mxu0 0.0
    %4290 = vmatpush1.msra.mxu0 0.0
    %4291 = vmatprep.subr.mxu0 0.0
    %4292 = vmatpush1.msra.mxu0 0.0
    %4293 = vmatprep.subr.mxu0 0.0
    %4294 = vmatpush1.msra.mxu0 0.0
    %4295 = vmatprep.subr.mxu0 0.0
    %4296 = vmatpush1.msra.mxu0 0.0
    %4297 = vmatprep.subr.mxu0 0.0
    %4298 = vmatpush1.msra.mxu0 0.0
    %4299 = vmatprep.subr.mxu0 0.0
    %4300 = vmatpush1.msra.mxu0 0.0
    %4301 = vmatprep.subr.mxu0 0.0
    %4302 = vmatpush1.msra.mxu0 0.0
    %4303 = vmatprep.subr.mxu0 0.0
    %4304 = vmatpush1.msra.mxu0 0.0
    %4305 = vmatprep.subr.mxu0 0.0
    %4306 = vmatpush1.msra.mxu0 0.0
    %4307 = vmatprep.subr.mxu0 0.0
    %4308 = vmatpush1.msra.mxu0 0.0
    %4309 = vmatprep.subr.mxu0 0.0
    %4310 = vmatpush1.msra.mxu0 0.0
    %4311 = vmatprep.subr.mxu0 0.0
    %4312 = vmatpush1.msra.mxu0 0.0
    %4313 = vmatprep.subr.mxu0 0.0
    %4314 = vmatpush1.msra.mxu0 0.0
    %4315 = vmatprep.subr.mxu0 0.0
    %4316 = vmatpush1.msra.mxu0 0.0
    %4317 = vmatprep.subr.mxu0 0.0
    %4318 = vmatpush1.msra.mxu0 0.0
    %4319 = vmatprep.mubr.f32.mxu0 0.0
    %v4320 = vand.u32 %v4160, 4294901760
    %4321 = vmatmul.mubr.f32.gmra.mrb[0].mxu0 %v4320
    %v4322 = vpop.f32.mrb[0].mxu0
    %v4323 = vadd.f32 %v4237, %v4322
    %v4324 = vpop.f32.mrb[0].mxu0
    %4325 = vmatprep.mubr.f32.mxu0 0.0
    %v4326 = vand.u32 %v4162, 4294901760
    %4327 = vmatmul.mubr.f32.gmra.mrb[0].mxu0 %v4326
    %v4328 = vpop.f32.mrb[0].mxu0
    %v4329 = vadd.f32 %v4247, %v4328
    %v4330 = vpop.f32.mrb[0].mxu0
    %4331 = vdwg.mxu0
    %4332 = vmatprep.subr.mxu0 0.0
    %v4333 = vand.u32 %v4153, 4294901760
    %v4334 = vsub.f32 %v4153, %v4333
    %4335 = vmatpush1.msra.mxu0 %v4334
    %4336 = vmatprep.subr.mxu0 0.0
    %4337 = vmatpush1.msra.mxu0 0.0
    %4338 = vmatprep.subr.mxu0 0.0
    %4339 = vmatpush1.msra.mxu0 0.0
    %4340 = vmatprep.subr.mxu0 0.0
    %4341 = vmatpush1.msra.mxu0 0.0
    %4342 = vmatprep.subr.mxu0 0.0
    %4343 = vmatpush1.msra.mxu0 0.0
    %4344 = vmatprep.subr.mxu0 0.0
    %4345 = vmatpush1.msra.mxu0 0.0
    %4346 = vmatprep.subr.mxu0 0.0
    %4347 = vmatpush1.msra.mxu0 0.0
    %4348 = vmatprep.subr.mxu0 0.0
    %4349 = vmatpush1.msra.mxu0 0.0
    %4350 = vmatprep.subr.mxu0 0.0
    %4351 = vmatpush1.msra.mxu0 0.0
    %4352 = vmatprep.subr.mxu0 0.0
    %4353 = vmatpush1.msra.mxu0 0.0
    %4354 = vmatprep.subr.mxu0 0.0
    %4355 = vmatpush1.msra.mxu0 0.0
    %4356 = vmatprep.subr.mxu0 0.0
    %4357 = vmatpush1.msra.mxu0 0.0
    %4358 = vmatprep.subr.mxu0 0.0
    %4359 = vmatpush1.msra.mxu0 0.0
    %4360 = vmatprep.subr.mxu0 0.0
    %4361 = vmatpush1.msra.mxu0 0.0
    %4362 = vmatprep.subr.mxu0 0.0
    %4363 = vmatpush1.msra.mxu0 0.0
    %4364 = vmatprep.subr.mxu0 0.0
    %4365 = vmatpush1.msra.mxu0 0.0
    %4366 = vmatprep.subr.mxu0 0.0
    %4367 = vmatpush1.msra.mxu0 0.0
    %4368 = vmatprep.subr.mxu0 0.0
    %4369 = vmatpush1.msra.mxu0 0.0
    %4370 = vmatprep.subr.mxu0 0.0
    %4371 = vmatpush1.msra.mxu0 0.0
    %4372 = vmatprep.subr.mxu0 0.0
    %4373 = vmatpush1.msra.mxu0 0.0
    %4374 = vmatprep.subr.mxu0 0.0
    %4375 = vmatpush1.msra.mxu0 0.0
    %4376 = vmatprep.subr.mxu0 0.0
    %4377 = vmatpush1.msra.mxu0 0.0
    %4378 = vmatprep.subr.mxu0 0.0
    %4379 = vmatpush1.msra.mxu0 0.0
    %4380 = vmatprep.subr.mxu0 0.0
    %4381 = vmatpush1.msra.mxu0 0.0
    %4382 = vmatprep.subr.mxu0 0.0
    %4383 = vmatpush1.msra.mxu0 0.0
    %4384 = vmatprep.subr.mxu0 0.0
    %4385 = vmatpush1.msra.mxu0 0.0
    %4386 = vmatprep.subr.mxu0 0.0
    %4387 = vmatpush1.msra.mxu0 0.0
    %4388 = vmatprep.subr.mxu0 0.0
    %4389 = vmatpush1.msra.mxu0 0.0
    %4390 = vmatprep.subr.mxu0 0.0
    %4391 = vmatpush1.msra.mxu0 0.0
    %4392 = vmatprep.subr.mxu0 0.0
    %4393 = vmatpush1.msra.mxu0 0.0
    %4394 = vmatprep.subr.mxu0 0.0
    %4395 = vmatpush1.msra.mxu0 0.0
    %4396 = vmatprep.subr.mxu0 0.0
    %4397 = vmatpush1.msra.mxu0 0.0
    %4398 = vmatprep.mubr.f32.mxu0 0.0
    %v4399 = vand.u32 %v4160, 4294901760
    %v4400 = vsub.f32 %v4160, %v4399
    %4401 = vmatmul.mubr.f32.gmra.mrb[0].mxu0 %v4400
    %v4402 = vpop.f32.mrb[0].mxu0
    %v4403 = vadd.f32 %v4323, %v4402
    %v4404 = vpop.f32.mrb[0].mxu0
    %4405 = vmatprep.mubr.f32.mxu0 0.0
    %v4406 = vand.u32 %v4162, 4294901760
    %v4407 = vsub.f32 %v4162, %v4406
    %4408 = vmatmul.mubr.f32.gmra.mrb[0].mxu0 %v4407
    %v4409 = vpop.f32.mrb[0].mxu0
    %v4410 = vadd.f32 %v4329, %v4409
    %v4411 = vpop.f32.mrb[0].mxu0
    %4412 = vdwg.mxu0
    %4413 = vmatprep.subr.mxu0 0.0
    %v4414 = vand.u32 %v4153, 4294901760
    %4415 = vmatpush1.msra.mxu0 %v4414
    %4416 = vmatprep.subr.mxu0 0.0
    %4417 = vmatpush1.msra.mxu0 0.0
    %4418 = vmatprep.subr.mxu0 0.0
    %4419 = vmatpush1.msra.mxu0 0.0
    %4420 = vmatprep.subr.mxu0 0.0
    %4421 = vmatpush1.msra.mxu0 0.0
    %4422 = vmatprep.subr.mxu0 0.0
    %4423 = vmatpush1.msra.mxu0 0.0
    %4424 = vmatprep.subr.mxu0 0.0
    %4425 = vmatpush1.msra.mxu0 0.0
    %4426 = vmatprep.subr.mxu0 0.0
    %4427 = vmatpush1.msra.mxu0 0.0
    %4428 = vmatprep.subr.mxu0 0.0
    %4429 = vmatpush1.msra.mxu0 0.0
    %4430 = vmatprep.subr.mxu0 0.0
    %4431 = vmatpush1.msra.mxu0 0.0
    %4432 = vmatprep.subr.mxu0 0.0
    %4433 = vmatpush1.msra.mxu0 0.0
    %4434 = vmatprep.subr.mxu0 0.0
    %4435 = vmatpush1.msra.mxu0 0.0
    %4436 = vmatprep.subr.mxu0 0.0
    %4437 = vmatpush1.msra.mxu0 0.0
    %4438 = vmatprep.subr.mxu0 0.0
    %4439 = vmatpush1.msra.mxu0 0.0
    %4440 = vmatprep.subr.mxu0 0.0
    %4441 = vmatpush1.msra.mxu0 0.0
    %4442 = vmatprep.subr.mxu0 0.0
    %4443 = vmatpush1.msra.mxu0 0.0
    %4444 = vmatprep.subr.mxu0 0.0
    %4445 = vmatpush1.msra.mxu0 0.0
    %4446 = vmatprep.subr.mxu0 0.0
    %4447 = vmatpush1.msra.mxu0 0.0
    %4448 = vmatprep.subr.mxu0 0.0
    %4449 = vmatpush1.msra.mxu0 0.0
    %4450 = vmatprep.subr.mxu0 0.0
    %4451 = vmatpush1.msra.mxu0 0.0
    %4452 = vmatprep.subr.mxu0 0.0
    %4453 = vmatpush1.msra.mxu0 0.0
    %4454 = vmatprep.subr.mxu0 0.0
    %4455 = vmatpush1.msra.mxu0 0.0
    %4456 = vmatprep.subr.mxu0 0.0
    %4457 = vmatpush1.msra.mxu0 0.0
    %4458 = vmatprep.subr.mxu0 0.0
    %4459 = vmatpush1.msra.mxu0 0.0
    %4460 = vmatprep.subr.mxu0 0.0
    %4461 = vmatpush1.msra.mxu0 0.0
    %4462 = vmatprep.subr.mxu0 0.0
    %4463 = vmatpush1.msra.mxu0 0.0
    %4464 = vmatprep.subr.mxu0 0.0
    %4465 = vmatpush1.msra.mxu0 0.0
    %4466 = vmatprep.subr.mxu0 0.0
    %4467 = vmatpush1.msra.mxu0 0.0
    %4468 = vmatprep.subr.mxu0 0.0
    %4469 = vmatpush1.msra.mxu0 0.0
    %4470 = vmatprep.subr.mxu0 0.0
    %4471 = vmatpush1.msra.mxu0 0.0
    %4472 = vmatprep.subr.mxu0 0.0
    %4473 = vmatpush1.msra.mxu0 0.0
    %4474 = vmatprep.subr.mxu0 0.0
    %4475 = vmatpush1.msra.mxu0 0.0
    %4476 = vmatprep.subr.mxu0 0.0
    %4477 = vmatpush1.msra.mxu0 0.0
    %4478 = vmatprep.mubr.f32.mxu0 0.0
    %v4479 = vand.u32 %v4160, 4294901760
    %v4480 = vsub.f32 %v4160, %v4479
    %v4481 = vand.u32 %v4480, 4294901760
    %4482 = vmatmul.mubr.f32.gmra.mrb[0].mxu0 %v4481
    %v4483 = vpop.f32.mrb[0].mxu0
    %v4484 = vadd.f32 %v4403, %v4483
    %v4485 = vpop.f32.mrb[0].mxu0
    %4486 = vmatprep.mubr.f32.mxu0 0.0
    %v4487 = vand.u32 %v4162, 4294901760
    %v4488 = vsub.f32 %v4162, %v4487
    %v4489 = vand.u32 %v4488, 4294901760
    %4490 = vmatmul.mubr.f32.gmra.mrb[0].mxu0 %v4489
    %v4491 = vpop.f32.mrb[0].mxu0
    %v4492 = vadd.f32 %v4410, %v4491
    %v4493 = vpop.f32.mrb[0].mxu0
    %4494 = vdwg.mxu0
    %4495 = vmatprep.subr.mxu0 0.0
    %v4496 = vand.u32 %v4153, 4294901760
    %v4497 = vsub.f32 %v4153, %v4496
    %v4498 = vand.u32 %v4497, 4294901760
    %4499 = vmatpush1.msra.mxu0 %v4498
    %4500 = vmatprep.subr.mxu0 0.0
    %4501 = vmatpush1.msra.mxu0 0.0
    %4502 = vmatprep.subr.mxu0 0.0
    %4503 = vmatpush1.msra.mxu0 0.0
    %4504 = vmatprep.subr.mxu0 0.0
    %4505 = vmatpush1.msra.mxu0 0.0
    %4506 = vmatprep.subr.mxu0 0.0
    %4507 = vmatpush1.msra.mxu0 0.0
    %4508 = vmatprep.subr.mxu0 0.0
    %4509 = vmatpush1.msra.mxu0 0.0
    %4510 = vmatprep.subr.mxu0 0.0
    %4511 = vmatpush1.msra.mxu0 0.0
    %4512 = vmatprep.subr.mxu0 0.0
    %4513 = vmatpush1.msra.mxu0 0.0
    %4514 = vmatprep.subr.mxu0 0.0
    %4515 = vmatpush1.msra.mxu0 0.0
    %4516 = vmatprep.subr.mxu0 0.0
    %4517 = vmatpush1.msra.mxu0 0.0
    %4518 = vmatprep.subr.mxu0 0.0
    %4519 = vmatpush1.msra.mxu0 0.0
    %4520 = vmatprep.subr.mxu0 0.0
    %4521 = vmatpush1.msra.mxu0 0.0
    %4522 = vmatprep.subr.mxu0 0.0
    %4523 = vmatpush1.msra.mxu0 0.0
    %4524 = vmatprep.subr.mxu0 0.0
    %4525 = vmatpush1.msra.mxu0 0.0
    %4526 = vmatprep.subr.mxu0 0.0
    %4527 = vmatpush1.msra.mxu0 0.0
    %4528 = vmatprep.subr.mxu0 0.0
    %4529 = vmatpush1.msra.mxu0 0.0
    %4530 = vmatprep.subr.mxu0 0.0
    %4531 = vmatpush1.msra.mxu0 0.0
    %4532 = vmatprep.subr.mxu0 0.0
    %4533 = vmatpush1.msra.mxu0 0.0
    %4534 = vmatprep.subr.mxu0 0.0
    %4535 = vmatpush1.msra.mxu0 0.0
    %4536 = vmatprep.subr.mxu0 0.0
    %4537 = vmatpush1.msra.mxu0 0.0
    %4538 = vmatprep.subr.mxu0 0.0
    %4539 = vmatpush1.msra.mxu0 0.0
    %4540 = vmatprep.subr.mxu0 0.0
    %4541 = vmatpush1.msra.mxu0 0.0
    %4542 = vmatprep.subr.mxu0 0.0
    %4543 = vmatpush1.msra.mxu0 0.0
    %4544 = vmatprep.subr.mxu0 0.0
    %4545 = vmatpush1.msra.mxu0 0.0
    %4546 = vmatprep.subr.mxu0 0.0
    %4547 = vmatpush1.msra.mxu0 0.0
    %4548 = vmatprep.subr.mxu0 0.0
    %4549 = vmatpush1.msra.mxu0 0.0
    %4550 = vmatprep.subr.mxu0 0.0
    %4551 = vmatpush1.msra.mxu0 0.0
    %4552 = vmatprep.subr.mxu0 0.0
    %4553 = vmatpush1.msra.mxu0 0.0
    %4554 = vmatprep.subr.mxu0 0.0
    %4555 = vmatpush1.msra.mxu0 0.0
    %4556 = vmatprep.subr.mxu0 0.0
    %4557 = vmatpush1.msra.mxu0 0.0
    %4558 = vmatprep.subr.mxu0 0.0
    %4559 = vmatpush1.msra.mxu0 0.0
    %4560 = vmatprep.subr.mxu0 0.0
    %4561 = vmatpush1.msra.mxu0 0.0
    %4562 = vmatprep.mubr.f32.mxu0 0.0
    %v4563 = vand.u32 %v4160, 4294901760
    %4564 = vmatmul.mubr.f32.gmra.mrb[0].mxu0 %v4563
    %v4565 = vpop.f32.mrb[0].mxu0
    %v4566 = vadd.f32 %v4484, %v4565
    %v4567 = vpop.f32.mrb[0].mxu0
    %4568 = vmatprep.mubr.f32.mxu0 0.0
    %v4569 = vand.u32 %v4162, 4294901760
    %4570 = vmatmul.mubr.f32.gmra.mrb[0].mxu0 %v4569
    %v4571 = vpop.f32.mrb[0].mxu0
    %v4572 = vadd.f32 %v4492, %v4571
    %v4573 = vpop.f32.mrb[0].mxu0
    %4574 = vdwg.mxu0
    %4575 = vmatprep.subr.mxu0 0.0
    %v4576 = vand.u32 %v4153, 4294901760
    %4577 = vmatpush1.msra.mxu0 %v4576
    %4578 = vmatprep.subr.mxu0 0.0
    %4579 = vmatpush1.msra.mxu0 0.0
    %4580 = vmatprep.subr.mxu0 0.0
    %4581 = vmatpush1.msra.mxu0 0.0
    %4582 = vmatprep.subr.mxu0 0.0
    %4583 = vmatpush1.msra.mxu0 0.0
    %4584 = vmatprep.subr.mxu0 0.0
    %4585 = vmatpush1.msra.mxu0 0.0
    %4586 = vmatprep.subr.mxu0 0.0
    %4587 = vmatpush1.msra.mxu0 0.0
    %4588 = vmatprep.subr.mxu0 0.0
    %4589 = vmatpush1.msra.mxu0 0.0
    %4590 = vmatprep.subr.mxu0 0.0
    %4591 = vmatpush1.msra.mxu0 0.0
    %4592 = vmatprep.subr.mxu0 0.0
    %4593 = vmatpush1.msra.mxu0 0.0
    %4594 = vmatprep.subr.mxu0 0.0
    %4595 = vmatpush1.msra.mxu0 0.0
    %4596 = vmatprep.subr.mxu0 0.0
    %4597 = vmatpush1.msra.mxu0 0.0
    %4598 = vmatprep.subr.mxu0 0.0
    %4599 = vmatpush1.msra.mxu0 0.0
    %4600 = vmatprep.subr.mxu0 0.0
    %4601 = vmatpush1.msra.mxu0 0.0
    %4602 = vmatprep.subr.mxu0 0.0
    %4603 = vmatpush1.msra.mxu0 0.0
    %4604 = vmatprep.subr.mxu0 0.0
    %4605 = vmatpush1.msra.mxu0 0.0
    %4606 = vmatprep.subr.mxu0 0.0
    %4607 = vmatpush1.msra.mxu0 0.0
    %4608 = vmatprep.subr.mxu0 0.0
    %4609 = vmatpush1.msra.mxu0 0.0
    %4610 = vmatprep.subr.mxu0 0.0
    %4611 = vmatpush1.msra.mxu0 0.0
    %4612 = vmatprep.subr.mxu0 0.0
    %4613 = vmatpush1.msra.mxu0 0.0
    %4614 = vmatprep.subr.mxu0 0.0
    %4615 = vmatpush1.msra.mxu0 0.0
    %4616 = vmatprep.subr.mxu0 0.0
    %4617 = vmatpush1.msra.mxu0 0.0
    %4618 = vmatprep.subr.mxu0 0.0
    %4619 = vmatpush1.msra.mxu0 0.0
    %4620 = vmatprep.subr.mxu0 0.0
    %4621 = vmatpush1.msra.mxu0 0.0
    %4622 = vmatprep.subr.mxu0 0.0
    %4623 = vmatpush1.msra.mxu0 0.0
    %4624 = vmatprep.subr.mxu0 0.0
    %4625 = vmatpush1.msra.mxu0 0.0
    %4626 = vmatprep.subr.mxu0 0.0
    %4627 = vmatpush1.msra.mxu0 0.0
    %4628 = vmatprep.subr.mxu0 0.0
    %4629 = vmatpush1.msra.mxu0 0.0
    %4630 = vmatprep.subr.mxu0 0.0
    %4631 = vmatpush1.msra.mxu0 0.0
    %4632 = vmatprep.subr.mxu0 0.0
    %4633 = vmatpush1.msra.mxu0 0.0
    %4634 = vmatprep.subr.mxu0 0.0
    %4635 = vmatpush1.msra.mxu0 0.0
    %4636 = vmatprep.subr.mxu0 0.0
    %4637 = vmatpush1.msra.mxu0 0.0
    %4638 = vmatprep.subr.mxu0 0.0
    %4639 = vmatpush1.msra.mxu0 0.0
    %4640 = vmatprep.mubr.f32.mxu0 0.0
    %v4641 = vand.u32 %v4160, 4294901760
    %4642 = vmatmul.mubr.f32.gmra.mrb[0].mxu0 %v4641
    %v4643 = vpop.f32.mrb[0].mxu0
    %v4644 = vadd.f32 %v4566, %v4643
    %v4645 = vpop.f32.mrb[0].mxu0
    %4646 = vmatprep.mubr.f32.mxu0 0.0
    %v4647 = vand.u32 %v4162, 4294901760
    %4648 = vmatmul.mubr.f32.gmra.mrb[0].mxu0 %v4647
    %v4649 = vpop.f32.mrb[0].mxu0
    %v4650 = vadd.f32 %v4572, %v4649
    %v4651 = vpop.f32.mrb[0].mxu0
    %4652 = vdwg.mxu0
    %v4653 = vsel %vm276, %v4644, -inf
    %4654 = vmax.xlane.f32.xlu0 %v4653
    %v4655 = vpop.xlane.xlu0 %4654
    %v4656 = vsel %vm276, %v4650, -inf
    %4657 = vmax.xlane.f32.xlu0 %v4656
    %v4658 = vpop.xlane.xlu0 %4657
    %v4659 = vsub.f32 %v4644, %v4655
    %v4660 = vsub.f32 %v4650, %v4658
    %v4661 = vmul.f32 %v4659, 1.442695
    %v4662 = vpow.pop %v4661
    %v4663 = vmul.f32 %v4660, 1.442695
    %v4664 = vpow.pop %v4663
    %v4665 = vsel %vm276, %v4662, 0.0
    %4666 = vadd.xlane.f32.xlu0 %v4665
    %v4667 = vpop.xlane.xlu0 %4666
    %v4668 = vsel %vm276, %v4664, 0.0
    %4669 = vadd.xlane.f32.xlu0 %v4668
    %v4670 = vpop.xlane.xlu0 %4669
    %v4671 = vrcp.pop %v4667
    %v4672 = vrcp.pop %v4670
    %v4673 = vmul.f32 %v4662, %v4671
    %v4674 = vmul.f32 %v4664, %v4672
    %v4675 = vld [vmem:[%s2] sm:$0x1]
    %v4676 = vsub.f32 1.0, %v4675
    %v4678 = vlaneseq
    %v4679 = vshrl.u32 %v4678, 7
    %v4680 = vsub.s32 0, %v4679
    %v4681 = vrot.slane %v4676, %v4680
    %4682 = vset.pattern.permute.xlu0 3
    %4683 = vperm.xlu0 %4682, %v4681
    %v4684 = vpop.permute.xlu0 %4683
    %v4686 = vmul.f32 %v4684, %v4149
    %v4687 = vmul.f32 %v4684, %v4150
    %v4689 = vlaneseq
    %v4690 = vshrl.u32 %v4689, 7
    %v4691 = vsub.s32 0, %v4690
    %v4692 = vrot.slane %v4675, %v4691
    %4693 = vset.pattern.permute.xlu0 3
    %4694 = vperm.xlu0 %4693, %v4692
    %v4695 = vpop.permute.xlu0 %4694
    %v4697 = vmul.f32 %v4695, %v4673
    %v4698 = vmul.f32 %v4695, %v4674
    %v4699 = vadd.f32 %v4686, %v4697
    %v4700 = vadd.f32 %v4687, %v4698
    %v4701 = vsel %vm276, %v4699, 0.0
    %4702 = vadd.xlane.f32.xlu0 %v4701
    %v4703 = vpop.xlane.xlu0 %4702
    %v4704 = vsel %vm276, %v4700, 0.0
    %4705 = vadd.xlane.f32.xlu0 %v4704
    %v4706 = vpop.xlane.xlu0 %4705
    %v4707 = vrcp.pop %v4703
    %v4708 = vrcp.pop %v4706
    %v4709 = vmul.f32 %v4699, %v4707
    %v4710 = vmul.f32 %v4700, %v4708
    %v4711 = vld [vmem:[%s5] sm:$0xff]
    %v4712 = vld [vmem:[%s5 + $0x8] sm:$0xff]
    %v4714 = vsel %vm276, %v4709, 0
    %v4717 = vsel %vm276, %v4710, 0
    %4719 = vmatprep.subr.mxu0 0.0
    %v4720 = vand.u32 %v4711, 4294901760
    %4721 = vmatpush1.msra.mxu0 %v4720
    %4722 = vmatprep.subr.mxu0 0.0
    %v4723 = vand.u32 %v4712, 4294901760
    %4724 = vmatpush1.msra.mxu0 %v4723
    %4725 = vmatprep.subr.mxu0 0.0
    %4726 = vmatpush1.msra.mxu0 0.0
    %4727 = vmatprep.subr.mxu0 0.0
    %4728 = vmatpush1.msra.mxu0 0.0
    %4729 = vmatprep.subr.mxu0 0.0
    %4730 = vmatpush1.msra.mxu0 0.0
    %4731 = vmatprep.subr.mxu0 0.0
    %4732 = vmatpush1.msra.mxu0 0.0
    %4733 = vmatprep.subr.mxu0 0.0
    %4734 = vmatpush1.msra.mxu0 0.0
    %4735 = vmatprep.subr.mxu0 0.0
    %4736 = vmatpush1.msra.mxu0 0.0
    %4737 = vmatprep.subr.mxu0 0.0
    %4738 = vmatpush1.msra.mxu0 0.0
    %4739 = vmatprep.subr.mxu0 0.0
    %4740 = vmatpush1.msra.mxu0 0.0
    %4741 = vmatprep.subr.mxu0 0.0
    %4742 = vmatpush1.msra.mxu0 0.0
    %4743 = vmatprep.subr.mxu0 0.0
    %4744 = vmatpush1.msra.mxu0 0.0
    %4745 = vmatprep.subr.mxu0 0.0
    %4746 = vmatpush1.msra.mxu0 0.0
    %4747 = vmatprep.subr.mxu0 0.0
    %4748 = vmatpush1.msra.mxu0 0.0
    %4749 = vmatprep.subr.mxu0 0.0
    %4750 = vmatpush1.msra.mxu0 0.0
    %4751 = vmatprep.subr.mxu0 0.0
    %4752 = vmatpush1.msra.mxu0 0.0
    %4753 = vmatprep.subr.mxu0 0.0
    %4754 = vmatpush1.msra.mxu0 0.0
    %4755 = vmatprep.subr.mxu0 0.0
    %4756 = vmatpush1.msra.mxu0 0.0
    %4757 = vmatprep.subr.mxu0 0.0
    %4758 = vmatpush1.msra.mxu0 0.0
    %4759 = vmatprep.subr.mxu0 0.0
    %4760 = vmatpush1.msra.mxu0 0.0
    %4761 = vmatprep.subr.mxu0 0.0
    %4762 = vmatpush1.msra.mxu0 0.0
    %4763 = vmatprep.subr.mxu0 0.0
    %4764 = vmatpush1.msra.mxu0 0.0
    %4765 = vmatprep.subr.mxu0 0.0
    %4766 = vmatpush1.msra.mxu0 0.0
    %4767 = vmatprep.subr.mxu0 0.0
    %4768 = vmatpush1.msra.mxu0 0.0
    %4769 = vmatprep.subr.mxu0 0.0
    %4770 = vmatpush1.msra.mxu0 0.0
    %4771 = vmatprep.subr.mxu0 0.0
    %4772 = vmatpush1.msra.mxu0 0.0
    %4773 = vmatprep.subr.mxu0 0.0
    %4774 = vmatpush1.msra.mxu0 0.0
    %4775 = vmatprep.subr.mxu0 0.0
    %4776 = vmatpush1.msra.mxu0 0.0
    %4777 = vmatprep.subr.mxu0 0.0
    %4778 = vmatpush1.msra.mxu0 0.0
    %4779 = vmatprep.subr.mxu0 0.0
    %4780 = vmatpush1.msra.mxu0 0.0
    %4781 = vmatprep.subr.mxu0 0.0
    %4782 = vmatpush1.msra.mxu0 0.0
    %4783 = vmatprep.subr.mxu0 0.0
    %4784 = vmatpush1.msra.mxu0 0.0
    %4785 = vmatprep.mubr.f32.mxu0 0.0
    %v4786 = vand.u32 %v4714, 4294901760
    %v4787 = vsub.f32 %v4714, %v4786
    %v4788 = vand.u32 %v4787, 4294901760
    %v4789 = vsub.f32 %v4787, %v4788
    %v4790 = vand.u32 %v4789, 4294901760
    %4791 = vmatmul.mubr.f32.gmra.mrb[0].mxu0 %v4790
    %v4792 = vpop.f32.mrb[0].mxu0
    %v4793 = vadd.f32 0.0, %v4792
    %v4794 = vpop.f32.mrb[0].mxu0
    %4795 = vmatprep.mubr.f32.mxu0 0.0
    %v4796 = vand.u32 %v4717, 4294901760
    %v4797 = vsub.f32 %v4717, %v4796
    %v4798 = vand.u32 %v4797, 4294901760
    %v4799 = vsub.f32 %v4797, %v4798
    %v4800 = vand.u32 %v4799, 4294901760
    %4801 = vmatmul.mubr.f32.gmra.mrb[0].mxu0 %v4800
    %v4802 = vpop.f32.mrb[0].mxu0
    %v4803 = vadd.f32 0.0, %v4802
    %v4804 = vpop.f32.mrb[0].mxu0
    %4805 = vdwg.mxu0
    %4806 = vmatprep.subr.mxu0 0.0
    %v4807 = vand.u32 %v4711, 4294901760
    %v4808 = vsub.f32 %v4711, %v4807
    %v4809 = vand.u32 %v4808, 4294901760
    %v4810 = vsub.f32 %v4808, %v4809
    %v4811 = vand.u32 %v4810, 4294901760
    %4812 = vmatpush1.msra.mxu0 %v4811
    %4813 = vmatprep.subr.mxu0 0.0
    %v4814 = vand.u32 %v4712, 4294901760
    %v4815 = vsub.f32 %v4712, %v4814
    %v4816 = vand.u32 %v4815, 4294901760
    %v4817 = vsub.f32 %v4815, %v4816
    %v4818 = vand.u32 %v4817, 4294901760
    %4819 = vmatpush1.msra.mxu0 %v4818
    %4820 = vmatprep.subr.mxu0 0.0
    %4821 = vmatpush1.msra.mxu0 0.0
    %4822 = vmatprep.subr.mxu0 0.0
    %4823 = vmatpush1.msra.mxu0 0.0
    %4824 = vmatprep.subr.mxu0 0.0
    %4825 = vmatpush1.msra.mxu0 0.0
    %4826 = vmatprep.subr.mxu0 0.0
    %4827 = vmatpush1.msra.mxu0 0.0
    %4828 = vmatprep.subr.mxu0 0.0
    %4829 = vmatpush1.msra.mxu0 0.0
    %4830 = vmatprep.subr.mxu0 0.0
    %4831 = vmatpush1.msra.mxu0 0.0
    %4832 = vmatprep.subr.mxu0 0.0
    %4833 = vmatpush1.msra.mxu0 0.0
    %4834 = vmatprep.subr.mxu0 0.0
    %4835 = vmatpush1.msra.mxu0 0.0
    %4836 = vmatprep.subr.mxu0 0.0
    %4837 = vmatpush1.msra.mxu0 0.0
    %4838 = vmatprep.subr.mxu0 0.0
    %4839 = vmatpush1.msra.mxu0 0.0
    %4840 = vmatprep.subr.mxu0 0.0
    %4841 = vmatpush1.msra.mxu0 0.0
    %4842 = vmatprep.subr.mxu0 0.0
    %4843 = vmatpush1.msra.mxu0 0.0
    %4844 = vmatprep.subr.mxu0 0.0
    %4845 = vmatpush1.msra.mxu0 0.0
    %4846 = vmatprep.subr.mxu0 0.0
    %4847 = vmatpush1.msra.mxu0 0.0
    %4848 = vmatprep.subr.mxu0 0.0
    %4849 = vmatpush1.msra.mxu0 0.0
    %4850 = vmatprep.subr.mxu0 0.0
    %4851 = vmatpush1.msra.mxu0 0.0
    %4852 = vmatprep.subr.mxu0 0.0
    %4853 = vmatpush1.msra.mxu0 0.0
    %4854 = vmatprep.subr.mxu0 0.0
    %4855 = vmatpush1.msra.mxu0 0.0
    %4856 = vmatprep.subr.mxu0 0.0
    %4857 = vmatpush1.msra.mxu0 0.0
    %4858 = vmatprep.subr.mxu0 0.0
    %4859 = vmatpush1.msra.mxu0 0.0
    %4860 = vmatprep.subr.mxu0 0.0
    %4861 = vmatpush1.msra.mxu0 0.0
    %4862 = vmatprep.subr.mxu0 0.0
    %4863 = vmatpush1.msra.mxu0 0.0
    %4864 = vmatprep.subr.mxu0 0.0
    %4865 = vmatpush1.msra.mxu0 0.0
    %4866 = vmatprep.subr.mxu0 0.0
    %4867 = vmatpush1.msra.mxu0 0.0
    %4868 = vmatprep.subr.mxu0 0.0
    %4869 = vmatpush1.msra.mxu0 0.0
    %4870 = vmatprep.subr.mxu0 0.0
    %4871 = vmatpush1.msra.mxu0 0.0
    %4872 = vmatprep.subr.mxu0 0.0
    %4873 = vmatpush1.msra.mxu0 0.0
    %4874 = vmatprep.subr.mxu0 0.0
    %4875 = vmatpush1.msra.mxu0 0.0
    %4876 = vmatprep.subr.mxu0 0.0
    %4877 = vmatpush1.msra.mxu0 0.0
    %4878 = vmatprep.subr.mxu0 0.0
    %4879 = vmatpush1.msra.mxu0 0.0
    %4880 = vmatprep.mubr.f32.mxu0 0.0
    %v4881 = vand.u32 %v4714, 4294901760
    %4882 = vmatmul.mubr.f32.gmra.mrb[0].mxu0 %v4881
    %v4883 = vpop.f32.mrb[0].mxu0
    %v4884 = vadd.f32 %v4793, %v4883
    %v4885 = vpop.f32.mrb[0].mxu0
    %4886 = vmatprep.mubr.f32.mxu0 0.0
    %v4887 = vand.u32 %v4717, 4294901760
    %4888 = vmatmul.mubr.f32.gmra.mrb[0].mxu0 %v4887
    %v4889 = vpop.f32.mrb[0].mxu0
    %v4890 = vadd.f32 %v4803, %v4889
    %v4891 = vpop.f32.mrb[0].mxu0
    %4892 = vdwg.mxu0
    %4893 = vmatprep.subr.mxu0 0.0
    %v4894 = vand.u32 %v4711, 4294901760
    %v4895 = vsub.f32 %v4711, %v4894
    %4896 = vmatpush1.msra.mxu0 %v4895
    %4897 = vmatprep.subr.mxu0 0.0
    %v4898 = vand.u32 %v4712, 4294901760
    %v4899 = vsub.f32 %v4712, %v4898
    %4900 = vmatpush1.msra.mxu0 %v4899
    %4901 = vmatprep.subr.mxu0 0.0
    %4902 = vmatpush1.msra.mxu0 0.0
    %4903 = vmatprep.subr.mxu0 0.0
    %4904 = vmatpush1.msra.mxu0 0.0
    %4905 = vmatprep.subr.mxu0 0.0
    %4906 = vmatpush1.msra.mxu0 0.0
    %4907 = vmatprep.subr.mxu0 0.0
    %4908 = vmatpush1.msra.mxu0 0.0
    %4909 = vmatprep.subr.mxu0 0.0
    %4910 = vmatpush1.msra.mxu0 0.0
    %4911 = vmatprep.subr.mxu0 0.0
    %4912 = vmatpush1.msra.mxu0 0.0
    %4913 = vmatprep.subr.mxu0 0.0
    %4914 = vmatpush1.msra.mxu0 0.0
    %4915 = vmatprep.subr.mxu0 0.0
    %4916 = vmatpush1.msra.mxu0 0.0
    %4917 = vmatprep.subr.mxu0 0.0
    %4918 = vmatpush1.msra.mxu0 0.0
    %4919 = vmatprep.subr.mxu0 0.0
    %4920 = vmatpush1.msra.mxu0 0.0
    %4921 = vmatprep.subr.mxu0 0.0
    %4922 = vmatpush1.msra.mxu0 0.0
    %4923 = vmatprep.subr.mxu0 0.0
    %4924 = vmatpush1.msra.mxu0 0.0
    %4925 = vmatprep.subr.mxu0 0.0
    %4926 = vmatpush1.msra.mxu0 0.0
    %4927 = vmatprep.subr.mxu0 0.0
    %4928 = vmatpush1.msra.mxu0 0.0
    %4929 = vmatprep.subr.mxu0 0.0
    %4930 = vmatpush1.msra.mxu0 0.0
    %4931 = vmatprep.subr.mxu0 0.0
    %4932 = vmatpush1.msra.mxu0 0.0
    %4933 = vmatprep.subr.mxu0 0.0
    %4934 = vmatpush1.msra.mxu0 0.0
    %4935 = vmatprep.subr.mxu0 0.0
    %4936 = vmatpush1.msra.mxu0 0.0
    %4937 = vmatprep.subr.mxu0 0.0
    %4938 = vmatpush1.msra.mxu0 0.0
    %4939 = vmatprep.subr.mxu0 0.0
    %4940 = vmatpush1.msra.mxu0 0.0
    %4941 = vmatprep.subr.mxu0 0.0
    %4942 = vmatpush1.msra.mxu0 0.0
    %4943 = vmatprep.subr.mxu0 0.0
    %4944 = vmatpush1.msra.mxu0 0.0
    %4945 = vmatprep.subr.mxu0 0.0
    %4946 = vmatpush1.msra.mxu0 0.0
    %4947 = vmatprep.subr.mxu0 0.0
    %4948 = vmatpush1.msra.mxu0 0.0
    %4949 = vmatprep.subr.mxu0 0.0
    %4950 = vmatpush1.msra.mxu0 0.0
    %4951 = vmatprep.subr.mxu0 0.0
    %4952 = vmatpush1.msra.mxu0 0.0
    %4953 = vmatprep.subr.mxu0 0.0
    %4954 = vmatpush1.msra.mxu0 0.0
    %4955 = vmatprep.subr.mxu0 0.0
    %4956 = vmatpush1.msra.mxu0 0.0
    %4957 = vmatprep.subr.mxu0 0.0
    %4958 = vmatpush1.msra.mxu0 0.0
    %4959 = vmatprep.subr.mxu0 0.0
    %4960 = vmatpush1.msra.mxu0 0.0
    %4961 = vmatprep.mubr.f32.mxu0 0.0
    %v4962 = vand.u32 %v4714, 4294901760
    %v4963 = vsub.f32 %v4714, %v4962
    %4964 = vmatmul.mubr.f32.gmra.mrb[0].mxu0 %v4963
    %v4965 = vpop.f32.mrb[0].mxu0
    %v4966 = vadd.f32 %v4884, %v4965
    %v4967 = vpop.f32.mrb[0].mxu0
    %4968 = vmatprep.mubr.f32.mxu0 0.0
    %v4969 = vand.u32 %v4717, 4294901760
    %v4970 = vsub.f32 %v4717, %v4969
    %4971 = vmatmul.mubr.f32.gmra.mrb[0].mxu0 %v4970
    %v4972 = vpop.f32.mrb[0].mxu0
    %v4973 = vadd.f32 %v4890, %v4972
    %v4974 = vpop.f32.mrb[0].mxu0
    %4975 = vdwg.mxu0
    %4976 = vmatprep.subr.mxu0 0.0
    %v4977 = vand.u32 %v4711, 4294901760
    %4978 = vmatpush1.msra.mxu0 %v4977
    %4979 = vmatprep.subr.mxu0 0.0
    %v4980 = vand.u32 %v4712, 4294901760
    %4981 = vmatpush1.msra.mxu0 %v4980
    %4982 = vmatprep.subr.mxu0 0.0
    %4983 = vmatpush1.msra.mxu0 0.0
    %4984 = vmatprep.subr.mxu0 0.0
    %4985 = vmatpush1.msra.mxu0 0.0
    %4986 = vmatprep.subr.mxu0 0.0
    %4987 = vmatpush1.msra.mxu0 0.0
    %4988 = vmatprep.subr.mxu0 0.0
    %4989 = vmatpush1.msra.mxu0 0.0
    %4990 = vmatprep.subr.mxu0 0.0
    %4991 = vmatpush1.msra.mxu0 0.0
    %4992 = vmatprep.subr.mxu0 0.0
    %4993 = vmatpush1.msra.mxu0 0.0
    %4994 = vmatprep.subr.mxu0 0.0
    %4995 = vmatpush1.msra.mxu0 0.0
    %4996 = vmatprep.subr.mxu0 0.0
    %4997 = vmatpush1.msra.mxu0 0.0
    %4998 = vmatprep.subr.mxu0 0.0
    %4999 = vmatpush1.msra.mxu0 0.0
    %5000 = vmatprep.subr.mxu0 0.0
    %5001 = vmatpush1.msra.mxu0 0.0
    %5002 = vmatprep.subr.mxu0 0.0
    %5003 = vmatpush1.msra.mxu0 0.0
    %5004 = vmatprep.subr.mxu0 0.0
    %5005 = vmatpush1.msra.mxu0 0.0
    %5006 = vmatprep.subr.mxu0 0.0
    %5007 = vmatpush1.msra.mxu0 0.0
    %5008 = vmatprep.subr.mxu0 0.0
    %5009 = vmatpush1.msra.mxu0 0.0
    %5010 = vmatprep.subr.mxu0 0.0
    %5011 = vmatpush1.msra.mxu0 0.0
    %5012 = vmatprep.subr.mxu0 0.0
    %5013 = vmatpush1.msra.mxu0 0.0
    %5014 = vmatprep.subr.mxu0 0.0
    %5015 = vmatpush1.msra.mxu0 0.0
    %5016 = vmatprep.subr.mxu0 0.0
    %5017 = vmatpush1.msra.mxu0 0.0
    %5018 = vmatprep.subr.mxu0 0.0
    %5019 = vmatpush1.msra.mxu0 0.0
    %5020 = vmatprep.subr.mxu0 0.0
    %5021 = vmatpush1.msra.mxu0 0.0
    %5022 = vmatprep.subr.mxu0 0.0
    %5023 = vmatpush1.msra.mxu0 0.0
    %5024 = vmatprep.subr.mxu0 0.0
    %5025 = vmatpush1.msra.mxu0 0.0
    %5026 = vmatprep.subr.mxu0 0.0
    %5027 = vmatpush1.msra.mxu0 0.0
    %5028 = vmatprep.subr.mxu0 0.0
    %5029 = vmatpush1.msra.mxu0 0.0
    %5030 = vmatprep.subr.mxu0 0.0
    %5031 = vmatpush1.msra.mxu0 0.0
    %5032 = vmatprep.subr.mxu0 0.0
    %5033 = vmatpush1.msra.mxu0 0.0
    %5034 = vmatprep.subr.mxu0 0.0
    %5035 = vmatpush1.msra.mxu0 0.0
    %5036 = vmatprep.subr.mxu0 0.0
    %5037 = vmatpush1.msra.mxu0 0.0
    %5038 = vmatprep.subr.mxu0 0.0
    %5039 = vmatpush1.msra.mxu0 0.0
    %5040 = vmatprep.subr.mxu0 0.0
    %5041 = vmatpush1.msra.mxu0 0.0
    %5042 = vmatprep.mubr.f32.mxu0 0.0
    %v5043 = vand.u32 %v4714, 4294901760
    %v5044 = vsub.f32 %v4714, %v5043
    %v5045 = vand.u32 %v5044, 4294901760
    %5046 = vmatmul.mubr.f32.gmra.mrb[0].mxu0 %v5045
    %v5047 = vpop.f32.mrb[0].mxu0
    %v5048 = vadd.f32 %v4966, %v5047
    %v5049 = vpop.f32.mrb[0].mxu0
    %5050 = vmatprep.mubr.f32.mxu0 0.0
    %v5051 = vand.u32 %v4717, 4294901760
    %v5052 = vsub.f32 %v4717, %v5051
    %v5053 = vand.u32 %v5052, 4294901760
    %5054 = vmatmul.mubr.f32.gmra.mrb[0].mxu0 %v5053
    %v5055 = vpop.f32.mrb[0].mxu0
    %v5056 = vadd.f32 %v4973, %v5055
    %v5057 = vpop.f32.mrb[0].mxu0
    %5058 = vdwg.mxu0
    %5059 = vmatprep.subr.mxu0 0.0
    %v5060 = vand.u32 %v4711, 4294901760
    %v5061 = vsub.f32 %v4711, %v5060
    %v5062 = vand.u32 %v5061, 4294901760
    %5063 = vmatpush1.msra.mxu0 %v5062
    %5064 = vmatprep.subr.mxu0 0.0
    %v5065 = vand.u32 %v4712, 4294901760
    %v5066 = vsub.f32 %v4712, %v5065
    %v5067 = vand.u32 %v5066, 4294901760
    %5068 = vmatpush1.msra.mxu0 %v5067
    %5069 = vmatprep.subr.mxu0 0.0
    %5070 = vmatpush1.msra.mxu0 0.0
    %5071 = vmatprep.subr.mxu0 0.0
    %5072 = vmatpush1.msra.mxu0 0.0
    %5073 = vmatprep.subr.mxu0 0.0
    %5074 = vmatpush1.msra.mxu0 0.0
    %5075 = vmatprep.subr.mxu0 0.0
    %5076 = vmatpush1.msra.mxu0 0.0
    %5077 = vmatprep.subr.mxu0 0.0
    %5078 = vmatpush1.msra.mxu0 0.0
    %5079 = vmatprep.subr.mxu0 0.0
    %5080 = vmatpush1.msra.mxu0 0.0
    %5081 = vmatprep.subr.mxu0 0.0
    %5082 = vmatpush1.msra.mxu0 0.0
    %5083 = vmatprep.subr.mxu0 0.0
    %5084 = vmatpush1.msra.mxu0 0.0
    %5085 = vmatprep.subr.mxu0 0.0
    %5086 = vmatpush1.msra.mxu0 0.0
    %5087 = vmatprep.subr.mxu0 0.0
    %5088 = vmatpush1.msra.mxu0 0.0
    %5089 = vmatprep.subr.mxu0 0.0
    %5090 = vmatpush1.msra.mxu0 0.0
    %5091 = vmatprep.subr.mxu0 0.0
    %5092 = vmatpush1.msra.mxu0 0.0
    %5093 = vmatprep.subr.mxu0 0.0
    %5094 = vmatpush1.msra.mxu0 0.0
    %5095 = vmatprep.subr.mxu0 0.0
    %5096 = vmatpush1.msra.mxu0 0.0
    %5097 = vmatprep.subr.mxu0 0.0
    %5098 = vmatpush1.msra.mxu0 0.0
    %5099 = vmatprep.subr.mxu0 0.0
    %5100 = vmatpush1.msra.mxu0 0.0
    %5101 = vmatprep.subr.mxu0 0.0
    %5102 = vmatpush1.msra.mxu0 0.0
    %5103 = vmatprep.subr.mxu0 0.0
    %5104 = vmatpush1.msra.mxu0 0.0
    %5105 = vmatprep.subr.mxu0 0.0
    %5106 = vmatpush1.msra.mxu0 0.0
    %5107 = vmatprep.subr.mxu0 0.0
    %5108 = vmatpush1.msra.mxu0 0.0
    %5109 = vmatprep.subr.mxu0 0.0
    %5110 = vmatpush1.msra.mxu0 0.0
    %5111 = vmatprep.subr.mxu0 0.0
    %5112 = vmatpush1.msra.mxu0 0.0
    %5113 = vmatprep.subr.mxu0 0.0
    %5114 = vmatpush1.msra.mxu0 0.0
    %5115 = vmatprep.subr.mxu0 0.0
    %5116 = vmatpush1.msra.mxu0 0.0
    %5117 = vmatprep.subr.mxu0 0.0
    %5118 = vmatpush1.msra.mxu0 0.0
    %5119 = vmatprep.subr.mxu0 0.0
    %5120 = vmatpush1.msra.mxu0 0.0
    %5121 = vmatprep.subr.mxu0 0.0
    %5122 = vmatpush1.msra.mxu0 0.0
    %5123 = vmatprep.subr.mxu0 0.0
    %5124 = vmatpush1.msra.mxu0 0.0
    %5125 = vmatprep.subr.mxu0 0.0
    %5126 = vmatpush1.msra.mxu0 0.0
    %5127 = vmatprep.subr.mxu0 0.0
    %5128 = vmatpush1.msra.mxu0 0.0
    %5129 = vmatprep.mubr.f32.mxu0 0.0
    %v5130 = vand.u32 %v4714, 4294901760
    %5131 = vmatmul.mubr.f32.gmra.mrb[0].mxu0 %v5130
    %v5132 = vpop.f32.mrb[0].mxu0
    %v5133 = vadd.f32 %v5048, %v5132
    %v5134 = vpop.f32.mrb[0].mxu0
    %5135 = vmatprep.mubr.f32.mxu0 0.0
    %v5136 = vand.u32 %v4717, 4294901760
    %5137 = vmatmul.mubr.f32.gmra.mrb[0].mxu0 %v5136
    %v5138 = vpop.f32.mrb[0].mxu0
    %v5139 = vadd.f32 %v5056, %v5138
    %v5140 = vpop.f32.mrb[0].mxu0
    %5141 = vdwg.mxu0
    %5142 = vmatprep.subr.mxu0 0.0
    %v5143 = vand.u32 %v4711, 4294901760
    %5144 = vmatpush1.msra.mxu0 %v5143
    %5145 = vmatprep.subr.mxu0 0.0
    %v5146 = vand.u32 %v4712, 4294901760
    %5147 = vmatpush1.msra.mxu0 %v5146
    %5148 = vmatprep.subr.mxu0 0.0
    %5149 = vmatpush1.msra.mxu0 0.0
    %5150 = vmatprep.subr.mxu0 0.0
    %5151 = vmatpush1.msra.mxu0 0.0
    %5152 = vmatprep.subr.mxu0 0.0
    %5153 = vmatpush1.msra.mxu0 0.0
    %5154 = vmatprep.subr.mxu0 0.0
    %5155 = vmatpush1.msra.mxu0 0.0
    %5156 = vmatprep.subr.mxu0 0.0
    %5157 = vmatpush1.msra.mxu0 0.0
    %5158 = vmatprep.subr.mxu0 0.0
    %5159 = vmatpush1.msra.mxu0 0.0
    %5160 = vmatprep.subr.mxu0 0.0
    %5161 = vmatpush1.msra.mxu0 0.0
    %5162 = vmatprep.subr.mxu0 0.0
    %5163 = vmatpush1.msra.mxu0 0.0
    %5164 = vmatprep.subr.mxu0 0.0
    %5165 = vmatpush1.msra.mxu0 0.0
    %5166 = vmatprep.subr.mxu0 0.0
    %5167 = vmatpush1.msra.mxu0 0.0
    %5168 = vmatprep.subr.mxu0 0.0
    %5169 = vmatpush1.msra.mxu0 0.0
    %5170 = vmatprep.subr.mxu0 0.0
    %5171 = vmatpush1.msra.mxu0 0.0
    %5172 = vmatprep.subr.mxu0 0.0
    %5173 = vmatpush1.msra.mxu0 0.0
    %5174 = vmatprep.subr.mxu0 0.0
    %5175 = vmatpush1.msra.mxu0 0.0
    %5176 = vmatprep.subr.mxu0 0.0
    %5177 = vmatpush1.msra.mxu0 0.0
    %5178 = vmatprep.subr.mxu0 0.0
    %5179 = vmatpush1.msra.mxu0 0.0
    %5180 = vmatprep.subr.mxu0 0.0
    %5181 = vmatpush1.msra.mxu0 0.0
    %5182 = vmatprep.subr.mxu0 0.0
    %5183 = vmatpush1.msra.mxu0 0.0
    %5184 = vmatprep.subr.mxu0 0.0
    %5185 = vmatpush1.msra.mxu0 0.0
    %5186 = vmatprep.subr.mxu0 0.0
    %5187 = vmatpush1.msra.mxu0 0.0
    %5188 = vmatprep.subr.mxu0 0.0
    %5189 = vmatpush1.msra.mxu0 0.0
    %5190 = vmatprep.subr.mxu0 0.0
    %5191 = vmatpush1.msra.mxu0 0.0
    %5192 = vmatprep.subr.mxu0 0.0
    %5193 = vmatpush1.msra.mxu0 0.0
    %5194 = vmatprep.subr.mxu0 0.0
    %5195 = vmatpush1.msra.mxu0 0.0
    %5196 = vmatprep.subr.mxu0 0.0
    %5197 = vmatpush1.msra.mxu0 0.0
    %5198 = vmatprep.subr.mxu0 0.0
    %5199 = vmatpush1.msra.mxu0 0.0
    %5200 = vmatprep.subr.mxu0 0.0
    %5201 = vmatpush1.msra.mxu0 0.0
    %5202 = vmatprep.subr.mxu0 0.0
    %5203 = vmatpush1.msra.mxu0 0.0
    %5204 = vmatprep.subr.mxu0 0.0
    %5205 = vmatpush1.msra.mxu0 0.0
    %5206 = vmatprep.subr.mxu0 0.0
    %5207 = vmatpush1.msra.mxu0 0.0
    %5208 = vmatprep.mubr.f32.mxu0 0.0
    %v5209 = vand.u32 %v4714, 4294901760
    %5210 = vmatmul.mubr.f32.gmra.mrb[0].mxu0 %v5209
    %v5211 = vpop.f32.mrb[0].mxu0
    %v5212 = vadd.f32 %v5133, %v5211
    %v5213 = vpop.f32.mrb[0].mxu0
    %5214 = vmatprep.mubr.f32.mxu0 0.0
    %v5215 = vand.u32 %v4717, 4294901760
    %5216 = vmatmul.mubr.f32.gmra.mrb[0].mxu0 %v5215
    %v5217 = vpop.f32.mrb[0].mxu0
    %v5218 = vadd.f32 %v5139, %v5217
    %v5219 = vpop.f32.mrb[0].mxu0
    %5220 = vdwg.mxu0
    %5223 = vrot.lane.b32.xlu0 %v5212, 24
    %v5224 = vpop.permute.xlu0 %5223
    %5225 = vrot.lane.b32.xlu0 %v5218, 24
    %v5226 = vpop.permute.xlu0 %5225
    %vm5229 = vcmask 261312
    %5230 = vst.msk [vmem:[#allocation13] sm:$0xff] %vm5229, %v5224
    %5231 = vst.msk [vmem:[#allocation13 + $0x8] sm:$0xff] %vm5229, %v5226
    %5232 = vrot.lane.b32.xlu0 %v4032, 40
    %v5233 = vpop.permute.xlu0 %5232
    %5234 = vrot.lane.b32.xlu0 %v4033, 40
    %v5235 = vpop.permute.xlu0 %5234
    %5238 = vmatprep.subr.mxu0 0.0
    %5239 = vmatpush1.msra.mxu0 %v5233
    %5240 = vmatprep.subr.mxu0 0.0
    %5241 = vmatpush1.msra.mxu0 %v5235
    %5242 = vmatprep.subr.mxu0 0.0
    %5243 = vmatpush1.msra.mxu0 0.0
    %5244 = vmatprep.subr.mxu0 0.0
    %5245 = vmatpush1.msra.mxu0 0.0
    %5246 = vmatprep.subr.mxu0 0.0
    %5247 = vmatpush1.msra.mxu0 0.0
    %5248 = vmatprep.subr.mxu0 0.0
    %5249 = vmatpush1.msra.mxu0 0.0
    %5250 = vmatprep.subr.mxu0 0.0
    %5251 = vmatpush1.msra.mxu0 0.0
    %5252 = vmatprep.subr.mxu0 0.0
    %5253 = vmatpush1.msra.mxu0 0.0
    %5254 = vmatprep.subr.mxu0 0.0
    %5255 = vmatpush1.msra.mxu0 0.0
    %5256 = vmatprep.subr.mxu0 0.0
    %5257 = vmatpush1.msra.mxu0 0.0
    %5258 = vmatprep.subr.mxu0 0.0
    %5259 = vmatpush1.msra.mxu0 0.0
    %5260 = vmatprep.subr.mxu0 0.0
    %5261 = vmatpush1.msra.mxu0 0.0
    %5262 = vmatprep.subr.mxu0 0.0
    %5263 = vmatpush1.msra.mxu0 0.0
    %5264 = vmatprep.subr.mxu0 0.0
    %5265 = vmatpush1.msra.mxu0 0.0
    %5266 = vmatprep.subr.mxu0 0.0
    %5267 = vmatpush1.msra.mxu0 0.0
    %5268 = vmatprep.subr.mxu0 0.0
    %5269 = vmatpush1.msra.mxu0 0.0
    %5270 = vmatprep.subr.mxu0 0.0
    %5271 = vmatpush1.msra.mxu0 0.0
    %5272 = vmatprep.subr.mxu0 0.0
    %5273 = vmatpush1.msra.mxu0 0.0
    %5274 = vmatprep.subr.mxu0 0.0
    %5275 = vmatpush1.msra.mxu0 0.0
    %5276 = vmatprep.subr.mxu0 0.0
    %5277 = vmatpush1.msra.mxu0 0.0
    %5278 = vmatprep.subr.mxu0 0.0
    %5279 = vmatpush1.msra.mxu0 0.0
    %5280 = vmatprep.subr.mxu0 0.0
    %5281 = vmatpush1.msra.mxu0 0.0
    %5282 = vmatprep.subr.mxu0 0.0
    %5283 = vmatpush1.msra.mxu0 0.0
    %5284 = vmatprep.subr.mxu0 0.0
    %5285 = vmatpush1.msra.mxu0 0.0
    %5286 = vmatprep.subr.mxu0 0.0
    %5287 = vmatpush1.msra.mxu0 0.0
    %5288 = vmatprep.subr.mxu0 0.0
    %5289 = vmatpush1.msra.mxu0 0.0
    %5290 = vmatprep.subr.mxu0 0.0
    %5291 = vmatpush1.msra.mxu0 0.0
    %5292 = vmatprep.subr.mxu0 0.0
    %5293 = vmatpush1.msra.mxu0 0.0
    %5294 = vmatprep.subr.mxu0 0.0
    %5295 = vmatpush1.msra.mxu0 0.0
    %5296 = vmatprep.subr.mxu0 0.0
    %5297 = vmatpush1.msra.mxu0 0.0
    %5298 = vmatprep.subr.mxu0 0.0
    %5299 = vmatpush1.msra.mxu0 0.0
    %5300 = vmatprep.subr.mxu0 0.0
    %5301 = vmatpush1.msra.mxu0 0.0
    %5302 = vmatprep.mubr.f32.mxu0 0.0
    %5303 = vmatmul.mubr.f32.gmra.mrb[0].mxu0 %v4714
    %v5304 = vpop.f32.mrb[0].mxu0
    %v5305 = vadd.f32 0.0, %v5304
    %v5306 = vpop.f32.mrb[0].mxu0
    %5307 = vmatprep.mubr.f32.mxu0 0.0
    %5308 = vmatmul.mubr.f32.gmra.mrb[0].mxu0 %v4717
    %v5309 = vpop.f32.mrb[0].mxu0
    %v5310 = vadd.f32 0.0, %v5309
    %v5311 = vpop.f32.mrb[0].mxu0
    %5312 = vdwg.mxu0
    %5315 = vrot.lane.b32.xlu0 %v5305, 24
    %v5316 = vpop.permute.xlu0 %5315
    %5317 = vrot.lane.b32.xlu0 %v5310, 24
    %v5318 = vpop.permute.xlu0 %5317
    %5321 = vst.msk [vmem:[#allocation3] sm:$0xff] %vm5229, %v5316
    %5322 = vst.msk [vmem:[#allocation3 + $0x8] sm:$0xff] %vm5229, %v5318
    %v5323 = vld [vmem:[#allocation3] sm:$0xff]
    %v5324 = vld [vmem:[#allocation3 + $0x8] sm:$0xff]
    %v5325 = vld [vmem:[#allocation10] sm:$0xff]
    %v5326 = vld [vmem:[#allocation10 + $0x8] sm:$0xff]
    %v5327 = vld [vmem:[#allocation10 + $0x10] sm:$0xff]
    %v5328 = vld [vmem:[#allocation10 + $0x18] sm:$0xff]
    %v5329 = vld [vmem:[%s8] sm:$0x1]
    %v5331 = vlaneseq
    %v5332 = vshrl.u32 %v5331, 7
    %v5333 = vsub.s32 0, %v5332
    %v5334 = vrot.slane %v5329, %v5333
    %v5337 = vsel %vm97, %v5323, 0
    %v5340 = vsel %vm97, %v5324, 0
    %5342 = vmatprep.subr.mxu0 0.0
    %5343 = vmatpush1.msra.mxu0 %v5325
    %5344 = vmatprep.subr.mxu0 0.0
    %5345 = vmatpush1.msra.mxu0 %v5326
    %5346 = vmatprep.subr.mxu0 0.0
    %5347 = vmatpush1.msra.mxu0 %v5327
    %5348 = vmatprep.subr.mxu0 0.0
    %5349 = vmatpush1.msra.mxu0 %v5328
    %5350 = vmatprep.subr.mxu0 0.0
    %5351 = vmatpush1.msra.mxu0 0.0
    %5352 = vmatprep.subr.mxu0 0.0
    %5353 = vmatpush1.msra.mxu0 0.0
    %5354 = vmatprep.subr.mxu0 0.0
    %5355 = vmatpush1.msra.mxu0 0.0
    %5356 = vmatprep.subr.mxu0 0.0
    %5357 = vmatpush1.msra.mxu0 0.0
    %5358 = vmatprep.subr.mxu0 0.0
    %5359 = vmatpush1.msra.mxu0 0.0
    %5360 = vmatprep.subr.mxu0 0.0
    %5361 = vmatpush1.msra.mxu0 0.0
    %5362 = vmatprep.subr.mxu0 0.0
    %5363 = vmatpush1.msra.mxu0 0.0
    %5364 = vmatprep.subr.mxu0 0.0
    %5365 = vmatpush1.msra.mxu0 0.0
    %5366 = vmatprep.subr.mxu0 0.0
    %5367 = vmatpush1.msra.mxu0 0.0
    %5368 = vmatprep.subr.mxu0 0.0
    %5369 = vmatpush1.msra.mxu0 0.0
    %5370 = vmatprep.subr.mxu0 0.0
    %5371 = vmatpush1.msra.mxu0 0.0
    %5372 = vmatprep.subr.mxu0 0.0
    %5373 = vmatpush1.msra.mxu0 0.0
    %5374 = vmatprep.subr.mxu0 0.0
    %5375 = vmatpush1.msra.mxu0 0.0
    %5376 = vmatprep.subr.mxu0 0.0
    %5377 = vmatpush1.msra.mxu0 0.0
    %5378 = vmatprep.subr.mxu0 0.0
    %5379 = vmatpush1.msra.mxu0 0.0
    %5380 = vmatprep.subr.mxu0 0.0
    %5381 = vmatpush1.msra.mxu0 0.0
    %5382 = vmatprep.subr.mxu0 0.0
    %5383 = vmatpush1.msra.mxu0 0.0
    %5384 = vmatprep.subr.mxu0 0.0
    %5385 = vmatpush1.msra.mxu0 0.0
    %5386 = vmatprep.subr.mxu0 0.0
    %5387 = vmatpush1.msra.mxu0 0.0
    %5388 = vmatprep.subr.mxu0 0.0
    %5389 = vmatpush1.msra.mxu0 0.0
    %5390 = vmatprep.subr.mxu0 0.0
    %5391 = vmatpush1.msra.mxu0 0.0
    %5392 = vmatprep.subr.mxu0 0.0
    %5393 = vmatpush1.msra.mxu0 0.0
    %5394 = vmatprep.subr.mxu0 0.0
    %5395 = vmatpush1.msra.mxu0 0.0
    %5396 = vmatprep.subr.mxu0 0.0
    %5397 = vmatpush1.msra.mxu0 0.0
    %5398 = vmatprep.subr.mxu0 0.0
    %5399 = vmatpush1.msra.mxu0 0.0
    %5400 = vmatprep.subr.mxu0 0.0
    %5401 = vmatpush1.msra.mxu0 0.0
    %5402 = vmatprep.subr.mxu0 0.0
    %5403 = vmatpush1.msra.mxu0 0.0
    %5404 = vmatprep.subr.mxu0 0.0
    %5405 = vmatpush1.msra.mxu0 0.0
    %5406 = vmatprep.mubr.f32.mxu0 0.0
    %5407 = vmatmul.mubr.f32.gmra.mrb[0].mxu0 %v5337
    %v5408 = vpop.f32.mrb[0].mxu0
    %v5409 = vadd.f32 %v5334, %v5408
    %v5410 = vpop.f32.mrb[0].mxu0
    %5411 = vmatprep.mubr.f32.mxu0 0.0
    %5412 = vmatmul.mubr.f32.gmra.mrb[0].mxu0 %v5340
    %v5413 = vpop.f32.mrb[0].mxu0
    %v5414 = vadd.f32 %v5334, %v5413
    %v5415 = vpop.f32.mrb[0].mxu0
    %5416 = vdwg.mxu0
    %5417 = vst.msk [vmem:[#allocation12] sm:$0xff] %vm97, %v5409
    %5418 = vst.msk [vmem:[#allocation12 + $0x8] sm:$0xff] %vm97, %v5414
    // Predicated region
    $region54: #{tpu_custom_call.1} parent=1 // pred_check
      _
    $region55: #{tpu_custom_call.1} parent=1 // pred_check_branch
      %5420 = sbr.rel (0) target = $region57
    $region56: #{tpu_custom_call.1} parent=1 // pred_region
      %s5422 = ssub.s32 256, 256
      %5423 = vsyncadd [#allocation6], %s5422
      %s5424 = sshll.u32 [#allocation12], 4
      %s5425 = int_to_ptr.vmem [resolvable:$true] %s5424
      %5430 = dma.vmem_to_hbm [thread:$0]  %s5425, 256, %s9, [#allocation6], 128, 128, 8
    $region57: #{tpu_custom_call.1} parent=1 // pred_fallthru
      _
    // Predicated region
    $region58: #{tpu_custom_call.1} parent=1 // pred_check
      _
    $region59: #{tpu_custom_call.1} parent=1 // pred_check_branch
      %5432 = sbr.rel (0) target = $region61
    $region60: #{tpu_custom_call.1} parent=1 // pred_region
      %s5434 = ssub.s32 256, 256
      %5435 = vsyncadd [#allocation14], %s5434
      %s5436 = sshll.u32 [#allocation13], 4
      %s5437 = int_to_ptr.vmem [resolvable:$true] %s5436
      %5442 = dma.vmem_to_hbm [thread:$0]  %s5437, 256, %s10, [#allocation14], 128, 128, 8
    $region61: #{tpu_custom_call.1} parent=1 // pred_fallthru
      _
    // Predicated region
    $region62: #{tpu_custom_call.1} parent=1 // pred_check
      _
    $region63: #{tpu_custom_call.1} parent=1 // pred_check_branch
      %5444 = sbr.rel (0) target = $region65
    $region64: #{tpu_custom_call.1} parent=1 // pred_region
      %5445 = dma.done [#allocation6], 256
    $region65: #{tpu_custom_call.1} parent=1 // pred_fallthru
      _
    // Predicated region
    $region66: #{tpu_custom_call.1} parent=1 // pred_check
      _
    $region67: #{tpu_custom_call.1} parent=1 // pred_check_branch
      %5447 = sbr.rel (0) target = $region69
    $region68: #{tpu_custom_call.1} parent=1 // pred_region
      %5448 = dma.done [#allocation14], 256
    $region69: #{tpu_custom_call.1} parent=1 // pred_fallthru
      _
    %5449 = vsyncpa [#allocation5], 1
    %5450 = vsyncpa [#allocation8], 1
    %5451 = vsyncpa [#allocation11], 1
    %5452 = vsyncpa [#allocation6], 1
    %5453 = vsyncpa [#allocation14], 1

</llo_original>
